<compile_context>
chip_gen: v6e
topology: v6e:2x2x1
jax: 0.10.0
libtpu: 0.0.40
codegen_flags: <defaults>
</compile_context>

<pallas_src>
import functools
import math

import jax
import jax.numpy as jnp
from jax import lax
from jax.experimental import pallas as pl
from jax.experimental.pallas import tpu as pltpu


def _conv_layer_kernel(x_ref, w1_ref, b1_ref, w2_ref, b2_ref, out_ref,
                       xp_ref, col1_ref, pp_ref, col2_ref, *, use_relu):
    """Fused conv_layer forward for one block of B batch elements.

    x_ref   : [B, H, W, Cin]            input block (NHWC, channels on lanes)
    w1_ref  : [9*Cin, C1]               im2col conv1 weights (BN1 scale folded in)
    b1_ref  : [1, C1]                   folded BN1 bias
    w2_ref  : [9*C1, C2]                im2col conv2 weights (BN2 scale folded in)
    b2_ref  : [1, C2]                   folded BN2 bias
    out_ref : [B, 1, C2]                global-average-pooled features
    xp_ref  : [B, H+2, W+2, Cin]  VMEM  zero-padded conv1 input scratch
    col1_ref: [B, H, W, 9*Cin]    VMEM  conv1 im2col column buffer
    pp_ref  : [B, H2+2, W2+2, C1] VMEM  zero-padded conv2 input scratch
    col2_ref: [B, H2, W2, 9*C1]   VMEM  conv2 im2col column buffer
    """
    B, H, W, Cin = x_ref.shape
    C1 = w1_ref.shape[1]
    C2 = w2_ref.shape[1]
    H2, W2 = H // 2, W // 2

    # ---- conv1: zero borders (megacore-safe), write interior, im2col --------
    xp_ref[:, 0:1, :, :] = jnp.zeros((B, 1, W + 2, Cin), jnp.float32)
    xp_ref[:, H + 1:H + 2, :, :] = jnp.zeros((B, 1, W + 2, Cin), jnp.float32)
    xp_ref[:, :, 0:1, :] = jnp.zeros((B, H + 2, 1, Cin), jnp.float32)
    xp_ref[:, :, W + 1:W + 2, :] = jnp.zeros((B, H + 2, 1, Cin), jnp.float32)
    xp_ref[:, 1:H + 1, 1:W + 1, :] = x_ref[...]

    for k in range(9):                              # fill column buffer once
        dy, dx = k // 3, k % 3
        col1_ref[:, :, :, k * Cin:(k + 1) * Cin] = xp_ref[:, dy:dy + H,
                                                          dx:dx + W, :]

    # single MXU matmul, K = 9*Cin; BN1 scale pre-folded into w1
    y1 = jnp.dot(col1_ref[...].reshape(B * H * W, 9 * Cin), w1_ref[...],
                 preferred_element_type=jnp.float32)
    y1 = y1 + b1_ref[...]
    if use_relu:
        y1 = jnp.maximum(y1, 0.0)

    # ---- 2x2 max-pool, stride 2 ---------------------------------------------
    y1 = jnp.max(y1.reshape(B, H2, 2, W, C1), axis=2)
    pooled = jnp.max(y1.reshape(B, H2, W2, 2, C1), axis=3)   # [B, H2, W2, C1]

    # ---- conv2: same structure on the pooled map -----------------------------
    pp_ref[:, 0:1, :, :] = jnp.zeros((B, 1, W2 + 2, C1), jnp.float32)
    pp_ref[:, H2 + 1:H2 + 2, :, :] = jnp.zeros((B, 1, W2 + 2, C1), jnp.float32)
    pp_ref[:, :, 0:1, :] = jnp.zeros((B, H2 + 2, 1, C1), jnp.float32)
    pp_ref[:, :, W2 + 1:W2 + 2, :] = jnp.zeros((B, H2 + 2, 1, C1), jnp.float32)
    pp_ref[:, 1:H2 + 1, 1:W2 + 1, :] = pooled

    for k in range(9):
        dy, dx = k // 3, k % 3
        col2_ref[:, :, :, k * C1:(k + 1) * C1] = pp_ref[:, dy:dy + H2,
                                                        dx:dx + W2, :]

    y2 = jnp.dot(col2_ref[...].reshape(B * H2 * W2, 9 * C1), w2_ref[...],
                 preferred_element_type=jnp.float32)
    y2 = y2 + b2_ref[...]
    if use_relu:
        y2 = jnp.maximum(y2, 0.0)

    # ---- global average pool -> [B, 1, C2] ------------------------------------
    out_ref[...] = jnp.mean(y2.reshape(B, H2 * W2, C2), axis=1, keepdims=True)


def _fold_bn(gamma, beta, mean, var, eps=1e-5):
    scale = gamma * lax.rsqrt(var + eps)
    return scale, beta - mean * scale


def _vmem_padded_bytes(shape, itemsize=4):
    """Bytes a f32 VMEM buffer actually occupies after (8,128) tile padding."""
    lead = 1
    for d in shape[:-2]:
        lead *= d
    s = -(-shape[-2] // 8) * 8
    l = -(-shape[-1] // 128) * 128
    return lead * s * l * itemsize


def _pick_batch_block(N, per_elem_bytes, budget_bytes=10 << 20):
    """Largest divisor of N whose per-step VMEM fits the budget; keep grid>=2."""
    cap = max(1, budget_bytes // max(per_elem_bytes, 1))
    if N >= 2:
        cap = min(cap, N // 2)      # grid >= 2 so v7x megacore can split batch
    cap = int(min(cap, N))
    for b in range(cap, 0, -1):
        if N % b == 0:
            return b
    return 1


def conv_layer_forward(x_nchw, params, *, use_relu=True):
    """x_nchw: [N, Cin, H, W] float32.  Returns [N, out_channels] float32."""
    N, Cin, H, W = x_nchw.shape
    assert H % 2 == 0 and W % 2 == 0, "2x2 max-pool requires even H, W"
    w1, w2 = params["conv1_w"], params["conv2_w"]            # [C1,Cin,3,3], [C2,C1,3,3]
    C1, C2 = w1.shape[0], w2.shape[0]
    H2, W2 = H // 2, W // 2

    # layout plumbing (one-time): channels-last activations, im2col weights
    x = jnp.transpose(x_nchw, (0, 2, 3, 1))                  # [N, H, W, Cin]
    w1k = jnp.transpose(w1, (2, 3, 1, 0)).reshape(9 * Cin, C1)   # [(dy,dx,ci), co]
    w2k = jnp.transpose(w2, (2, 3, 1, 0)).reshape(9 * C1, C2)

    s1, b1 = _fold_bn(params["bn1_gamma"], params["bn1_beta"],
                      params["bn1_mean"], params["bn1_var"])
    s2, b2 = _fold_bn(params["bn2_gamma"], params["bn2_beta"],
                      params["bn2_mean"], params["bn2_var"])
    # fold BN scale into the conv weights (conv has no bias): y = x@(w*s) + b
    w1k = w1k * s1[None, :]
    w2k = w2k * s2[None, :]

    # per-batch-element VMEM footprint (tile-padded): scratch + 2x input block
    # + large conv/pool intermediates.
    per_elem = (_vmem_padded_bytes((1, H + 2, W + 2, Cin))
                + _vmem_padded_bytes((1, H, W, 9 * Cin))
                + _vmem_padded_bytes((1, H2 + 2, W2 + 2, C1))
                + _vmem_padded_bytes((1, H2, W2, 9 * C1))
                + 2 * _vmem_padded_bytes((1, H, W, Cin))
                + _vmem_padded_bytes((H * W, C1))
                + _vmem_padded_bytes((1, H2, W2, C1))
                + _vmem_padded_bytes((H2 * W2, C2)))
    B_BLK = _pick_batch_block(N, per_elem)

    kernel = functools.partial(_conv_layer_kernel, use_relu=use_relu)
    out = pl.pallas_call(
        kernel,
        out_shape=jax.ShapeDtypeStruct((N, 1, C2), jnp.float32),
        grid_spec=pltpu.PrefetchScalarGridSpec(
            num_scalar_prefetch=0,
            grid=(N // B_BLK,),
            in_specs=[
                pl.BlockSpec((B_BLK, H, W, Cin), lambda n: (n, 0, 0, 0)),
                pl.BlockSpec((9 * Cin, C1), lambda n: (0, 0)),
                pl.BlockSpec((1, C1), lambda n: (0, 0)),
                pl.BlockSpec((9 * C1, C2), lambda n: (0, 0)),
                pl.BlockSpec((1, C2), lambda n: (0, 0)),
            ],
            out_specs=pl.BlockSpec((B_BLK, 1, C2), lambda n: (n, 0, 0)),
            scratch_shapes=[
                pltpu.VMEM((B_BLK, H + 2, W + 2, Cin), jnp.float32),
                pltpu.VMEM((B_BLK, H, W, 9 * Cin), jnp.float32),
                pltpu.VMEM((B_BLK, H2 + 2, W2 + 2, C1), jnp.float32),
                pltpu.VMEM((B_BLK, H2, W2, 9 * C1), jnp.float32),
            ],
        ),
        compiler_params=pltpu.CompilerParams(
            dimension_semantics=("parallel",),
            vmem_limit_bytes=32 * 1024 * 1024),
    )(x, w1k, b1.reshape(1, C1), w2k, b2.reshape(1, C2))
    return out.reshape(N, C2)


def init_params(key, in_channels, out_channels, learn_bn=True):
    c1, c2 = out_channels // 2, out_channels
    ks = jax.random.split(key, 10)
    w1 = jax.random.normal(ks[0], (c1, in_channels, 3, 3), jnp.float32) * \
        math.sqrt(2.0 / (in_channels * 9))                   # kaiming_normal fan_in
    w2 = jax.random.normal(ks[1], (c2, c1, 3, 3), jnp.float32) * \
        math.sqrt(2.0 / (c1 * 9))

    def bn(kg, kb, km, kv, c):
        if learn_bn:
            gamma = 1.0 + 0.1 * jax.random.normal(kg, (c,), jnp.float32)
            beta = 0.1 * jax.random.normal(kb, (c,), jnp.float32)
        else:
            gamma = jnp.ones((c,), jnp.float32)
            beta = jnp.zeros((c,), jnp.float32)
        mean = 0.1 * jax.random.normal(km, (c,), jnp.float32)
        var = 0.5 + jax.random.uniform(kv, (c,), jnp.float32)
        return gamma, beta, mean, var

    g1, b1, m1, v1 = bn(ks[2], ks[3], ks[4], ks[5], c1)
    g2, b2, m2, v2 = bn(ks[6], ks[7], ks[8], ks[9], c2)
    return dict(conv1_w=w1, conv2_w=w2,
                bn1_gamma=g1, bn1_beta=b1, bn1_mean=m1, bn1_var=v1,
                bn2_gamma=g2, bn2_beta=b2, bn2_mean=m2, bn2_var=v2)


def _reference_forward(x, params, *, use_relu=True, eps=1e-5):
    """Pure-JAX reference mirroring the PyTorch module (eval-mode BN)."""
    def conv(z, w):
        return lax.conv_general_dilated(
            z, w, (1, 1), ((1, 1), (1, 1)),
            dimension_numbers=("NCHW", "OIHW", "NCHW"))

    def bn(z, g, b, m, v):
        s = g / jnp.sqrt(v + eps)
        return z * s[None, :, None, None] + (b - m * s)[None, :, None, None]

    out = bn(conv(x, params["conv1_w"]), params["bn1_gamma"],
             params["bn1_beta"], params["bn1_mean"], params["bn1_var"])
    if use_relu:
        out = jnp.maximum(out, 0.0)
    N, C, H, W = out.shape
    out = out.reshape(N, C, H // 2, 2, W // 2, 2).max(axis=(3, 5))
    out = bn(conv(out, params["conv2_w"]), params["bn2_gamma"],
             params["bn2_beta"], params["bn2_mean"], params["bn2_var"])
    if use_relu:
        out = jnp.maximum(out, 0.0)
    return out.mean(axis=(2, 3))


if __name__ == "__main__":
    key = jax.random.PRNGKey(0)
    k_x, k_p = jax.random.split(key)
    N, Cin, H, W = 2, 4, 16, 16
    out_channels = 32

    x = jax.random.normal(k_x, (N, Cin, H, W), jnp.float32)
    params = init_params(k_p, Cin, out_channels, learn_bn=True)

    out = conv_layer_forward(x, params, use_relu=True)
    jax.block_until_ready(out)
    assert out.shape == (N, out_channels) and out.dtype == jnp.float32

    ref = _reference_forward(x, params, use_relu=True)
    err = float(jnp.max(jnp.abs(out - ref)))
    assert jnp.allclose(out, ref, rtol=2e-3, atol=2e-3), f"max abs err {err}"
    print("KERNEL_OK")
</pallas_src>

<mosaic_0001>
module attributes {stable_mosaic.version = 11 : i64} {
  func.func @_conv_layer_kernel(%arg0: i32, %arg1: memref<1x16x16x4xf32, #tpu.memory_space<vmem>>, %arg2: memref<36x16xf32, #tpu.memory_space<vmem>>, %arg3: memref<1x16xf32, #tpu.memory_space<vmem>>, %arg4: memref<144x32xf32, #tpu.memory_space<vmem>>, %arg5: memref<1x32xf32, #tpu.memory_space<vmem>>, %arg6: memref<1x1x32xf32, #tpu.memory_space<vmem>>, %arg7: memref<1x18x18x4xf32, #tpu.memory_space<vmem>>, %arg8: memref<1x16x16x36xf32, #tpu.memory_space<vmem>>, %arg9: memref<1x10x10x16xf32, #tpu.memory_space<vmem>>, %arg10: memref<1x8x8x144xf32, #tpu.memory_space<vmem>>) attributes {dimension_semantics = [#tpu.dimension_semantics<parallel>], iteration_bounds = array<i64: 2>, scalar_prefetch = 0 : i64, scratch_operands = 4 : i64, tpu.core_type = #tpu.core_type<tc>, window_params = [{transform_indices = @transform_0, window_bounds = array<i64: 1, 16, 16, 4>}, {pipeline_mode = #tpu.pipeline_mode<synchronous>, transform_indices = @transform_1, window_bounds = array<i64: 36, 16>}, {pipeline_mode = #tpu.pipeline_mode<synchronous>, transform_indices = @transform_2, window_bounds = array<i64: 1, 16>}, {pipeline_mode = #tpu.pipeline_mode<synchronous>, transform_indices = @transform_3, window_bounds = array<i64: 144, 32>}, {pipeline_mode = #tpu.pipeline_mode<synchronous>, transform_indices = @transform_4, window_bounds = array<i64: 1, 32>}, {transform_indices = @transform_5, window_bounds = array<i64: 1, 1, 32>}]} {
    %cst = arith.constant 0.000000e+00 : f32
    %0 = vector.broadcast %cst : f32 to vector<1x1x18x4xf32>
    %c0 = arith.constant 0 : index
    %c0_0 = arith.constant 0 : index
    %c0_1 = arith.constant 0 : index
    %c0_2 = arith.constant 0 : index
    %1 = vector.load %arg7[%c0, %c0_0, %c0_1, %c0_2] : memref<1x18x18x4xf32, #tpu.memory_space<vmem>>, vector<1x1x18x4xf32>
    tpu.vector_store %arg7[%c0, %c0_0, %c0_1, %c0_2], %0 {strides = array<i32>} : memref<1x18x18x4xf32, #tpu.memory_space<vmem>>, vector<1x1x18x4xf32>,
    %cst_3 = arith.constant 0.000000e+00 : f32
    %2 = vector.broadcast %cst_3 : f32 to vector<1x1x18x4xf32>
    %c0_4 = arith.constant 0 : index
    %c17 = arith.constant 17 : index
    %c0_5 = arith.constant 0 : index
    %c0_6 = arith.constant 0 : index
    %3 = vector.load %arg7[%c0_4, %c17, %c0_5, %c0_6] : memref<1x18x18x4xf32, #tpu.memory_space<vmem>>, vector<1x1x18x4xf32>
    tpu.vector_store %arg7[%c0_4, %c17, %c0_5, %c0_6], %2 {strides = array<i32>} : memref<1x18x18x4xf32, #tpu.memory_space<vmem>>, vector<1x1x18x4xf32>,
    %cst_7 = arith.constant 0.000000e+00 : f32
    %4 = vector.broadcast %cst_7 : f32 to vector<1x18x1x4xf32>
    %c0_8 = arith.constant 0 : index
    %c0_9 = arith.constant 0 : index
    %c0_10 = arith.constant 0 : index
    %c0_11 = arith.constant 0 : index
    %5 = vector.load %arg7[%c0_8, %c0_9, %c0_10, %c0_11] : memref<1x18x18x4xf32, #tpu.memory_space<vmem>>, vector<1x18x1x4xf32>
    tpu.vector_store %arg7[%c0_8, %c0_9, %c0_10, %c0_11], %4 {strides = array<i32>} : memref<1x18x18x4xf32, #tpu.memory_space<vmem>>, vector<1x18x1x4xf32>,
    %cst_12 = arith.constant 0.000000e+00 : f32
    %6 = vector.broadcast %cst_12 : f32 to vector<1x18x1x4xf32>
    %c0_13 = arith.constant 0 : index
    %c0_14 = arith.constant 0 : index
    %c17_15 = arith.constant 17 : index
    %c0_16 = arith.constant 0 : index
    %7 = vector.load %arg7[%c0_13, %c0_14, %c17_15, %c0_16] : memref<1x18x18x4xf32, #tpu.memory_space<vmem>>, vector<1x18x1x4xf32>
    tpu.vector_store %arg7[%c0_13, %c0_14, %c17_15, %c0_16], %6 {strides = array<i32>} : memref<1x18x18x4xf32, #tpu.memory_space<vmem>>, vector<1x18x1x4xf32>,
    %c0_17 = arith.constant 0 : index
    %c0_18 = arith.constant 0 : index
    %c0_19 = arith.constant 0 : index
    %c0_20 = arith.constant 0 : index
    %8 = vector.load %arg1[%c0_17, %c0_18, %c0_19, %c0_20] : memref<1x16x16x4xf32, #tpu.memory_space<vmem>>, vector<1x16x16x4xf32>
    %c0_21 = arith.constant 0 : index
    %c1 = arith.constant 1 : index
    %c1_22 = arith.constant 1 : index
    %c0_23 = arith.constant 0 : index
    %9 = vector.load %arg7[%c0_21, %c1, %c1_22, %c0_23] : memref<1x18x18x4xf32, #tpu.memory_space<vmem>>, vector<1x16x16x4xf32>
    tpu.vector_store %arg7[%c0_21, %c1, %c1_22, %c0_23], %8 {strides = array<i32>} : memref<1x18x18x4xf32, #tpu.memory_space<vmem>>, vector<1x16x16x4xf32>,
    %c0_24 = arith.constant 0 : index
    %c0_25 = arith.constant 0 : index
    %c0_26 = arith.constant 0 : index
    %c0_27 = arith.constant 0 : index
    %10 = vector.load %arg7[%c0_24, %c0_25, %c0_26, %c0_27] : memref<1x18x18x4xf32, #tpu.memory_space<vmem>>, vector<1x16x16x4xf32>
    %c0_28 = arith.constant 0 : index
    %c0_29 = arith.constant 0 : index
    %c0_30 = arith.constant 0 : index
    %c0_31 = arith.constant 0 : index
    %11 = vector.load %arg8[%c0_28, %c0_29, %c0_30, %c0_31] : memref<1x16x16x36xf32, #tpu.memory_space<vmem>>, vector<1x16x16x4xf32>
    tpu.vector_store %arg8[%c0_28, %c0_29, %c0_30, %c0_31], %10 {strides = array<i32>} : memref<1x16x16x36xf32, #tpu.memory_space<vmem>>, vector<1x16x16x4xf32>,
    %c0_32 = arith.constant 0 : index
    %c0_33 = arith.constant 0 : index
    %c1_34 = arith.constant 1 : index
    %c0_35 = arith.constant 0 : index
    %12 = vector.load %arg7[%c0_32, %c0_33, %c1_34, %c0_35] : memref<1x18x18x4xf32, #tpu.memory_space<vmem>>, vector<1x16x16x4xf32>
    %c0_36 = arith.constant 0 : index
    %c0_37 = arith.constant 0 : index
    %c0_38 = arith.constant 0 : index
    %c4 = arith.constant 4 : index
    %13 = vector.load %arg8[%c0_36, %c0_37, %c0_38, %c4] : memref<1x16x16x36xf32, #tpu.memory_space<vmem>>, vector<1x16x16x4xf32>
    tpu.vector_store %arg8[%c0_36, %c0_37, %c0_38, %c4], %12 {strides = array<i32>} : memref<1x16x16x36xf32, #tpu.memory_space<vmem>>, vector<1x16x16x4xf32>,
    %c0_39 = arith.constant 0 : index
    %c0_40 = arith.constant 0 : index
    %c2 = arith.constant 2 : index
    %c0_41 = arith.constant 0 : index
    %14 = vector.load %arg7[%c0_39, %c0_40, %c2, %c0_41] : memref<1x18x18x4xf32, #tpu.memory_space<vmem>>, vector<1x16x16x4xf32>
    %c0_42 = arith.constant 0 : index
    %c0_43 = arith.constant 0 : index
    %c0_44 = arith.constant 0 : index
    %c8 = arith.constant 8 : index
    %15 = vector.load %arg8[%c0_42, %c0_43, %c0_44, %c8] : memref<1x16x16x36xf32, #tpu.memory_space<vmem>>, vector<1x16x16x4xf32>
    tpu.vector_store %arg8[%c0_42, %c0_43, %c0_44, %c8], %14 {strides = array<i32>} : memref<1x16x16x36xf32, #tpu.memory_space<vmem>>, vector<1x16x16x4xf32>,
    %c0_45 = arith.constant 0 : index
    %c1_46 = arith.constant 1 : index
    %c0_47 = arith.constant 0 : index
    %c0_48 = arith.constant 0 : index
    %16 = vector.load %arg7[%c0_45, %c1_46, %c0_47, %c0_48] : memref<1x18x18x4xf32, #tpu.memory_space<vmem>>, vector<1x16x16x4xf32>
    %c0_49 = arith.constant 0 : index
    %c0_50 = arith.constant 0 : index
    %c0_51 = arith.constant 0 : index
    %c12 = arith.constant 12 : index
    %17 = vector.load %arg8[%c0_49, %c0_50, %c0_51, %c12] : memref<1x16x16x36xf32, #tpu.memory_space<vmem>>, vector<1x16x16x4xf32>
    tpu.vector_store %arg8[%c0_49, %c0_50, %c0_51, %c12], %16 {strides = array<i32>} : memref<1x16x16x36xf32, #tpu.memory_space<vmem>>, vector<1x16x16x4xf32>,
    %c0_52 = arith.constant 0 : index
    %c1_53 = arith.constant 1 : index
    %c1_54 = arith.constant 1 : index
    %c0_55 = arith.constant 0 : index
    %18 = vector.load %arg7[%c0_52, %c1_53, %c1_54, %c0_55] : memref<1x18x18x4xf32, #tpu.memory_space<vmem>>, vector<1x16x16x4xf32>
    %c0_56 = arith.constant 0 : index
    %c0_57 = arith.constant 0 : index
    %c0_58 = arith.constant 0 : index
    %c16 = arith.constant 16 : index
    %19 = vector.load %arg8[%c0_56, %c0_57, %c0_58, %c16] : memref<1x16x16x36xf32, #tpu.memory_space<vmem>>, vector<1x16x16x4xf32>
    tpu.vector_store %arg8[%c0_56, %c0_57, %c0_58, %c16], %18 {strides = array<i32>} : memref<1x16x16x36xf32, #tpu.memory_space<vmem>>, vector<1x16x16x4xf32>,
    %c0_59 = arith.constant 0 : index
    %c1_60 = arith.constant 1 : index
    %c2_61 = arith.constant 2 : index
    %c0_62 = arith.constant 0 : index
    %20 = vector.load %arg7[%c0_59, %c1_60, %c2_61, %c0_62] : memref<1x18x18x4xf32, #tpu.memory_space<vmem>>, vector<1x16x16x4xf32>
    %c0_63 = arith.constant 0 : index
    %c0_64 = arith.constant 0 : index
    %c0_65 = arith.constant 0 : index
    %c20 = arith.constant 20 : index
    %21 = vector.load %arg8[%c0_63, %c0_64, %c0_65, %c20] : memref<1x16x16x36xf32, #tpu.memory_space<vmem>>, vector<1x16x16x4xf32>
    tpu.vector_store %arg8[%c0_63, %c0_64, %c0_65, %c20], %20 {strides = array<i32>} : memref<1x16x16x36xf32, #tpu.memory_space<vmem>>, vector<1x16x16x4xf32>,
    %c0_66 = arith.constant 0 : index
    %c2_67 = arith.constant 2 : index
    %c0_68 = arith.constant 0 : index
    %c0_69 = arith.constant 0 : index
    %22 = vector.load %arg7[%c0_66, %c2_67, %c0_68, %c0_69] : memref<1x18x18x4xf32, #tpu.memory_space<vmem>>, vector<1x16x16x4xf32>
    %c0_70 = arith.constant 0 : index
    %c0_71 = arith.constant 0 : index
    %c0_72 = arith.constant 0 : index
    %c24 = arith.constant 24 : index
    %23 = vector.load %arg8[%c0_70, %c0_71, %c0_72, %c24] : memref<1x16x16x36xf32, #tpu.memory_space<vmem>>, vector<1x16x16x4xf32>
    tpu.vector_store %arg8[%c0_70, %c0_71, %c0_72, %c24], %22 {strides = array<i32>} : memref<1x16x16x36xf32, #tpu.memory_space<vmem>>, vector<1x16x16x4xf32>,
    %c0_73 = arith.constant 0 : index
    %c2_74 = arith.constant 2 : index
    %c1_75 = arith.constant 1 : index
    %c0_76 = arith.constant 0 : index
    %24 = vector.load %arg7[%c0_73, %c2_74, %c1_75, %c0_76] : memref<1x18x18x4xf32, #tpu.memory_space<vmem>>, vector<1x16x16x4xf32>
    %c0_77 = arith.constant 0 : index
    %c0_78 = arith.constant 0 : index
    %c0_79 = arith.constant 0 : index
    %c28 = arith.constant 28 : index
    %25 = vector.load %arg8[%c0_77, %c0_78, %c0_79, %c28] : memref<1x16x16x36xf32, #tpu.memory_space<vmem>>, vector<1x16x16x4xf32>
    tpu.vector_store %arg8[%c0_77, %c0_78, %c0_79, %c28], %24 {strides = array<i32>} : memref<1x16x16x36xf32, #tpu.memory_space<vmem>>, vector<1x16x16x4xf32>,
    %c0_80 = arith.constant 0 : index
    %c2_81 = arith.constant 2 : index
    %c2_82 = arith.constant 2 : index
    %c0_83 = arith.constant 0 : index
    %26 = vector.load %arg7[%c0_80, %c2_81, %c2_82, %c0_83] : memref<1x18x18x4xf32, #tpu.memory_space<vmem>>, vector<1x16x16x4xf32>
    %c0_84 = arith.constant 0 : index
    %c0_85 = arith.constant 0 : index
    %c0_86 = arith.constant 0 : index
    %c32 = arith.constant 32 : index
    %27 = vector.load %arg8[%c0_84, %c0_85, %c0_86, %c32] : memref<1x16x16x36xf32, #tpu.memory_space<vmem>>, vector<1x16x16x4xf32>
    tpu.vector_store %arg8[%c0_84, %c0_85, %c0_86, %c32], %26 {strides = array<i32>} : memref<1x16x16x36xf32, #tpu.memory_space<vmem>>, vector<1x16x16x4xf32>,
    %c0_87 = arith.constant 0 : index
    %c0_88 = arith.constant 0 : index
    %c0_89 = arith.constant 0 : index
    %c0_90 = arith.constant 0 : index
    %28 = vector.load %arg8[%c0_87, %c0_88, %c0_89, %c0_90] : memref<1x16x16x36xf32, #tpu.memory_space<vmem>>, vector<1x16x16x36xf32>
    %29 = vector.shape_cast %28 : vector<1x16x16x36xf32> to vector<256x36xf32>
    %c0_91 = arith.constant 0 : index
    %c0_92 = arith.constant 0 : index
    %30 = vector.load %arg2[%c0_91, %c0_92] : memref<36x16xf32, #tpu.memory_space<vmem>>, vector<36x16xf32>
    %cst_93 = arith.constant dense<0.000000e+00> : vector<256x16xf32>
    %31 = tpu.matmul %29, %30, %cst_93 {dimension_numbers = #tpu.dot_dimension_numbers<[1], [0], [0], [1], [0, 0, 1, 1], [], []>} : vector<256x36xf32>, vector<36x16xf32>, vector<256x16xf32> -> vector<256x16xf32>
    %c0_94 = arith.constant 0 : index
    %c0_95 = arith.constant 0 : index
    %32 = vector.load %arg3[%c0_94, %c0_95] : memref<1x16xf32, #tpu.memory_space<vmem>>, vector<1x16xf32>
    %33 = vector.broadcast %32 : vector<1x16xf32> to vector<256x16xf32>
    %34 = arith.addf %31, %33 : vector<256x16xf32>
    %cst_96 = arith.constant 0.000000e+00 : f32
    %35 = vector.broadcast %cst_96 : f32 to vector<256x16xf32>
    %36 = arith.maximumf %34, %35 : vector<256x16xf32>
    %37 = vector.shape_cast %36 : vector<256x16xf32> to vector<1x8x2x16x16xf32>
    %cst_97 = arith.constant dense<0xFF800000> : vector<1x8x16x16xf32>
    %38 = vector.multi_reduction <maximumf>, %37, %cst_97 [2] : vector<1x8x2x16x16xf32> to vector<1x8x16x16xf32>
    %39 = vector.shape_cast %38 : vector<1x8x16x16xf32> to vector<1x8x8x2x16xf32>
    %cst_98 = arith.constant dense<0xFF800000> : vector<1x8x8x16xf32>
    %40 = vector.multi_reduction <maximumf>, %39, %cst_98 [3] : vector<1x8x8x2x16xf32> to vector<1x8x8x16xf32>
    %cst_99 = arith.constant 0.000000e+00 : f32
    %41 = vector.broadcast %cst_99 : f32 to vector<1x1x10x16xf32>
    %c0_100 = arith.constant 0 : index
    %c0_101 = arith.constant 0 : index
    %c0_102 = arith.constant 0 : index
    %c0_103 = arith.constant 0 : index
    %42 = vector.load %arg9[%c0_100, %c0_101, %c0_102, %c0_103] : memref<1x10x10x16xf32, #tpu.memory_space<vmem>>, vector<1x1x10x16xf32>
    tpu.vector_store %arg9[%c0_100, %c0_101, %c0_102, %c0_103], %41 {strides = array<i32>} : memref<1x10x10x16xf32, #tpu.memory_space<vmem>>, vector<1x1x10x16xf32>,
    %cst_104 = arith.constant 0.000000e+00 : f32
    %43 = vector.broadcast %cst_104 : f32 to vector<1x1x10x16xf32>
    %c0_105 = arith.constant 0 : index
    %c9 = arith.constant 9 : index
    %c0_106 = arith.constant 0 : index
    %c0_107 = arith.constant 0 : index
    %44 = vector.load %arg9[%c0_105, %c9, %c0_106, %c0_107] : memref<1x10x10x16xf32, #tpu.memory_space<vmem>>, vector<1x1x10x16xf32>
    tpu.vector_store %arg9[%c0_105, %c9, %c0_106, %c0_107], %43 {strides = array<i32>} : memref<1x10x10x16xf32, #tpu.memory_space<vmem>>, vector<1x1x10x16xf32>,
    %cst_108 = arith.constant 0.000000e+00 : f32
    %45 = vector.broadcast %cst_108 : f32 to vector<1x10x1x16xf32>
    %c0_109 = arith.constant 0 : index
    %c0_110 = arith.constant 0 : index
    %c0_111 = arith.constant 0 : index
    %c0_112 = arith.constant 0 : index
    %46 = vector.load %arg9[%c0_109, %c0_110, %c0_111, %c0_112] : memref<1x10x10x16xf32, #tpu.memory_space<vmem>>, vector<1x10x1x16xf32>
    tpu.vector_store %arg9[%c0_109, %c0_110, %c0_111, %c0_112], %45 {strides = array<i32>} : memref<1x10x10x16xf32, #tpu.memory_space<vmem>>, vector<1x10x1x16xf32>,
    %cst_113 = arith.constant 0.000000e+00 : f32
    %47 = vector.broadcast %cst_113 : f32 to vector<1x10x1x16xf32>
    %c0_114 = arith.constant 0 : index
    %c0_115 = arith.constant 0 : index
    %c9_116 = arith.constant 9 : index
    %c0_117 = arith.constant 0 : index
    %48 = vector.load %arg9[%c0_114, %c0_115, %c9_116, %c0_117] : memref<1x10x10x16xf32, #tpu.memory_space<vmem>>, vector<1x10x1x16xf32>
    tpu.vector_store %arg9[%c0_114, %c0_115, %c9_116, %c0_117], %47 {strides = array<i32>} : memref<1x10x10x16xf32, #tpu.memory_space<vmem>>, vector<1x10x1x16xf32>,
    %c0_118 = arith.constant 0 : index
    %c1_119 = arith.constant 1 : index
    %c1_120 = arith.constant 1 : index
    %c0_121 = arith.constant 0 : index
    %49 = vector.load %arg9[%c0_118, %c1_119, %c1_120, %c0_121] : memref<1x10x10x16xf32, #tpu.memory_space<vmem>>, vector<1x8x8x16xf32>
    tpu.vector_store %arg9[%c0_118, %c1_119, %c1_120, %c0_121], %40 {strides = array<i32>} : memref<1x10x10x16xf32, #tpu.memory_space<vmem>>, vector<1x8x8x16xf32>,
    %c0_122 = arith.constant 0 : index
    %c0_123 = arith.constant 0 : index
    %c0_124 = arith.constant 0 : index
    %c0_125 = arith.constant 0 : index
    %50 = vector.load %arg9[%c0_122, %c0_123, %c0_124, %c0_125] : memref<1x10x10x16xf32, #tpu.memory_space<vmem>>, vector<1x8x8x16xf32>
    %c0_126 = arith.constant 0 : index
    %c0_127 = arith.constant 0 : index
    %c0_128 = arith.constant 0 : index
    %c0_129 = arith.constant 0 : index
    %51 = vector.load %arg10[%c0_126, %c0_127, %c0_128, %c0_129] : memref<1x8x8x144xf32, #tpu.memory_space<vmem>>, vector<1x8x8x16xf32>
    tpu.vector_store %arg10[%c0_126, %c0_127, %c0_128, %c0_129], %50 {strides = array<i32>} : memref<1x8x8x144xf32, #tpu.memory_space<vmem>>, vector<1x8x8x16xf32>,
    %c0_130 = arith.constant 0 : index
    %c0_131 = arith.constant 0 : index
    %c1_132 = arith.constant 1 : index
    %c0_133 = arith.constant 0 : index
    %52 = vector.load %arg9[%c0_130, %c0_131, %c1_132, %c0_133] : memref<1x10x10x16xf32, #tpu.memory_space<vmem>>, vector<1x8x8x16xf32>
    %c0_134 = arith.constant 0 : index
    %c0_135 = arith.constant 0 : index
    %c0_136 = arith.constant 0 : index
    %c16_137 = arith.constant 16 : index
    %53 = vector.load %arg10[%c0_134, %c0_135, %c0_136, %c16_137] : memref<1x8x8x144xf32, #tpu.memory_space<vmem>>, vector<1x8x8x16xf32>
    tpu.vector_store %arg10[%c0_134, %c0_135, %c0_136, %c16_137], %52 {strides = array<i32>} : memref<1x8x8x144xf32, #tpu.memory_space<vmem>>, vector<1x8x8x16xf32>,
    %c0_138 = arith.constant 0 : index
    %c0_139 = arith.constant 0 : index
    %c2_140 = arith.constant 2 : index
    %c0_141 = arith.constant 0 : index
    %54 = vector.load %arg9[%c0_138, %c0_139, %c2_140, %c0_141] : memref<1x10x10x16xf32, #tpu.memory_space<vmem>>, vector<1x8x8x16xf32>
    %c0_142 = arith.constant 0 : index
    %c0_143 = arith.constant 0 : index
    %c0_144 = arith.constant 0 : index
    %c32_145 = arith.constant 32 : index
    %55 = vector.load %arg10[%c0_142, %c0_143, %c0_144, %c32_145] : memref<1x8x8x144xf32, #tpu.memory_space<vmem>>, vector<1x8x8x16xf32>
    tpu.vector_store %arg10[%c0_142, %c0_143, %c0_144, %c32_145], %54 {strides = array<i32>} : memref<1x8x8x144xf32, #tpu.memory_space<vmem>>, vector<1x8x8x16xf32>,
    %c0_146 = arith.constant 0 : index
    %c1_147 = arith.constant 1 : index
    %c0_148 = arith.constant 0 : index
    %c0_149 = arith.constant 0 : index
    %56 = vector.load %arg9[%c0_146, %c1_147, %c0_148, %c0_149] : memref<1x10x10x16xf32, #tpu.memory_space<vmem>>, vector<1x8x8x16xf32>
    %c0_150 = arith.constant 0 : index
    %c0_151 = arith.constant 0 : index
    %c0_152 = arith.constant 0 : index
    %c48 = arith.constant 48 : index
    %57 = vector.load %arg10[%c0_150, %c0_151, %c0_152, %c48] : memref<1x8x8x144xf32, #tpu.memory_space<vmem>>, vector<1x8x8x16xf32>
    tpu.vector_store %arg10[%c0_150, %c0_151, %c0_152, %c48], %56 {strides = array<i32>} : memref<1x8x8x144xf32, #tpu.memory_space<vmem>>, vector<1x8x8x16xf32>,
    %c0_153 = arith.constant 0 : index
    %c1_154 = arith.constant 1 : index
    %c1_155 = arith.constant 1 : index
    %c0_156 = arith.constant 0 : index
    %58 = vector.load %arg9[%c0_153, %c1_154, %c1_155, %c0_156] : memref<1x10x10x16xf32, #tpu.memory_space<vmem>>, vector<1x8x8x16xf32>
    %c0_157 = arith.constant 0 : index
    %c0_158 = arith.constant 0 : index
    %c0_159 = arith.constant 0 : index
    %c64 = arith.constant 64 : index
    %59 = vector.load %arg10[%c0_157, %c0_158, %c0_159, %c64] : memref<1x8x8x144xf32, #tpu.memory_space<vmem>>, vector<1x8x8x16xf32>
    tpu.vector_store %arg10[%c0_157, %c0_158, %c0_159, %c64], %58 {strides = array<i32>} : memref<1x8x8x144xf32, #tpu.memory_space<vmem>>, vector<1x8x8x16xf32>,
    %c0_160 = arith.constant 0 : index
    %c1_161 = arith.constant 1 : index
    %c2_162 = arith.constant 2 : index
    %c0_163 = arith.constant 0 : index
    %60 = vector.load %arg9[%c0_160, %c1_161, %c2_162, %c0_163] : memref<1x10x10x16xf32, #tpu.memory_space<vmem>>, vector<1x8x8x16xf32>
    %c0_164 = arith.constant 0 : index
    %c0_165 = arith.constant 0 : index
    %c0_166 = arith.constant 0 : index
    %c80 = arith.constant 80 : index
    %61 = vector.load %arg10[%c0_164, %c0_165, %c0_166, %c80] : memref<1x8x8x144xf32, #tpu.memory_space<vmem>>, vector<1x8x8x16xf32>
    tpu.vector_store %arg10[%c0_164, %c0_165, %c0_166, %c80], %60 {strides = array<i32>} : memref<1x8x8x144xf32, #tpu.memory_space<vmem>>, vector<1x8x8x16xf32>,
    %c0_167 = arith.constant 0 : index
    %c2_168 = arith.constant 2 : index
    %c0_169 = arith.constant 0 : index
    %c0_170 = arith.constant 0 : index
    %62 = vector.load %arg9[%c0_167, %c2_168, %c0_169, %c0_170] : memref<1x10x10x16xf32, #tpu.memory_space<vmem>>, vector<1x8x8x16xf32>
    %c0_171 = arith.constant 0 : index
    %c0_172 = arith.constant 0 : index
    %c0_173 = arith.constant 0 : index
    %c96 = arith.constant 96 : index
    %63 = vector.load %arg10[%c0_171, %c0_172, %c0_173, %c96] : memref<1x8x8x144xf32, #tpu.memory_space<vmem>>, vector<1x8x8x16xf32>
    tpu.vector_store %arg10[%c0_171, %c0_172, %c0_173, %c96], %62 {strides = array<i32>} : memref<1x8x8x144xf32, #tpu.memory_space<vmem>>, vector<1x8x8x16xf32>,
    %c0_174 = arith.constant 0 : index
    %c2_175 = arith.constant 2 : index
    %c1_176 = arith.constant 1 : index
    %c0_177 = arith.constant 0 : index
    %64 = vector.load %arg9[%c0_174, %c2_175, %c1_176, %c0_177] : memref<1x10x10x16xf32, #tpu.memory_space<vmem>>, vector<1x8x8x16xf32>
    %c0_178 = arith.constant 0 : index
    %c0_179 = arith.constant 0 : index
    %c0_180 = arith.constant 0 : index
    %c112 = arith.constant 112 : index
    %65 = vector.load %arg10[%c0_178, %c0_179, %c0_180, %c112] : memref<1x8x8x144xf32, #tpu.memory_space<vmem>>, vector<1x8x8x16xf32>
    tpu.vector_store %arg10[%c0_178, %c0_179, %c0_180, %c112], %64 {strides = array<i32>} : memref<1x8x8x144xf32, #tpu.memory_space<vmem>>, vector<1x8x8x16xf32>,
    %c0_181 = arith.constant 0 : index
    %c2_182 = arith.constant 2 : index
    %c2_183 = arith.constant 2 : index
    %c0_184 = arith.constant 0 : index
    %66 = vector.load %arg9[%c0_181, %c2_182, %c2_183, %c0_184] : memref<1x10x10x16xf32, #tpu.memory_space<vmem>>, vector<1x8x8x16xf32>
    %c0_185 = arith.constant 0 : index
    %c0_186 = arith.constant 0 : index
    %c0_187 = arith.constant 0 : index
    %c128 = arith.constant 128 : index
    %67 = vector.load %arg10[%c0_185, %c0_186, %c0_187, %c128] : memref<1x8x8x144xf32, #tpu.memory_space<vmem>>, vector<1x8x8x16xf32>
    tpu.vector_store %arg10[%c0_185, %c0_186, %c0_187, %c128], %66 {strides = array<i32>} : memref<1x8x8x144xf32, #tpu.memory_space<vmem>>, vector<1x8x8x16xf32>,
    %c0_188 = arith.constant 0 : index
    %c0_189 = arith.constant 0 : index
    %c0_190 = arith.constant 0 : index
    %c0_191 = arith.constant 0 : index
    %68 = vector.load %arg10[%c0_188, %c0_189, %c0_190, %c0_191] : memref<1x8x8x144xf32, #tpu.memory_space<vmem>>, vector<1x8x8x144xf32>
    %69 = vector.shape_cast %68 : vector<1x8x8x144xf32> to vector<64x144xf32>
    %c0_192 = arith.constant 0 : index
    %c0_193 = arith.constant 0 : index
    %70 = vector.load %arg4[%c0_192, %c0_193] : memref<144x32xf32, #tpu.memory_space<vmem>>, vector<144x32xf32>
    %cst_194 = arith.constant dense<0.000000e+00> : vector<64x32xf32>
    %71 = tpu.matmul %69, %70, %cst_194 {dimension_numbers = #tpu.dot_dimension_numbers<[1], [0], [0], [1], [0, 0, 1, 1], [], []>} : vector<64x144xf32>, vector<144x32xf32>, vector<64x32xf32> -> vector<64x32xf32>
    %c0_195 = arith.constant 0 : index
    %c0_196 = arith.constant 0 : index
    %72 = vector.load %arg5[%c0_195, %c0_196] : memref<1x32xf32, #tpu.memory_space<vmem>>, vector<1x32xf32>
    %73 = vector.broadcast %72 : vector<1x32xf32> to vector<64x32xf32>
    %74 = arith.addf %71, %73 : vector<64x32xf32>
    %cst_197 = arith.constant 0.000000e+00 : f32
    %75 = vector.broadcast %cst_197 : f32 to vector<64x32xf32>
    %76 = arith.maximumf %74, %75 : vector<64x32xf32>
    %77 = vector.shape_cast %76 : vector<64x32xf32> to vector<1x64x32xf32>
    %cst_198 = arith.constant dense<0.000000e+00> : vector<1x32xf32>
    %78 = vector.multi_reduction <add>, %77, %cst_198 [1] : vector<1x64x32xf32> to vector<1x32xf32>
    %79 = vector.shape_cast %78 : vector<1x32xf32> to vector<1x1x32xf32>
    %cst_199 = arith.constant 6.400000e+01 : f32
    %80 = vector.broadcast %cst_199 : f32 to vector<1x1x32xf32>
    %81 = arith.divf %79, %80 : vector<1x1x32xf32>
    %c0_200 = arith.constant 0 : index
    %c0_201 = arith.constant 0 : index
    %c0_202 = arith.constant 0 : index
    %82 = vector.load %arg6[%c0_200, %c0_201, %c0_202] : memref<1x1x32xf32, #tpu.memory_space<vmem>>, vector<1x1x32xf32>
    tpu.vector_store %arg6[%c0_200, %c0_201, %c0_202], %81 {strides = array<i32>} : memref<1x1x32xf32, #tpu.memory_space<vmem>>, vector<1x1x32xf32>,
    return
  }
  func.func @transform_0(%arg0: i32) -> (i32, i32, i32, i32) {
    %c0_i32 = arith.constant 0 : i32
    %c0_i32_0 = arith.constant 0 : i32
    %c0_i32_1 = arith.constant 0 : i32
    %c0_i32_2 = arith.constant 0 : i32
    return %arg0, %c0_i32, %c0_i32_0, %c0_i32_1 : i32, i32, i32, i32
  }
  func.func @transform_1(%arg0: i32) -> (i32, i32) {
    %c0_i32 = arith.constant 0 : i32
    %c0_i32_0 = arith.constant 0 : i32
    %c0_i32_1 = arith.constant 0 : i32
    return %c0_i32, %c0_i32_0 : i32, i32
  }
  func.func @transform_2(%arg0: i32) -> (i32, i32) {
    %c0_i32 = arith.constant 0 : i32
    %c0_i32_0 = arith.constant 0 : i32
    %c0_i32_1 = arith.constant 0 : i32
    return %c0_i32, %c0_i32_0 : i32, i32
  }
  func.func @transform_3(%arg0: i32) -> (i32, i32) {
    %c0_i32 = arith.constant 0 : i32
    %c0_i32_0 = arith.constant 0 : i32
    %c0_i32_1 = arith.constant 0 : i32
    return %c0_i32, %c0_i32_0 : i32, i32
  }
  func.func @transform_4(%arg0: i32) -> (i32, i32) {
    %c0_i32 = arith.constant 0 : i32
    %c0_i32_0 = arith.constant 0 : i32
    %c0_i32_1 = arith.constant 0 : i32
    return %c0_i32, %c0_i32_0 : i32, i32
  }
  func.func @transform_5(%arg0: i32) -> (i32, i32, i32) {
    %c0_i32 = arith.constant 0 : i32
    %c0_i32_0 = arith.constant 0 : i32
    %c0_i32_1 = arith.constant 0 : i32
    return %arg0, %c0_i32, %c0_i32_0 : i32, i32, i32
  }
}

</mosaic_0001>

<llo_original>
// kernel: tpu_custom_call.1
$region0: #{tpu_custom_call.1}
  #allocation0 [shape = 'u32[]', space=smem, size = 0x4, offset = 0x4, fixed_abs, tag = 'smem constant byte address 0x4 - core index']
  #allocation1 [shape = 'u32[144,128]{1,0:T(1,128)}', space=vmem, size = 0x12000, scoped, tag = 'internal scratch']
  #allocation2 [shape = 'f32[1,18,18,4]{3,2,1,0:T(8,128)}', space=vmem, size = 0x36000, scoped, tag = 'scratch operand']
  #allocation3 [shape = 'f32[1,16,16,36]{3,2,1,0:T(8,128)}', space=vmem, size = 0x20000, scoped, tag = 'scratch operand']
  #allocation4 [shape = 'f32[1,10,10,16]{3,2,1,0:T(8,128)}', space=vmem, size = 0x14000, scoped, tag = 'scratch operand']
  #allocation5 [shape = 'f32[1,8,8,144]{3,2,1,0:T(8,128)}', space=vmem, size = 0x10000, scoped, tag = 'scratch operand']
  %s0 = inlined_call_operand.vmem [shape: f32[2,16,16,4], index: 0, kind: input, shape index: {}]
  %s1 = inlined_call_operand.vmem [shape: f32[36,16], index: 1, kind: input, shape index: {}]
  %s2 = inlined_call_operand.vmem [shape: f32[1,16], index: 2, kind: input, shape index: {}]
  %s3 = inlined_call_operand.vmem [shape: f32[144,32], index: 3, kind: input, shape index: {}]
  %s4 = inlined_call_operand.vmem [shape: f32[1,32], index: 4, kind: input, shape index: {}]
  %s5 = inlined_call_operand.hbm [shape: f32[2,1,32], index: 5, kind: output, shape index: {}]
  %s6 = sld [smem:[#allocation0]]
  $region53: #{tpu_custom_call.1} parent=0
    _
  %s8 = ssub.s32 1, %s6
  %s9 = scalar_select 0, %s8, %s6
  $region1: #{tpu_custom_call.1} parent=0
    #allocation6 [shape = 'u8[1024]{0}', space=vmem, size = 0x400, scoped, tag = 'output window, operand 0']
    #allocation7 [shape = 's32[2]{0}', space=sflag, size = 0x8, scoped, tag = 'scoped memory for tpu_custom_call.1']
    %10 = vsyncpa [#allocation7], 0
    %s11 = scalar_lea.sflag [#allocation7], 1
    %12 = vsyncpa %s11, 0
    loop: start=0, step=1, limit=4
    $region2: #{tpu_custom_call.1} parent=1 // loop_pre_header
      _
    $region3: #{tpu_custom_call.1} parent=1 // loop_header
      %s14 = sphi 0, %s18
      %p15 = scmp.ge.s32.totalorder %s14, 4
      %s24 = sphi 0, %s26
      %s27 = sphi 0, %s24
      %s28 = sphi 0, %s27
      %s44 = sphi 0, %s28
      %s48 = sphi 0, %s48
      %s50 = sphi 0, %s48
      %s51 = sphi 0, %s50
      %s65 = sphi 0, %s51
      %s69 = sphi 0, %s69
      %s71 = sphi 0, %s69
      %s72 = sphi 0, %s71
      %s86 = sphi 0, %s72
      %s90 = sphi 0, %s90
      %s92 = sphi 0, %s90
      %s93 = sphi 0, %s92
      %s107 = sphi 0, %s93
      %s111 = sphi 0, %s111
      %s113 = sphi 0, %s111
      %s114 = sphi 0, %s113
      %s128 = sphi 0, %s114
      %s134 = sphi 0, %s136
      %s137 = sphi 0, %s134
      %s138 = sphi 0, %s137
      %s154 = sphi 0, %s138
    $region4: #{tpu_custom_call.1} parent=1 // loop_header_branch
      %17 = sbr.rel (%p15) target = $region8
    $region5: #{tpu_custom_call.1} parent=1 // loop_body
      %s19 = ssub.s32 %s14, 1
      %s20 = ssub.s32 %s14, 2
      %s21 = sadd.s32 %s14, 1
      %s22 = ssub.s32 %s14, %s21
      %p23 = scmp.eq.s32.totalorder %s22, 0
      %s25 = sadd.s32 %s24, 1
      %s26 = scalar_select %p23, %s24, %s25
      %p29 = pneg %p23
      %p30 = scmp.eq.s32.totalorder %s14, 1
      %p31 = por %p29, %p30
      %p32 = scmp.ne.s32.totalorder %s24, %s27
      %p33 = scmp.eq.s32.totalorder %s14, 0
      %p34 = por %p32, %p33
      %p35 = scmp.ne.s32.totalorder %s24, %s27
      %p36 = scmp.eq.s32.totalorder %s19, 1
      %p37 = por %p35, %p36
      %p38 = scmp.ne.s32.totalorder %s27, %s28
      %p39 = scmp.eq.s32.totalorder %s19, 0
      %p40 = por %p38, %p39
      %p41 = scmp.ne.s32.totalorder %s27, %s28
      %p42 = scmp.eq.s32.totalorder %s20, 1
      %p43 = por %p41, %p42
      %p45 = scmp.ne.s32.totalorder %s28, %s44
      %p46 = scmp.eq.s32.totalorder %s20, 0
      %p47 = por %p45, %p46
      %s49 = sadd.s32 %s48, 1
      %p52 = scmp.eq.s32.totalorder %s14, 1
      %p53 = scmp.ne.s32.totalorder %s48, %s50
      %p54 = scmp.eq.s32.totalorder %s14, 0
      %p55 = por %p53, %p54
      %p56 = scmp.ne.s32.totalorder %s48, %s50
      %p57 = scmp.eq.s32.totalorder %s19, 1
      %p58 = por %p56, %p57
      %p59 = scmp.ne.s32.totalorder %s50, %s51
      %p60 = scmp.eq.s32.totalorder %s19, 0
      %p61 = por %p59, %p60
      %p62 = scmp.ne.s32.totalorder %s50, %s51
      %p63 = scmp.eq.s32.totalorder %s20, 1
      %p64 = por %p62, %p63
      %p66 = scmp.ne.s32.totalorder %s51, %s65
      %p67 = scmp.eq.s32.totalorder %s20, 0
      %p68 = por %p66, %p67
      %s70 = sadd.s32 %s69, 1
      %p73 = scmp.eq.s32.totalorder %s14, 1
      %p74 = scmp.ne.s32.totalorder %s69, %s71
      %p75 = scmp.eq.s32.totalorder %s14, 0
      %p76 = por %p74, %p75
      %p77 = scmp.ne.s32.totalorder %s69, %s71
      %p78 = scmp.eq.s32.totalorder %s19, 1
      %p79 = por %p77, %p78
      %p80 = scmp.ne.s32.totalorder %s71, %s72
      %p81 = scmp.eq.s32.totalorder %s19, 0
      %p82 = por %p80, %p81
      %p83 = scmp.ne.s32.totalorder %s71, %s72
      %p84 = scmp.eq.s32.totalorder %s20, 1
      %p85 = por %p83, %p84
      %p87 = scmp.ne.s32.totalorder %s72, %s86
      %p88 = scmp.eq.s32.totalorder %s20, 0
      %p89 = por %p87, %p88
      %s91 = sadd.s32 %s90, 1
      %p94 = scmp.eq.s32.totalorder %s14, 1
      %p95 = scmp.ne.s32.totalorder %s90, %s92
      %p96 = scmp.eq.s32.totalorder %s14, 0
      %p97 = por %p95, %p96
      %p98 = scmp.ne.s32.totalorder %s90, %s92
      %p99 = scmp.eq.s32.totalorder %s19, 1
      %p100 = por %p98, %p99
      %p101 = scmp.ne.s32.totalorder %s92, %s93
      %p102 = scmp.eq.s32.totalorder %s19, 0
      %p103 = por %p101, %p102
      %p104 = scmp.ne.s32.totalorder %s92, %s93
      %p105 = scmp.eq.s32.totalorder %s20, 1
      %p106 = por %p104, %p105
      %p108 = scmp.ne.s32.totalorder %s93, %s107
      %p109 = scmp.eq.s32.totalorder %s20, 0
      %p110 = por %p108, %p109
      %s112 = sadd.s32 %s111, 1
      %p115 = scmp.eq.s32.totalorder %s14, 1
      %p116 = scmp.ne.s32.totalorder %s111, %s113
      %p117 = scmp.eq.s32.totalorder %s14, 0
      %p118 = por %p116, %p117
      %p119 = scmp.ne.s32.totalorder %s111, %s113
      %p120 = scmp.eq.s32.totalorder %s19, 1
      %p121 = por %p119, %p120
      %p122 = scmp.ne.s32.totalorder %s113, %s114
      %p123 = scmp.eq.s32.totalorder %s19, 0
      %p124 = por %p122, %p123
      %p125 = scmp.ne.s32.totalorder %s113, %s114
      %p126 = scmp.eq.s32.totalorder %s20, 1
      %p127 = por %p125, %p126
      %p129 = scmp.ne.s32.totalorder %s114, %s128
      %p130 = scmp.eq.s32.totalorder %s20, 0
      %p131 = por %p129, %p130
      %s132 = ssub.s32 %s14, %s21
      %p133 = scmp.eq.s32.totalorder %s132, 0
      %s135 = sadd.s32 %s134, 1
      %s136 = scalar_select %p133, %s134, %s135
      %p139 = pneg %p133
      %p140 = scmp.eq.s32.totalorder %s14, 1
      %p141 = por %p139, %p140
      %p142 = scmp.ne.s32.totalorder %s134, %s137
      %p143 = scmp.eq.s32.totalorder %s14, 0
      %p144 = por %p142, %p143
      %p145 = scmp.ne.s32.totalorder %s134, %s137
      %p146 = scmp.eq.s32.totalorder %s19, 1
      %p147 = por %p145, %p146
      %p148 = scmp.ne.s32.totalorder %s137, %s138
      %p149 = scmp.eq.s32.totalorder %s19, 0
      %p150 = por %p148, %p149
      %p151 = scmp.ne.s32.totalorder %s137, %s138
      %p152 = scmp.eq.s32.totalorder %s20, 1
      %p153 = por %p151, %p152
      %p155 = scmp.ne.s32.totalorder %s138, %s154
      %p156 = scmp.eq.s32.totalorder %s20, 0
      %p157 = por %p155, %p156
      %p158 = scmp.le.s32.totalorder 1, %s14
      %p159 = scmp.lt.s32.totalorder %s14, 3
      %p160 = pnand %p158, %p159
      %p161 = pneg %p160
      // Predicated region
      $region9: #{tpu_custom_call.1} parent=5 // pred_check
        _
      $region10: #{tpu_custom_call.1} parent=5 // pred_check_branch
        %163 = sbr.rel (%p160) target = $region12
      $region11: #{tpu_custom_call.1} parent=5 // pred_region
        %s164 = ssub.s32 %s14, 1
        // Predicated region
        $region13: #{tpu_custom_call.1} parent=11 // pred_check
          %p165 = pneg %p61
        $region14: #{tpu_custom_call.1} parent=11 // pred_check_branch
          %167 = sbr.rel (%p165) target = $region16
        $region15: #{tpu_custom_call.1} parent=11 // pred_region
          _
        $region16: #{tpu_custom_call.1} parent=11 // pred_fallthru
          _
        // Predicated region
        $region17: #{tpu_custom_call.1} parent=11 // pred_check
          %p168 = pneg %p82
        $region18: #{tpu_custom_call.1} parent=11 // pred_check_branch
          %170 = sbr.rel (%p168) target = $region20
        $region19: #{tpu_custom_call.1} parent=11 // pred_region
          _
        $region20: #{tpu_custom_call.1} parent=11 // pred_fallthru
          _
        // Predicated region
        $region21: #{tpu_custom_call.1} parent=11 // pred_check
          %p171 = pneg %p103
        $region22: #{tpu_custom_call.1} parent=11 // pred_check_branch
          %173 = sbr.rel (%p171) target = $region24
        $region23: #{tpu_custom_call.1} parent=11 // pred_region
          _
        $region24: #{tpu_custom_call.1} parent=11 // pred_fallthru
          _
        // Predicated region
        $region25: #{tpu_custom_call.1} parent=11 // pred_check
          %p174 = pneg %p124
        $region26: #{tpu_custom_call.1} parent=11 // pred_check_branch
          %176 = sbr.rel (%p174) target = $region28
        $region27: #{tpu_custom_call.1} parent=11 // pred_region
          _
        $region28: #{tpu_custom_call.1} parent=11 // pred_fallthru
          _
      $region12: #{tpu_custom_call.1} parent=5 // pred_fallthru
        _
      %p177 = scmp.lt.s32.totalorder %s14, 2
      // Predicated region
      $region29: #{tpu_custom_call.1} parent=5 // pred_check
        %p178 = pneg %p177
      $region30: #{tpu_custom_call.1} parent=5 // pred_check_branch
        %180 = sbr.rel (%p178) target = $region32
      $region31: #{tpu_custom_call.1} parent=5 // pred_region
        // Predicated region
        $region33: #{tpu_custom_call.1} parent=31 // pred_check
          %p181 = pneg %p34
        $region34: #{tpu_custom_call.1} parent=31 // pred_check_branch
          %183 = sbr.rel (%p181) target = $region36
        $region35: #{tpu_custom_call.1} parent=31 // pred_region
          %p184 = scmp.lt.s32.totalorder %s14, 1
          %s185 = scalar_select %p184, %s14, 1
          %s186 = smul.addr %s185, 32
          %s187 = smul.addr %s186, 8
          %s188 = scalar_lea.vmem %s0, %s187
        $region36: #{tpu_custom_call.1} parent=31 // pred_fallthru
          _
      $region32: #{tpu_custom_call.1} parent=5 // pred_fallthru
        _
      %p189 = scmp.le.s32.totalorder 1, %s14
      %p190 = scmp.lt.s32.totalorder %s14, 3
      %p191 = pnand %p189, %p190
      %p192 = pneg %p191
      // Predicated region
      $region37: #{tpu_custom_call.1} parent=5 // pred_check
        _
      $region38: #{tpu_custom_call.1} parent=5 // pred_check_branch
        %194 = sbr.rel (%p191) target = $region40
      $region39: #{tpu_custom_call.1} parent=5 // pred_region
        %s195 = ssub.s32 %s14, 1
        %p196 = scmp.lt.s32.totalorder %s19, 1
        %s197 = scalar_select %p196, %s19, 1
        %s198 = smul.addr %s197, 32
        %s199 = smul.addr %s198, 8
        %s200 = scalar_lea.vmem %s0, %s199
        %p201 = pneg %p40
        %p202 = pneg %p37
        %p203 = pneg %p61
        %p204 = pneg %p58
        %p205 = pneg %p82
        %p206 = pneg %p79
        %p207 = pneg %p103
        %p208 = pneg %p100
        %p209 = pneg %p124
        %p210 = pneg %p121
        %p211 = pneg %p150
        %p212 = pneg %p147
        %s213 = sand.u32 %s137, 1
        %s214 = scalar_lea.sflag [#allocation7], %s213
        %s215 = sand.u32 %s137, 1
        %s216 = scalar_lea.vmem [#allocation6], %s215
        %p217 = scmp.lt.s32.totalorder %s19, 1
        %s218 = scalar_select %p217, %s19, 1
        %s219 = smul.addr %s218, 32
        %s220 = smul.addr %s219, 8
        %s221 = scalar_lea.vmem %s0, %s220
        %vm222 = vcmask 31744
        %223 = vst.msk [vmem:[#allocation2] sm:$0xff] %vm222, 0.0
        %224 = vst.msk [vmem:[#allocation2 + $0x8] sm:$0xff] %vm222, 0.0
        %vm225 = vcmask 25600
        %226 = vst.msk [vmem:[#allocation2 + $0x10] sm:$0x3] %vm225, 0.0
        %s227 = scalar_lea.vmem [#allocation2], 408
        %228 = vst.msk [vmem:[%s227] sm:$0xff] %vm222, 0.0
        %229 = vst.msk [vmem:[%s227 + $0x8] sm:$0xff] %vm222, 0.0
        %230 = vst.msk [vmem:[%s227 + $0x10] sm:$0x3] %vm225, 0.0
        %vm231 = vcmask 24576
        %232 = vst.msk [vmem:[#allocation2] sm:$0x1] %vm231, 0.0
        %233 = vst.msk [vmem:[#allocation2 + $0x18] sm:$0x1] %vm231, 0.0
        %234 = vst.msk [vmem:[#allocation2 + $0x30] sm:$0x1] %vm231, 0.0
        %235 = vst.msk [vmem:[#allocation2 + $0x48] sm:$0x1] %vm231, 0.0
        %236 = vst.msk [vmem:[#allocation2 + $0x60] sm:$0x1] %vm231, 0.0
        %237 = vst.msk [vmem:[#allocation2 + $0x78] sm:$0x1] %vm231, 0.0
        %238 = vst.msk [vmem:[#allocation2 + $0x90] sm:$0x1] %vm231, 0.0
        %239 = vst.msk [vmem:[#allocation2 + $0xa8] sm:$0x1] %vm231, 0.0
        %240 = vst.msk [vmem:[#allocation2 + $0xc0] sm:$0x1] %vm231, 0.0
        %241 = vst.msk [vmem:[#allocation2 + $0xd8] sm:$0x1] %vm231, 0.0
        %242 = vst.msk [vmem:[#allocation2 + $0xf0] sm:$0x1] %vm231, 0.0
        %243 = vst.msk [vmem:[#allocation2 + $0x108] sm:$0x1] %vm231, 0.0
        %244 = vst.msk [vmem:[#allocation2 + $0x120] sm:$0x1] %vm231, 0.0
        %245 = vst.msk [vmem:[#allocation2 + $0x138] sm:$0x1] %vm231, 0.0
        %246 = vst.msk [vmem:[#allocation2 + $0x150] sm:$0x1] %vm231, 0.0
        %247 = vst.msk [vmem:[#allocation2 + $0x168] sm:$0x1] %vm231, 0.0
        %248 = vst.msk [vmem:[#allocation2 + $0x180] sm:$0x1] %vm231, 0.0
        %249 = vst.msk [vmem:[#allocation2 + $0x198] sm:$0x1] %vm231, 0.0
        %250 = vst.msk [vmem:[#allocation2 + $0x11] sm:$0x1] %vm231, 0.0
        %251 = vst.msk [vmem:[#allocation2 + $0x29] sm:$0x1] %vm231, 0.0
        %252 = vst.msk [vmem:[#allocation2 + $0x41] sm:$0x1] %vm231, 0.0
        %253 = vst.msk [vmem:[#allocation2 + $0x59] sm:$0x1] %vm231, 0.0
        %254 = vst.msk [vmem:[#allocation2 + $0x71] sm:$0x1] %vm231, 0.0
        %255 = vst.msk [vmem:[#allocation2 + $0x89] sm:$0x1] %vm231, 0.0
        %256 = vst.msk [vmem:[#allocation2 + $0xa1] sm:$0x1] %vm231, 0.0
        %257 = vst.msk [vmem:[#allocation2 + $0xb9] sm:$0x1] %vm231, 0.0
        %258 = vst.msk [vmem:[#allocation2 + $0xd1] sm:$0x1] %vm231, 0.0
        %259 = vst.msk [vmem:[#allocation2 + $0xe9] sm:$0x1] %vm231, 0.0
        %260 = vst.msk [vmem:[#allocation2 + $0x101] sm:$0x1] %vm231, 0.0
        %261 = vst.msk [vmem:[#allocation2 + $0x119] sm:$0x1] %vm231, 0.0
        %262 = vst.msk [vmem:[#allocation2 + $0x131] sm:$0x1] %vm231, 0.0
        %263 = vst.msk [vmem:[#allocation2 + $0x149] sm:$0x1] %vm231, 0.0
        %264 = vst.msk [vmem:[#allocation2 + $0x161] sm:$0x1] %vm231, 0.0
        %265 = vst.msk [vmem:[#allocation2 + $0x179] sm:$0x1] %vm231, 0.0
        %266 = vst.msk [vmem:[#allocation2 + $0x191] sm:$0x1] %vm231, 0.0
        %267 = vst.msk [vmem:[#allocation2 + $0x1a9] sm:$0x1] %vm231, 0.0
        %v268 = vld [vmem:[%s221] sm:$0xff]
        %v269 = vld [vmem:[%s221 + $0x8] sm:$0xff]
        %v270 = vld [vmem:[%s221 + $0x10] sm:$0xff]
        %v271 = vld [vmem:[%s221 + $0x18] sm:$0xff]
        %v272 = vld [vmem:[%s221 + $0x20] sm:$0xff]
        %v273 = vld [vmem:[%s221 + $0x28] sm:$0xff]
        %v274 = vld [vmem:[%s221 + $0x30] sm:$0xff]
        %v275 = vld [vmem:[%s221 + $0x38] sm:$0xff]
        %v276 = vld [vmem:[%s221 + $0x40] sm:$0xff]
        %v277 = vld [vmem:[%s221 + $0x48] sm:$0xff]
        %v278 = vld [vmem:[%s221 + $0x50] sm:$0xff]
        %v279 = vld [vmem:[%s221 + $0x58] sm:$0xff]
        %v280 = vld [vmem:[%s221 + $0x60] sm:$0xff]
        %v281 = vld [vmem:[%s221 + $0x68] sm:$0xff]
        %v282 = vld [vmem:[%s221 + $0x70] sm:$0xff]
        %v283 = vld [vmem:[%s221 + $0x78] sm:$0xff]
        %v284 = vld [vmem:[%s221 + $0x80] sm:$0xff]
        %v285 = vld [vmem:[%s221 + $0x88] sm:$0xff]
        %v286 = vld [vmem:[%s221 + $0x90] sm:$0xff]
        %v287 = vld [vmem:[%s221 + $0x98] sm:$0xff]
        %v288 = vld [vmem:[%s221 + $0xa0] sm:$0xff]
        %v289 = vld [vmem:[%s221 + $0xa8] sm:$0xff]
        %v290 = vld [vmem:[%s221 + $0xb0] sm:$0xff]
        %v291 = vld [vmem:[%s221 + $0xb8] sm:$0xff]
        %v292 = vld [vmem:[%s221 + $0xc0] sm:$0xff]
        %v293 = vld [vmem:[%s221 + $0xc8] sm:$0xff]
        %v294 = vld [vmem:[%s221 + $0xd0] sm:$0xff]
        %v295 = vld [vmem:[%s221 + $0xd8] sm:$0xff]
        %v296 = vld [vmem:[%s221 + $0xe0] sm:$0xff]
        %v297 = vld [vmem:[%s221 + $0xe8] sm:$0xff]
        %v298 = vld [vmem:[%s221 + $0xf0] sm:$0xff]
        %v299 = vld [vmem:[%s221 + $0xf8] sm:$0xff]
        %s300 = scalar_lea.vmem [#allocation2], 24
        %301 = vst.msk [vmem:[%s300 + $0x1] sm:$0xff] %vm222, %v268
        %302 = vst.msk [vmem:[%s300 + $0x9] sm:$0xff] %vm222, %v269
        %303 = vst.msk [vmem:[%s300 + $0x19] sm:$0xff] %vm222, %v270
        %304 = vst.msk [vmem:[%s300 + $0x21] sm:$0xff] %vm222, %v271
        %305 = vst.msk [vmem:[%s300 + $0x31] sm:$0xff] %vm222, %v272
        %306 = vst.msk [vmem:[%s300 + $0x39] sm:$0xff] %vm222, %v273
        %307 = vst.msk [vmem:[%s300 + $0x49] sm:$0xff] %vm222, %v274
        %308 = vst.msk [vmem:[%s300 + $0x51] sm:$0xff] %vm222, %v275
        %309 = vst.msk [vmem:[%s300 + $0x61] sm:$0xff] %vm222, %v276
        %310 = vst.msk [vmem:[%s300 + $0x69] sm:$0xff] %vm222, %v277
        %311 = vst.msk [vmem:[%s300 + $0x79] sm:$0xff] %vm222, %v278
        %312 = vst.msk [vmem:[%s300 + $0x81] sm:$0xff] %vm222, %v279
        %313 = vst.msk [vmem:[%s300 + $0x91] sm:$0xff] %vm222, %v280
        %314 = vst.msk [vmem:[%s300 + $0x99] sm:$0xff] %vm222, %v281
        %315 = vst.msk [vmem:[%s300 + $0xa9] sm:$0xff] %vm222, %v282
        %316 = vst.msk [vmem:[%s300 + $0xb1] sm:$0xff] %vm222, %v283
        %317 = vst.msk [vmem:[%s300 + $0xc1] sm:$0xff] %vm222, %v284
        %318 = vst.msk [vmem:[%s300 + $0xc9] sm:$0xff] %vm222, %v285
        %319 = vst.msk [vmem:[%s300 + $0xd9] sm:$0xff] %vm222, %v286
        %320 = vst.msk [vmem:[%s300 + $0xe1] sm:$0xff] %vm222, %v287
        %321 = vst.msk [vmem:[%s300 + $0xf1] sm:$0xff] %vm222, %v288
        %322 = vst.msk [vmem:[%s300 + $0xf9] sm:$0xff] %vm222, %v289
        %323 = vst.msk [vmem:[%s300 + $0x109] sm:$0xff] %vm222, %v290
        %324 = vst.msk [vmem:[%s300 + $0x111] sm:$0xff] %vm222, %v291
        %325 = vst.msk [vmem:[%s300 + $0x121] sm:$0xff] %vm222, %v292
        %326 = vst.msk [vmem:[%s300 + $0x129] sm:$0xff] %vm222, %v293
        %327 = vst.msk [vmem:[%s300 + $0x139] sm:$0xff] %vm222, %v294
        %328 = vst.msk [vmem:[%s300 + $0x141] sm:$0xff] %vm222, %v295
        %329 = vst.msk [vmem:[%s300 + $0x151] sm:$0xff] %vm222, %v296
        %330 = vst.msk [vmem:[%s300 + $0x159] sm:$0xff] %vm222, %v297
        %331 = vst.msk [vmem:[%s300 + $0x169] sm:$0xff] %vm222, %v298
        %332 = vst.msk [vmem:[%s300 + $0x171] sm:$0xff] %vm222, %v299
        %v333 = vld [vmem:[#allocation2] sm:$0xff]
        %v334 = vld [vmem:[#allocation2 + $0x8] sm:$0xff]
        %v335 = vld [vmem:[#allocation2 + $0x18] sm:$0xff]
        %v336 = vld [vmem:[#allocation2 + $0x20] sm:$0xff]
        %v337 = vld [vmem:[#allocation2 + $0x30] sm:$0xff]
        %v338 = vld [vmem:[#allocation2 + $0x38] sm:$0xff]
        %v339 = vld [vmem:[#allocation2 + $0x48] sm:$0xff]
        %v340 = vld [vmem:[#allocation2 + $0x50] sm:$0xff]
        %v341 = vld [vmem:[#allocation2 + $0x60] sm:$0xff]
        %v342 = vld [vmem:[#allocation2 + $0x68] sm:$0xff]
        %v343 = vld [vmem:[#allocation2 + $0x78] sm:$0xff]
        %v344 = vld [vmem:[#allocation2 + $0x80] sm:$0xff]
        %v345 = vld [vmem:[#allocation2 + $0x90] sm:$0xff]
        %v346 = vld [vmem:[#allocation2 + $0x98] sm:$0xff]
        %v347 = vld [vmem:[#allocation2 + $0xa8] sm:$0xff]
        %v348 = vld [vmem:[#allocation2 + $0xb0] sm:$0xff]
        %v349 = vld [vmem:[#allocation2 + $0xc0] sm:$0xff]
        %v350 = vld [vmem:[#allocation2 + $0xc8] sm:$0xff]
        %v351 = vld [vmem:[#allocation2 + $0xd8] sm:$0xff]
        %v352 = vld [vmem:[#allocation2 + $0xe0] sm:$0xff]
        %v353 = vld [vmem:[#allocation2 + $0xf0] sm:$0xff]
        %v354 = vld [vmem:[#allocation2 + $0xf8] sm:$0xff]
        %v355 = vld [vmem:[#allocation2 + $0x108] sm:$0xff]
        %v356 = vld [vmem:[#allocation2 + $0x110] sm:$0xff]
        %v357 = vld [vmem:[#allocation2 + $0x120] sm:$0xff]
        %v358 = vld [vmem:[#allocation2 + $0x128] sm:$0xff]
        %v359 = vld [vmem:[#allocation2 + $0x138] sm:$0xff]
        %v360 = vld [vmem:[#allocation2 + $0x140] sm:$0xff]
        %v361 = vld [vmem:[#allocation2 + $0x150] sm:$0xff]
        %v362 = vld [vmem:[#allocation2 + $0x158] sm:$0xff]
        %v363 = vld [vmem:[#allocation2 + $0x168] sm:$0xff]
        %v364 = vld [vmem:[#allocation2 + $0x170] sm:$0xff]
        %365 = vst.msk [vmem:[#allocation3] sm:$0xff] %vm222, %v333
        %366 = vst.msk [vmem:[#allocation3 + $0x8] sm:$0xff] %vm222, %v334
        %367 = vst.msk [vmem:[#allocation3 + $0x10] sm:$0xff] %vm222, %v335
        %368 = vst.msk [vmem:[#allocation3 + $0x18] sm:$0xff] %vm222, %v336
        %369 = vst.msk [vmem:[#allocation3 + $0x20] sm:$0xff] %vm222, %v337
        %370 = vst.msk [vmem:[#allocation3 + $0x28] sm:$0xff] %vm222, %v338
        %371 = vst.msk [vmem:[#allocation3 + $0x30] sm:$0xff] %vm222, %v339
        %372 = vst.msk [vmem:[#allocation3 + $0x38] sm:$0xff] %vm222, %v340
        %373 = vst.msk [vmem:[#allocation3 + $0x40] sm:$0xff] %vm222, %v341
        %374 = vst.msk [vmem:[#allocation3 + $0x48] sm:$0xff] %vm222, %v342
        %375 = vst.msk [vmem:[#allocation3 + $0x50] sm:$0xff] %vm222, %v343
        %376 = vst.msk [vmem:[#allocation3 + $0x58] sm:$0xff] %vm222, %v344
        %377 = vst.msk [vmem:[#allocation3 + $0x60] sm:$0xff] %vm222, %v345
        %378 = vst.msk [vmem:[#allocation3 + $0x68] sm:$0xff] %vm222, %v346
        %379 = vst.msk [vmem:[#allocation3 + $0x70] sm:$0xff] %vm222, %v347
        %380 = vst.msk [vmem:[#allocation3 + $0x78] sm:$0xff] %vm222, %v348
        %381 = vst.msk [vmem:[#allocation3 + $0x80] sm:$0xff] %vm222, %v349
        %382 = vst.msk [vmem:[#allocation3 + $0x88] sm:$0xff] %vm222, %v350
        %383 = vst.msk [vmem:[#allocation3 + $0x90] sm:$0xff] %vm222, %v351
        %384 = vst.msk [vmem:[#allocation3 + $0x98] sm:$0xff] %vm222, %v352
        %385 = vst.msk [vmem:[#allocation3 + $0xa0] sm:$0xff] %vm222, %v353
        %386 = vst.msk [vmem:[#allocation3 + $0xa8] sm:$0xff] %vm222, %v354
        %387 = vst.msk [vmem:[#allocation3 + $0xb0] sm:$0xff] %vm222, %v355
        %388 = vst.msk [vmem:[#allocation3 + $0xb8] sm:$0xff] %vm222, %v356
        %389 = vst.msk [vmem:[#allocation3 + $0xc0] sm:$0xff] %vm222, %v357
        %390 = vst.msk [vmem:[#allocation3 + $0xc8] sm:$0xff] %vm222, %v358
        %391 = vst.msk [vmem:[#allocation3 + $0xd0] sm:$0xff] %vm222, %v359
        %392 = vst.msk [vmem:[#allocation3 + $0xd8] sm:$0xff] %vm222, %v360
        %393 = vst.msk [vmem:[#allocation3 + $0xe0] sm:$0xff] %vm222, %v361
        %394 = vst.msk [vmem:[#allocation3 + $0xe8] sm:$0xff] %vm222, %v362
        %395 = vst.msk [vmem:[#allocation3 + $0xf0] sm:$0xff] %vm222, %v363
        %396 = vst.msk [vmem:[#allocation3 + $0xf8] sm:$0xff] %vm222, %v364
        %v397 = vld [vmem:[#allocation2 + $0x1] sm:$0xff]
        %v398 = vld [vmem:[#allocation2 + $0x9] sm:$0xff]
        %v399 = vld [vmem:[#allocation2 + $0x19] sm:$0xff]
        %v400 = vld [vmem:[#allocation2 + $0x21] sm:$0xff]
        %v401 = vld [vmem:[#allocation2 + $0x31] sm:$0xff]
        %v402 = vld [vmem:[#allocation2 + $0x39] sm:$0xff]
        %v403 = vld [vmem:[#allocation2 + $0x49] sm:$0xff]
        %v404 = vld [vmem:[#allocation2 + $0x51] sm:$0xff]
        %v405 = vld [vmem:[#allocation2 + $0x61] sm:$0xff]
        %v406 = vld [vmem:[#allocation2 + $0x69] sm:$0xff]
        %v407 = vld [vmem:[#allocation2 + $0x79] sm:$0xff]
        %v408 = vld [vmem:[#allocation2 + $0x81] sm:$0xff]
        %v409 = vld [vmem:[#allocation2 + $0x91] sm:$0xff]
        %v410 = vld [vmem:[#allocation2 + $0x99] sm:$0xff]
        %v411 = vld [vmem:[#allocation2 + $0xa9] sm:$0xff]
        %v412 = vld [vmem:[#allocation2 + $0xb1] sm:$0xff]
        %v413 = vld [vmem:[#allocation2 + $0xc1] sm:$0xff]
        %v414 = vld [vmem:[#allocation2 + $0xc9] sm:$0xff]
        %v415 = vld [vmem:[#allocation2 + $0xd9] sm:$0xff]
        %v416 = vld [vmem:[#allocation2 + $0xe1] sm:$0xff]
        %v417 = vld [vmem:[#allocation2 + $0xf1] sm:$0xff]
        %v418 = vld [vmem:[#allocation2 + $0xf9] sm:$0xff]
        %v419 = vld [vmem:[#allocation2 + $0x109] sm:$0xff]
        %v420 = vld [vmem:[#allocation2 + $0x111] sm:$0xff]
        %v421 = vld [vmem:[#allocation2 + $0x121] sm:$0xff]
        %v422 = vld [vmem:[#allocation2 + $0x129] sm:$0xff]
        %v423 = vld [vmem:[#allocation2 + $0x139] sm:$0xff]
        %v424 = vld [vmem:[#allocation2 + $0x141] sm:$0xff]
        %v425 = vld [vmem:[#allocation2 + $0x151] sm:$0xff]
        %v426 = vld [vmem:[#allocation2 + $0x159] sm:$0xff]
        %v427 = vld [vmem:[#allocation2 + $0x169] sm:$0xff]
        %v428 = vld [vmem:[#allocation2 + $0x171] sm:$0xff]
        %461 = vrot.lane.b32.xlu0 %v397, 4
        %v462 = vpop.permute.xlu0 %461
        %463 = vrot.lane.b32.xlu0 %v398, 4
        %v464 = vpop.permute.xlu0 %463
        %465 = vrot.lane.b32.xlu0 %v399, 4
        %v466 = vpop.permute.xlu0 %465
        %467 = vrot.lane.b32.xlu0 %v400, 4
        %v468 = vpop.permute.xlu0 %467
        %469 = vrot.lane.b32.xlu0 %v401, 4
        %v470 = vpop.permute.xlu0 %469
        %471 = vrot.lane.b32.xlu0 %v402, 4
        %v472 = vpop.permute.xlu0 %471
        %473 = vrot.lane.b32.xlu0 %v403, 4
        %v474 = vpop.permute.xlu0 %473
        %475 = vrot.lane.b32.xlu0 %v404, 4
        %v476 = vpop.permute.xlu0 %475
        %477 = vrot.lane.b32.xlu0 %v405, 4
        %v478 = vpop.permute.xlu0 %477
        %479 = vrot.lane.b32.xlu0 %v406, 4
        %v480 = vpop.permute.xlu0 %479
        %481 = vrot.lane.b32.xlu0 %v407, 4
        %v482 = vpop.permute.xlu0 %481
        %483 = vrot.lane.b32.xlu0 %v408, 4
        %v484 = vpop.permute.xlu0 %483
        %485 = vrot.lane.b32.xlu0 %v409, 4
        %v486 = vpop.permute.xlu0 %485
        %487 = vrot.lane.b32.xlu0 %v410, 4
        %v488 = vpop.permute.xlu0 %487
        %489 = vrot.lane.b32.xlu0 %v411, 4
        %v490 = vpop.permute.xlu0 %489
        %491 = vrot.lane.b32.xlu0 %v412, 4
        %v492 = vpop.permute.xlu0 %491
        %493 = vrot.lane.b32.xlu0 %v413, 4
        %v494 = vpop.permute.xlu0 %493
        %495 = vrot.lane.b32.xlu0 %v414, 4
        %v496 = vpop.permute.xlu0 %495
        %497 = vrot.lane.b32.xlu0 %v415, 4
        %v498 = vpop.permute.xlu0 %497
        %499 = vrot.lane.b32.xlu0 %v416, 4
        %v500 = vpop.permute.xlu0 %499
        %501 = vrot.lane.b32.xlu0 %v417, 4
        %v502 = vpop.permute.xlu0 %501
        %503 = vrot.lane.b32.xlu0 %v418, 4
        %v504 = vpop.permute.xlu0 %503
        %505 = vrot.lane.b32.xlu0 %v419, 4
        %v506 = vpop.permute.xlu0 %505
        %507 = vrot.lane.b32.xlu0 %v420, 4
        %v508 = vpop.permute.xlu0 %507
        %509 = vrot.lane.b32.xlu0 %v421, 4
        %v510 = vpop.permute.xlu0 %509
        %511 = vrot.lane.b32.xlu0 %v422, 4
        %v512 = vpop.permute.xlu0 %511
        %513 = vrot.lane.b32.xlu0 %v423, 4
        %v514 = vpop.permute.xlu0 %513
        %515 = vrot.lane.b32.xlu0 %v424, 4
        %v516 = vpop.permute.xlu0 %515
        %517 = vrot.lane.b32.xlu0 %v425, 4
        %v518 = vpop.permute.xlu0 %517
        %519 = vrot.lane.b32.xlu0 %v426, 4
        %v520 = vpop.permute.xlu0 %519
        %521 = vrot.lane.b32.xlu0 %v427, 4
        %v522 = vpop.permute.xlu0 %521
        %523 = vrot.lane.b32.xlu0 %v428, 4
        %v524 = vpop.permute.xlu0 %523
        %vm557 = vcmask 64544
        %558 = vst.msk [vmem:[#allocation3] sm:$0xff] %vm557, %v462
        %559 = vst.msk [vmem:[#allocation3 + $0x8] sm:$0xff] %vm557, %v464
        %560 = vst.msk [vmem:[#allocation3 + $0x10] sm:$0xff] %vm557, %v466
        %561 = vst.msk [vmem:[#allocation3 + $0x18] sm:$0xff] %vm557, %v468
        %562 = vst.msk [vmem:[#allocation3 + $0x20] sm:$0xff] %vm557, %v470
        %563 = vst.msk [vmem:[#allocation3 + $0x28] sm:$0xff] %vm557, %v472
        %564 = vst.msk [vmem:[#allocation3 + $0x30] sm:$0xff] %vm557, %v474
        %565 = vst.msk [vmem:[#allocation3 + $0x38] sm:$0xff] %vm557, %v476
        %566 = vst.msk [vmem:[#allocation3 + $0x40] sm:$0xff] %vm557, %v478
        %567 = vst.msk [vmem:[#allocation3 + $0x48] sm:$0xff] %vm557, %v480
        %568 = vst.msk [vmem:[#allocation3 + $0x50] sm:$0xff] %vm557, %v482
        %569 = vst.msk [vmem:[#allocation3 + $0x58] sm:$0xff] %vm557, %v484
        %570 = vst.msk [vmem:[#allocation3 + $0x60] sm:$0xff] %vm557, %v486
        %571 = vst.msk [vmem:[#allocation3 + $0x68] sm:$0xff] %vm557, %v488
        %572 = vst.msk [vmem:[#allocation3 + $0x70] sm:$0xff] %vm557, %v490
        %573 = vst.msk [vmem:[#allocation3 + $0x78] sm:$0xff] %vm557, %v492
        %574 = vst.msk [vmem:[#allocation3 + $0x80] sm:$0xff] %vm557, %v494
        %575 = vst.msk [vmem:[#allocation3 + $0x88] sm:$0xff] %vm557, %v496
        %576 = vst.msk [vmem:[#allocation3 + $0x90] sm:$0xff] %vm557, %v498
        %577 = vst.msk [vmem:[#allocation3 + $0x98] sm:$0xff] %vm557, %v500
        %578 = vst.msk [vmem:[#allocation3 + $0xa0] sm:$0xff] %vm557, %v502
        %579 = vst.msk [vmem:[#allocation3 + $0xa8] sm:$0xff] %vm557, %v504
        %580 = vst.msk [vmem:[#allocation3 + $0xb0] sm:$0xff] %vm557, %v506
        %581 = vst.msk [vmem:[#allocation3 + $0xb8] sm:$0xff] %vm557, %v508
        %582 = vst.msk [vmem:[#allocation3 + $0xc0] sm:$0xff] %vm557, %v510
        %583 = vst.msk [vmem:[#allocation3 + $0xc8] sm:$0xff] %vm557, %v512
        %584 = vst.msk [vmem:[#allocation3 + $0xd0] sm:$0xff] %vm557, %v514
        %585 = vst.msk [vmem:[#allocation3 + $0xd8] sm:$0xff] %vm557, %v516
        %586 = vst.msk [vmem:[#allocation3 + $0xe0] sm:$0xff] %vm557, %v518
        %587 = vst.msk [vmem:[#allocation3 + $0xe8] sm:$0xff] %vm557, %v520
        %588 = vst.msk [vmem:[#allocation3 + $0xf0] sm:$0xff] %vm557, %v522
        %589 = vst.msk [vmem:[#allocation3 + $0xf8] sm:$0xff] %vm557, %v524
        %v590 = vld [vmem:[#allocation2 + $0x2] sm:$0xff]
        %v591 = vld [vmem:[#allocation2 + $0xa] sm:$0xff]
        %v592 = vld [vmem:[#allocation2 + $0x1a] sm:$0xff]
        %v593 = vld [vmem:[#allocation2 + $0x22] sm:$0xff]
        %v594 = vld [vmem:[#allocation2 + $0x32] sm:$0xff]
        %v595 = vld [vmem:[#allocation2 + $0x3a] sm:$0xff]
        %v596 = vld [vmem:[#allocation2 + $0x4a] sm:$0xff]
        %v597 = vld [vmem:[#allocation2 + $0x52] sm:$0xff]
        %v598 = vld [vmem:[#allocation2 + $0x62] sm:$0xff]
        %v599 = vld [vmem:[#allocation2 + $0x6a] sm:$0xff]
        %v600 = vld [vmem:[#allocation2 + $0x7a] sm:$0xff]
        %v601 = vld [vmem:[#allocation2 + $0x82] sm:$0xff]
        %v602 = vld [vmem:[#allocation2 + $0x92] sm:$0xff]
        %v603 = vld [vmem:[#allocation2 + $0x9a] sm:$0xff]
        %v604 = vld [vmem:[#allocation2 + $0xaa] sm:$0xff]
        %v605 = vld [vmem:[#allocation2 + $0xb2] sm:$0xff]
        %v606 = vld [vmem:[#allocation2 + $0xc2] sm:$0xff]
        %v607 = vld [vmem:[#allocation2 + $0xca] sm:$0xff]
        %v608 = vld [vmem:[#allocation2 + $0xda] sm:$0xff]
        %v609 = vld [vmem:[#allocation2 + $0xe2] sm:$0xff]
        %v610 = vld [vmem:[#allocation2 + $0xf2] sm:$0xff]
        %v611 = vld [vmem:[#allocation2 + $0xfa] sm:$0xff]
        %v612 = vld [vmem:[#allocation2 + $0x10a] sm:$0xff]
        %v613 = vld [vmem:[#allocation2 + $0x112] sm:$0xff]
        %v614 = vld [vmem:[#allocation2 + $0x122] sm:$0xff]
        %v615 = vld [vmem:[#allocation2 + $0x12a] sm:$0xff]
        %v616 = vld [vmem:[#allocation2 + $0x13a] sm:$0xff]
        %v617 = vld [vmem:[#allocation2 + $0x142] sm:$0xff]
        %v618 = vld [vmem:[#allocation2 + $0x152] sm:$0xff]
        %v619 = vld [vmem:[#allocation2 + $0x15a] sm:$0xff]
        %v620 = vld [vmem:[#allocation2 + $0x16a] sm:$0xff]
        %v621 = vld [vmem:[#allocation2 + $0x172] sm:$0xff]
        %654 = vrot.lane.b32.xlu0 %v590, 8
        %v655 = vpop.permute.xlu0 %654
        %656 = vrot.lane.b32.xlu0 %v591, 8
        %v657 = vpop.permute.xlu0 %656
        %658 = vrot.lane.b32.xlu0 %v592, 8
        %v659 = vpop.permute.xlu0 %658
        %660 = vrot.lane.b32.xlu0 %v593, 8
        %v661 = vpop.permute.xlu0 %660
        %662 = vrot.lane.b32.xlu0 %v594, 8
        %v663 = vpop.permute.xlu0 %662
        %664 = vrot.lane.b32.xlu0 %v595, 8
        %v665 = vpop.permute.xlu0 %664
        %666 = vrot.lane.b32.xlu0 %v596, 8
        %v667 = vpop.permute.xlu0 %666
        %668 = vrot.lane.b32.xlu0 %v597, 8
        %v669 = vpop.permute.xlu0 %668
        %670 = vrot.lane.b32.xlu0 %v598, 8
        %v671 = vpop.permute.xlu0 %670
        %672 = vrot.lane.b32.xlu0 %v599, 8
        %v673 = vpop.permute.xlu0 %672
        %674 = vrot.lane.b32.xlu0 %v600, 8
        %v675 = vpop.permute.xlu0 %674
        %676 = vrot.lane.b32.xlu0 %v601, 8
        %v677 = vpop.permute.xlu0 %676
        %678 = vrot.lane.b32.xlu0 %v602, 8
        %v679 = vpop.permute.xlu0 %678
        %680 = vrot.lane.b32.xlu0 %v603, 8
        %v681 = vpop.permute.xlu0 %680
        %682 = vrot.lane.b32.xlu0 %v604, 8
        %v683 = vpop.permute.xlu0 %682
        %684 = vrot.lane.b32.xlu0 %v605, 8
        %v685 = vpop.permute.xlu0 %684
        %686 = vrot.lane.b32.xlu0 %v606, 8
        %v687 = vpop.permute.xlu0 %686
        %688 = vrot.lane.b32.xlu0 %v607, 8
        %v689 = vpop.permute.xlu0 %688
        %690 = vrot.lane.b32.xlu0 %v608, 8
        %v691 = vpop.permute.xlu0 %690
        %692 = vrot.lane.b32.xlu0 %v609, 8
        %v693 = vpop.permute.xlu0 %692
        %694 = vrot.lane.b32.xlu0 %v610, 8
        %v695 = vpop.permute.xlu0 %694
        %696 = vrot.lane.b32.xlu0 %v611, 8
        %v697 = vpop.permute.xlu0 %696
        %698 = vrot.lane.b32.xlu0 %v612, 8
        %v699 = vpop.permute.xlu0 %698
        %700 = vrot.lane.b32.xlu0 %v613, 8
        %v701 = vpop.permute.xlu0 %700
        %702 = vrot.lane.b32.xlu0 %v614, 8
        %v703 = vpop.permute.xlu0 %702
        %704 = vrot.lane.b32.xlu0 %v615, 8
        %v705 = vpop.permute.xlu0 %704
        %706 = vrot.lane.b32.xlu0 %v616, 8
        %v707 = vpop.permute.xlu0 %706
        %708 = vrot.lane.b32.xlu0 %v617, 8
        %v709 = vpop.permute.xlu0 %708
        %710 = vrot.lane.b32.xlu0 %v618, 8
        %v711 = vpop.permute.xlu0 %710
        %712 = vrot.lane.b32.xlu0 %v619, 8
        %v713 = vpop.permute.xlu0 %712
        %714 = vrot.lane.b32.xlu0 %v620, 8
        %v715 = vpop.permute.xlu0 %714
        %716 = vrot.lane.b32.xlu0 %v621, 8
        %v717 = vpop.permute.xlu0 %716
        %vm750 = vcmask 97344
        %751 = vst.msk [vmem:[#allocation3] sm:$0xff] %vm750, %v655
        %752 = vst.msk [vmem:[#allocation3 + $0x8] sm:$0xff] %vm750, %v657
        %753 = vst.msk [vmem:[#allocation3 + $0x10] sm:$0xff] %vm750, %v659
        %754 = vst.msk [vmem:[#allocation3 + $0x18] sm:$0xff] %vm750, %v661
        %755 = vst.msk [vmem:[#allocation3 + $0x20] sm:$0xff] %vm750, %v663
        %756 = vst.msk [vmem:[#allocation3 + $0x28] sm:$0xff] %vm750, %v665
        %757 = vst.msk [vmem:[#allocation3 + $0x30] sm:$0xff] %vm750, %v667
        %758 = vst.msk [vmem:[#allocation3 + $0x38] sm:$0xff] %vm750, %v669
        %759 = vst.msk [vmem:[#allocation3 + $0x40] sm:$0xff] %vm750, %v671
        %760 = vst.msk [vmem:[#allocation3 + $0x48] sm:$0xff] %vm750, %v673
        %761 = vst.msk [vmem:[#allocation3 + $0x50] sm:$0xff] %vm750, %v675
        %762 = vst.msk [vmem:[#allocation3 + $0x58] sm:$0xff] %vm750, %v677
        %763 = vst.msk [vmem:[#allocation3 + $0x60] sm:$0xff] %vm750, %v679
        %764 = vst.msk [vmem:[#allocation3 + $0x68] sm:$0xff] %vm750, %v681
        %765 = vst.msk [vmem:[#allocation3 + $0x70] sm:$0xff] %vm750, %v683
        %766 = vst.msk [vmem:[#allocation3 + $0x78] sm:$0xff] %vm750, %v685
        %767 = vst.msk [vmem:[#allocation3 + $0x80] sm:$0xff] %vm750, %v687
        %768 = vst.msk [vmem:[#allocation3 + $0x88] sm:$0xff] %vm750, %v689
        %769 = vst.msk [vmem:[#allocation3 + $0x90] sm:$0xff] %vm750, %v691
        %770 = vst.msk [vmem:[#allocation3 + $0x98] sm:$0xff] %vm750, %v693
        %771 = vst.msk [vmem:[#allocation3 + $0xa0] sm:$0xff] %vm750, %v695
        %772 = vst.msk [vmem:[#allocation3 + $0xa8] sm:$0xff] %vm750, %v697
        %773 = vst.msk [vmem:[#allocation3 + $0xb0] sm:$0xff] %vm750, %v699
        %774 = vst.msk [vmem:[#allocation3 + $0xb8] sm:$0xff] %vm750, %v701
        %775 = vst.msk [vmem:[#allocation3 + $0xc0] sm:$0xff] %vm750, %v703
        %776 = vst.msk [vmem:[#allocation3 + $0xc8] sm:$0xff] %vm750, %v705
        %777 = vst.msk [vmem:[#allocation3 + $0xd0] sm:$0xff] %vm750, %v707
        %778 = vst.msk [vmem:[#allocation3 + $0xd8] sm:$0xff] %vm750, %v709
        %779 = vst.msk [vmem:[#allocation3 + $0xe0] sm:$0xff] %vm750, %v711
        %780 = vst.msk [vmem:[#allocation3 + $0xe8] sm:$0xff] %vm750, %v713
        %781 = vst.msk [vmem:[#allocation3 + $0xf0] sm:$0xff] %vm750, %v715
        %782 = vst.msk [vmem:[#allocation3 + $0xf8] sm:$0xff] %vm750, %v717
        %v783 = vld [vmem:[%s300] sm:$0xff]
        %v784 = vld [vmem:[%s300 + $0x8] sm:$0xff]
        %v785 = vld [vmem:[%s300 + $0x18] sm:$0xff]
        %v786 = vld [vmem:[%s300 + $0x20] sm:$0xff]
        %v787 = vld [vmem:[%s300 + $0x30] sm:$0xff]
        %v788 = vld [vmem:[%s300 + $0x38] sm:$0xff]
        %v789 = vld [vmem:[%s300 + $0x48] sm:$0xff]
        %v790 = vld [vmem:[%s300 + $0x50] sm:$0xff]
        %v791 = vld [vmem:[%s300 + $0x60] sm:$0xff]
        %v792 = vld [vmem:[%s300 + $0x68] sm:$0xff]
        %v793 = vld [vmem:[%s300 + $0x78] sm:$0xff]
        %v794 = vld [vmem:[%s300 + $0x80] sm:$0xff]
        %v795 = vld [vmem:[%s300 + $0x90] sm:$0xff]
        %v796 = vld [vmem:[%s300 + $0x98] sm:$0xff]
        %v797 = vld [vmem:[%s300 + $0xa8] sm:$0xff]
        %v798 = vld [vmem:[%s300 + $0xb0] sm:$0xff]
        %v799 = vld [vmem:[%s300 + $0xc0] sm:$0xff]
        %v800 = vld [vmem:[%s300 + $0xc8] sm:$0xff]
        %v801 = vld [vmem:[%s300 + $0xd8] sm:$0xff]
        %v802 = vld [vmem:[%s300 + $0xe0] sm:$0xff]
        %v803 = vld [vmem:[%s300 + $0xf0] sm:$0xff]
        %v804 = vld [vmem:[%s300 + $0xf8] sm:$0xff]
        %v805 = vld [vmem:[%s300 + $0x108] sm:$0xff]
        %v806 = vld [vmem:[%s300 + $0x110] sm:$0xff]
        %v807 = vld [vmem:[%s300 + $0x120] sm:$0xff]
        %v808 = vld [vmem:[%s300 + $0x128] sm:$0xff]
        %v809 = vld [vmem:[%s300 + $0x138] sm:$0xff]
        %v810 = vld [vmem:[%s300 + $0x140] sm:$0xff]
        %v811 = vld [vmem:[%s300 + $0x150] sm:$0xff]
        %v812 = vld [vmem:[%s300 + $0x158] sm:$0xff]
        %v813 = vld [vmem:[%s300 + $0x168] sm:$0xff]
        %v814 = vld [vmem:[%s300 + $0x170] sm:$0xff]
        %847 = vrot.lane.b32.xlu0 %v783, 12
        %v848 = vpop.permute.xlu0 %847
        %849 = vrot.lane.b32.xlu0 %v784, 12
        %v850 = vpop.permute.xlu0 %849
        %851 = vrot.lane.b32.xlu0 %v785, 12
        %v852 = vpop.permute.xlu0 %851
        %853 = vrot.lane.b32.xlu0 %v786, 12
        %v854 = vpop.permute.xlu0 %853
        %855 = vrot.lane.b32.xlu0 %v787, 12
        %v856 = vpop.permute.xlu0 %855
        %857 = vrot.lane.b32.xlu0 %v788, 12
        %v858 = vpop.permute.xlu0 %857
        %859 = vrot.lane.b32.xlu0 %v789, 12
        %v860 = vpop.permute.xlu0 %859
        %861 = vrot.lane.b32.xlu0 %v790, 12
        %v862 = vpop.permute.xlu0 %861
        %863 = vrot.lane.b32.xlu0 %v791, 12
        %v864 = vpop.permute.xlu0 %863
        %865 = vrot.lane.b32.xlu0 %v792, 12
        %v866 = vpop.permute.xlu0 %865
        %867 = vrot.lane.b32.xlu0 %v793, 12
        %v868 = vpop.permute.xlu0 %867
        %869 = vrot.lane.b32.xlu0 %v794, 12
        %v870 = vpop.permute.xlu0 %869
        %871 = vrot.lane.b32.xlu0 %v795, 12
        %v872 = vpop.permute.xlu0 %871
        %873 = vrot.lane.b32.xlu0 %v796, 12
        %v874 = vpop.permute.xlu0 %873
        %875 = vrot.lane.b32.xlu0 %v797, 12
        %v876 = vpop.permute.xlu0 %875
        %877 = vrot.lane.b32.xlu0 %v798, 12
        %v878 = vpop.permute.xlu0 %877
        %879 = vrot.lane.b32.xlu0 %v799, 12
        %v880 = vpop.permute.xlu0 %879
        %881 = vrot.lane.b32.xlu0 %v800, 12
        %v882 = vpop.permute.xlu0 %881
        %883 = vrot.lane.b32.xlu0 %v801, 12
        %v884 = vpop.permute.xlu0 %883
        %885 = vrot.lane.b32.xlu0 %v802, 12
        %v886 = vpop.permute.xlu0 %885
        %887 = vrot.lane.b32.xlu0 %v803, 12
        %v888 = vpop.permute.xlu0 %887
        %889 = vrot.lane.b32.xlu0 %v804, 12
        %v890 = vpop.permute.xlu0 %889
        %891 = vrot.lane.b32.xlu0 %v805, 12
        %v892 = vpop.permute.xlu0 %891
        %893 = vrot.lane.b32.xlu0 %v806, 12
        %v894 = vpop.permute.xlu0 %893
        %895 = vrot.lane.b32.xlu0 %v807, 12
        %v896 = vpop.permute.xlu0 %895
        %897 = vrot.lane.b32.xlu0 %v808, 12
        %v898 = vpop.permute.xlu0 %897
        %899 = vrot.lane.b32.xlu0 %v809, 12
        %v900 = vpop.permute.xlu0 %899
        %901 = vrot.lane.b32.xlu0 %v810, 12
        %v902 = vpop.permute.xlu0 %901
        %903 = vrot.lane.b32.xlu0 %v811, 12
        %v904 = vpop.permute.xlu0 %903
        %905 = vrot.lane.b32.xlu0 %v812, 12
        %v906 = vpop.permute.xlu0 %905
        %907 = vrot.lane.b32.xlu0 %v813, 12
        %v908 = vpop.permute.xlu0 %907
        %909 = vrot.lane.b32.xlu0 %v814, 12
        %v910 = vpop.permute.xlu0 %909
        %vm943 = vcmask 130144
        %944 = vst.msk [vmem:[#allocation3] sm:$0xff] %vm943, %v848
        %945 = vst.msk [vmem:[#allocation3 + $0x8] sm:$0xff] %vm943, %v850
        %946 = vst.msk [vmem:[#allocation3 + $0x10] sm:$0xff] %vm943, %v852
        %947 = vst.msk [vmem:[#allocation3 + $0x18] sm:$0xff] %vm943, %v854
        %948 = vst.msk [vmem:[#allocation3 + $0x20] sm:$0xff] %vm943, %v856
        %949 = vst.msk [vmem:[#allocation3 + $0x28] sm:$0xff] %vm943, %v858
        %950 = vst.msk [vmem:[#allocation3 + $0x30] sm:$0xff] %vm943, %v860
        %951 = vst.msk [vmem:[#allocation3 + $0x38] sm:$0xff] %vm943, %v862
        %952 = vst.msk [vmem:[#allocation3 + $0x40] sm:$0xff] %vm943, %v864
        %953 = vst.msk [vmem:[#allocation3 + $0x48] sm:$0xff] %vm943, %v866
        %954 = vst.msk [vmem:[#allocation3 + $0x50] sm:$0xff] %vm943, %v868
        %955 = vst.msk [vmem:[#allocation3 + $0x58] sm:$0xff] %vm943, %v870
        %956 = vst.msk [vmem:[#allocation3 + $0x60] sm:$0xff] %vm943, %v872
        %957 = vst.msk [vmem:[#allocation3 + $0x68] sm:$0xff] %vm943, %v874
        %958 = vst.msk [vmem:[#allocation3 + $0x70] sm:$0xff] %vm943, %v876
        %959 = vst.msk [vmem:[#allocation3 + $0x78] sm:$0xff] %vm943, %v878
        %960 = vst.msk [vmem:[#allocation3 + $0x80] sm:$0xff] %vm943, %v880
        %961 = vst.msk [vmem:[#allocation3 + $0x88] sm:$0xff] %vm943, %v882
        %962 = vst.msk [vmem:[#allocation3 + $0x90] sm:$0xff] %vm943, %v884
        %963 = vst.msk [vmem:[#allocation3 + $0x98] sm:$0xff] %vm943, %v886
        %964 = vst.msk [vmem:[#allocation3 + $0xa0] sm:$0xff] %vm943, %v888
        %965 = vst.msk [vmem:[#allocation3 + $0xa8] sm:$0xff] %vm943, %v890
        %966 = vst.msk [vmem:[#allocation3 + $0xb0] sm:$0xff] %vm943, %v892
        %967 = vst.msk [vmem:[#allocation3 + $0xb8] sm:$0xff] %vm943, %v894
        %968 = vst.msk [vmem:[#allocation3 + $0xc0] sm:$0xff] %vm943, %v896
        %969 = vst.msk [vmem:[#allocation3 + $0xc8] sm:$0xff] %vm943, %v898
        %970 = vst.msk [vmem:[#allocation3 + $0xd0] sm:$0xff] %vm943, %v900
        %971 = vst.msk [vmem:[#allocation3 + $0xd8] sm:$0xff] %vm943, %v902
        %972 = vst.msk [vmem:[#allocation3 + $0xe0] sm:$0xff] %vm943, %v904
        %973 = vst.msk [vmem:[#allocation3 + $0xe8] sm:$0xff] %vm943, %v906
        %974 = vst.msk [vmem:[#allocation3 + $0xf0] sm:$0xff] %vm943, %v908
        %975 = vst.msk [vmem:[#allocation3 + $0xf8] sm:$0xff] %vm943, %v910
        %v976 = vld [vmem:[%s300 + $0x1] sm:$0xff]
        %v977 = vld [vmem:[%s300 + $0x9] sm:$0xff]
        %v978 = vld [vmem:[%s300 + $0x19] sm:$0xff]
        %v979 = vld [vmem:[%s300 + $0x21] sm:$0xff]
        %v980 = vld [vmem:[%s300 + $0x31] sm:$0xff]
        %v981 = vld [vmem:[%s300 + $0x39] sm:$0xff]
        %v982 = vld [vmem:[%s300 + $0x49] sm:$0xff]
        %v983 = vld [vmem:[%s300 + $0x51] sm:$0xff]
        %v984 = vld [vmem:[%s300 + $0x61] sm:$0xff]
        %v985 = vld [vmem:[%s300 + $0x69] sm:$0xff]
        %v986 = vld [vmem:[%s300 + $0x79] sm:$0xff]
        %v987 = vld [vmem:[%s300 + $0x81] sm:$0xff]
        %v988 = vld [vmem:[%s300 + $0x91] sm:$0xff]
        %v989 = vld [vmem:[%s300 + $0x99] sm:$0xff]
        %v990 = vld [vmem:[%s300 + $0xa9] sm:$0xff]
        %v991 = vld [vmem:[%s300 + $0xb1] sm:$0xff]
        %v992 = vld [vmem:[%s300 + $0xc1] sm:$0xff]
        %v993 = vld [vmem:[%s300 + $0xc9] sm:$0xff]
        %v994 = vld [vmem:[%s300 + $0xd9] sm:$0xff]
        %v995 = vld [vmem:[%s300 + $0xe1] sm:$0xff]
        %v996 = vld [vmem:[%s300 + $0xf1] sm:$0xff]
        %v997 = vld [vmem:[%s300 + $0xf9] sm:$0xff]
        %v998 = vld [vmem:[%s300 + $0x109] sm:$0xff]
        %v999 = vld [vmem:[%s300 + $0x111] sm:$0xff]
        %v1000 = vld [vmem:[%s300 + $0x121] sm:$0xff]
        %v1001 = vld [vmem:[%s300 + $0x129] sm:$0xff]
        %v1002 = vld [vmem:[%s300 + $0x139] sm:$0xff]
        %v1003 = vld [vmem:[%s300 + $0x141] sm:$0xff]
        %v1004 = vld [vmem:[%s300 + $0x151] sm:$0xff]
        %v1005 = vld [vmem:[%s300 + $0x159] sm:$0xff]
        %v1006 = vld [vmem:[%s300 + $0x169] sm:$0xff]
        %v1007 = vld [vmem:[%s300 + $0x171] sm:$0xff]
        %1040 = vrot.lane.b32.xlu0 %v976, 16
        %v1041 = vpop.permute.xlu0 %1040
        %1042 = vrot.lane.b32.xlu0 %v977, 16
        %v1043 = vpop.permute.xlu0 %1042
        %1044 = vrot.lane.b32.xlu0 %v978, 16
        %v1045 = vpop.permute.xlu0 %1044
        %1046 = vrot.lane.b32.xlu0 %v979, 16
        %v1047 = vpop.permute.xlu0 %1046
        %1048 = vrot.lane.b32.xlu0 %v980, 16
        %v1049 = vpop.permute.xlu0 %1048
        %1050 = vrot.lane.b32.xlu0 %v981, 16
        %v1051 = vpop.permute.xlu0 %1050
        %1052 = vrot.lane.b32.xlu0 %v982, 16
        %v1053 = vpop.permute.xlu0 %1052
        %1054 = vrot.lane.b32.xlu0 %v983, 16
        %v1055 = vpop.permute.xlu0 %1054
        %1056 = vrot.lane.b32.xlu0 %v984, 16
        %v1057 = vpop.permute.xlu0 %1056
        %1058 = vrot.lane.b32.xlu0 %v985, 16
        %v1059 = vpop.permute.xlu0 %1058
        %1060 = vrot.lane.b32.xlu0 %v986, 16
        %v1061 = vpop.permute.xlu0 %1060
        %1062 = vrot.lane.b32.xlu0 %v987, 16
        %v1063 = vpop.permute.xlu0 %1062
        %1064 = vrot.lane.b32.xlu0 %v988, 16
        %v1065 = vpop.permute.xlu0 %1064
        %1066 = vrot.lane.b32.xlu0 %v989, 16
        %v1067 = vpop.permute.xlu0 %1066
        %1068 = vrot.lane.b32.xlu0 %v990, 16
        %v1069 = vpop.permute.xlu0 %1068
        %1070 = vrot.lane.b32.xlu0 %v991, 16
        %v1071 = vpop.permute.xlu0 %1070
        %1072 = vrot.lane.b32.xlu0 %v992, 16
        %v1073 = vpop.permute.xlu0 %1072
        %1074 = vrot.lane.b32.xlu0 %v993, 16
        %v1075 = vpop.permute.xlu0 %1074
        %1076 = vrot.lane.b32.xlu0 %v994, 16
        %v1077 = vpop.permute.xlu0 %1076
        %1078 = vrot.lane.b32.xlu0 %v995, 16
        %v1079 = vpop.permute.xlu0 %1078
        %1080 = vrot.lane.b32.xlu0 %v996, 16
        %v1081 = vpop.permute.xlu0 %1080
        %1082 = vrot.lane.b32.xlu0 %v997, 16
        %v1083 = vpop.permute.xlu0 %1082
        %1084 = vrot.lane.b32.xlu0 %v998, 16
        %v1085 = vpop.permute.xlu0 %1084
        %1086 = vrot.lane.b32.xlu0 %v999, 16
        %v1087 = vpop.permute.xlu0 %1086
        %1088 = vrot.lane.b32.xlu0 %v1000, 16
        %v1089 = vpop.permute.xlu0 %1088
        %1090 = vrot.lane.b32.xlu0 %v1001, 16
        %v1091 = vpop.permute.xlu0 %1090
        %1092 = vrot.lane.b32.xlu0 %v1002, 16
        %v1093 = vpop.permute.xlu0 %1092
        %1094 = vrot.lane.b32.xlu0 %v1003, 16
        %v1095 = vpop.permute.xlu0 %1094
        %1096 = vrot.lane.b32.xlu0 %v1004, 16
        %v1097 = vpop.permute.xlu0 %1096
        %1098 = vrot.lane.b32.xlu0 %v1005, 16
        %v1099 = vpop.permute.xlu0 %1098
        %1100 = vrot.lane.b32.xlu0 %v1006, 16
        %v1101 = vpop.permute.xlu0 %1100
        %1102 = vrot.lane.b32.xlu0 %v1007, 16
        %v1103 = vpop.permute.xlu0 %1102
        %vm1136 = vcmask 162944
        %1137 = vst.msk [vmem:[#allocation3] sm:$0xff] %vm1136, %v1041
        %1138 = vst.msk [vmem:[#allocation3 + $0x8] sm:$0xff] %vm1136, %v1043
        %1139 = vst.msk [vmem:[#allocation3 + $0x10] sm:$0xff] %vm1136, %v1045
        %1140 = vst.msk [vmem:[#allocation3 + $0x18] sm:$0xff] %vm1136, %v1047
        %1141 = vst.msk [vmem:[#allocation3 + $0x20] sm:$0xff] %vm1136, %v1049
        %1142 = vst.msk [vmem:[#allocation3 + $0x28] sm:$0xff] %vm1136, %v1051
        %1143 = vst.msk [vmem:[#allocation3 + $0x30] sm:$0xff] %vm1136, %v1053
        %1144 = vst.msk [vmem:[#allocation3 + $0x38] sm:$0xff] %vm1136, %v1055
        %1145 = vst.msk [vmem:[#allocation3 + $0x40] sm:$0xff] %vm1136, %v1057
        %1146 = vst.msk [vmem:[#allocation3 + $0x48] sm:$0xff] %vm1136, %v1059
        %1147 = vst.msk [vmem:[#allocation3 + $0x50] sm:$0xff] %vm1136, %v1061
        %1148 = vst.msk [vmem:[#allocation3 + $0x58] sm:$0xff] %vm1136, %v1063
        %1149 = vst.msk [vmem:[#allocation3 + $0x60] sm:$0xff] %vm1136, %v1065
        %1150 = vst.msk [vmem:[#allocation3 + $0x68] sm:$0xff] %vm1136, %v1067
        %1151 = vst.msk [vmem:[#allocation3 + $0x70] sm:$0xff] %vm1136, %v1069
        %1152 = vst.msk [vmem:[#allocation3 + $0x78] sm:$0xff] %vm1136, %v1071
        %1153 = vst.msk [vmem:[#allocation3 + $0x80] sm:$0xff] %vm1136, %v1073
        %1154 = vst.msk [vmem:[#allocation3 + $0x88] sm:$0xff] %vm1136, %v1075
        %1155 = vst.msk [vmem:[#allocation3 + $0x90] sm:$0xff] %vm1136, %v1077
        %1156 = vst.msk [vmem:[#allocation3 + $0x98] sm:$0xff] %vm1136, %v1079
        %1157 = vst.msk [vmem:[#allocation3 + $0xa0] sm:$0xff] %vm1136, %v1081
        %1158 = vst.msk [vmem:[#allocation3 + $0xa8] sm:$0xff] %vm1136, %v1083
        %1159 = vst.msk [vmem:[#allocation3 + $0xb0] sm:$0xff] %vm1136, %v1085
        %1160 = vst.msk [vmem:[#allocation3 + $0xb8] sm:$0xff] %vm1136, %v1087
        %1161 = vst.msk [vmem:[#allocation3 + $0xc0] sm:$0xff] %vm1136, %v1089
        %1162 = vst.msk [vmem:[#allocation3 + $0xc8] sm:$0xff] %vm1136, %v1091
        %1163 = vst.msk [vmem:[#allocation3 + $0xd0] sm:$0xff] %vm1136, %v1093
        %1164 = vst.msk [vmem:[#allocation3 + $0xd8] sm:$0xff] %vm1136, %v1095
        %1165 = vst.msk [vmem:[#allocation3 + $0xe0] sm:$0xff] %vm1136, %v1097
        %1166 = vst.msk [vmem:[#allocation3 + $0xe8] sm:$0xff] %vm1136, %v1099
        %1167 = vst.msk [vmem:[#allocation3 + $0xf0] sm:$0xff] %vm1136, %v1101
        %1168 = vst.msk [vmem:[#allocation3 + $0xf8] sm:$0xff] %vm1136, %v1103
        %v1169 = vld [vmem:[%s300 + $0x2] sm:$0xff]
        %v1170 = vld [vmem:[%s300 + $0xa] sm:$0xff]
        %v1171 = vld [vmem:[%s300 + $0x1a] sm:$0xff]
        %v1172 = vld [vmem:[%s300 + $0x22] sm:$0xff]
        %v1173 = vld [vmem:[%s300 + $0x32] sm:$0xff]
        %v1174 = vld [vmem:[%s300 + $0x3a] sm:$0xff]
        %v1175 = vld [vmem:[%s300 + $0x4a] sm:$0xff]
        %v1176 = vld [vmem:[%s300 + $0x52] sm:$0xff]
        %v1177 = vld [vmem:[%s300 + $0x62] sm:$0xff]
        %v1178 = vld [vmem:[%s300 + $0x6a] sm:$0xff]
        %v1179 = vld [vmem:[%s300 + $0x7a] sm:$0xff]
        %v1180 = vld [vmem:[%s300 + $0x82] sm:$0xff]
        %v1181 = vld [vmem:[%s300 + $0x92] sm:$0xff]
        %v1182 = vld [vmem:[%s300 + $0x9a] sm:$0xff]
        %v1183 = vld [vmem:[%s300 + $0xaa] sm:$0xff]
        %v1184 = vld [vmem:[%s300 + $0xb2] sm:$0xff]
        %v1185 = vld [vmem:[%s300 + $0xc2] sm:$0xff]
        %v1186 = vld [vmem:[%s300 + $0xca] sm:$0xff]
        %v1187 = vld [vmem:[%s300 + $0xda] sm:$0xff]
        %v1188 = vld [vmem:[%s300 + $0xe2] sm:$0xff]
        %v1189 = vld [vmem:[%s300 + $0xf2] sm:$0xff]
        %v1190 = vld [vmem:[%s300 + $0xfa] sm:$0xff]
        %v1191 = vld [vmem:[%s300 + $0x10a] sm:$0xff]
        %v1192 = vld [vmem:[%s300 + $0x112] sm:$0xff]
        %v1193 = vld [vmem:[%s300 + $0x122] sm:$0xff]
        %v1194 = vld [vmem:[%s300 + $0x12a] sm:$0xff]
        %v1195 = vld [vmem:[%s300 + $0x13a] sm:$0xff]
        %v1196 = vld [vmem:[%s300 + $0x142] sm:$0xff]
        %v1197 = vld [vmem:[%s300 + $0x152] sm:$0xff]
        %v1198 = vld [vmem:[%s300 + $0x15a] sm:$0xff]
        %v1199 = vld [vmem:[%s300 + $0x16a] sm:$0xff]
        %v1200 = vld [vmem:[%s300 + $0x172] sm:$0xff]
        %1233 = vrot.lane.b32.xlu0 %v1169, 20
        %v1234 = vpop.permute.xlu0 %1233
        %1235 = vrot.lane.b32.xlu0 %v1170, 20
        %v1236 = vpop.permute.xlu0 %1235
        %1237 = vrot.lane.b32.xlu0 %v1171, 20
        %v1238 = vpop.permute.xlu0 %1237
        %1239 = vrot.lane.b32.xlu0 %v1172, 20
        %v1240 = vpop.permute.xlu0 %1239
        %1241 = vrot.lane.b32.xlu0 %v1173, 20
        %v1242 = vpop.permute.xlu0 %1241
        %1243 = vrot.lane.b32.xlu0 %v1174, 20
        %v1244 = vpop.permute.xlu0 %1243
        %1245 = vrot.lane.b32.xlu0 %v1175, 20
        %v1246 = vpop.permute.xlu0 %1245
        %1247 = vrot.lane.b32.xlu0 %v1176, 20
        %v1248 = vpop.permute.xlu0 %1247
        %1249 = vrot.lane.b32.xlu0 %v1177, 20
        %v1250 = vpop.permute.xlu0 %1249
        %1251 = vrot.lane.b32.xlu0 %v1178, 20
        %v1252 = vpop.permute.xlu0 %1251
        %1253 = vrot.lane.b32.xlu0 %v1179, 20
        %v1254 = vpop.permute.xlu0 %1253
        %1255 = vrot.lane.b32.xlu0 %v1180, 20
        %v1256 = vpop.permute.xlu0 %1255
        %1257 = vrot.lane.b32.xlu0 %v1181, 20
        %v1258 = vpop.permute.xlu0 %1257
        %1259 = vrot.lane.b32.xlu0 %v1182, 20
        %v1260 = vpop.permute.xlu0 %1259
        %1261 = vrot.lane.b32.xlu0 %v1183, 20
        %v1262 = vpop.permute.xlu0 %1261
        %1263 = vrot.lane.b32.xlu0 %v1184, 20
        %v1264 = vpop.permute.xlu0 %1263
        %1265 = vrot.lane.b32.xlu0 %v1185, 20
        %v1266 = vpop.permute.xlu0 %1265
        %1267 = vrot.lane.b32.xlu0 %v1186, 20
        %v1268 = vpop.permute.xlu0 %1267
        %1269 = vrot.lane.b32.xlu0 %v1187, 20
        %v1270 = vpop.permute.xlu0 %1269
        %1271 = vrot.lane.b32.xlu0 %v1188, 20
        %v1272 = vpop.permute.xlu0 %1271
        %1273 = vrot.lane.b32.xlu0 %v1189, 20
        %v1274 = vpop.permute.xlu0 %1273
        %1275 = vrot.lane.b32.xlu0 %v1190, 20
        %v1276 = vpop.permute.xlu0 %1275
        %1277 = vrot.lane.b32.xlu0 %v1191, 20
        %v1278 = vpop.permute.xlu0 %1277
        %1279 = vrot.lane.b32.xlu0 %v1192, 20
        %v1280 = vpop.permute.xlu0 %1279
        %1281 = vrot.lane.b32.xlu0 %v1193, 20
        %v1282 = vpop.permute.xlu0 %1281
        %1283 = vrot.lane.b32.xlu0 %v1194, 20
        %v1284 = vpop.permute.xlu0 %1283
        %1285 = vrot.lane.b32.xlu0 %v1195, 20
        %v1286 = vpop.permute.xlu0 %1285
        %1287 = vrot.lane.b32.xlu0 %v1196, 20
        %v1288 = vpop.permute.xlu0 %1287
        %1289 = vrot.lane.b32.xlu0 %v1197, 20
        %v1290 = vpop.permute.xlu0 %1289
        %1291 = vrot.lane.b32.xlu0 %v1198, 20
        %v1292 = vpop.permute.xlu0 %1291
        %1293 = vrot.lane.b32.xlu0 %v1199, 20
        %v1294 = vpop.permute.xlu0 %1293
        %1295 = vrot.lane.b32.xlu0 %v1200, 20
        %v1296 = vpop.permute.xlu0 %1295
        %vm1329 = vcmask 195744
        %1330 = vst.msk [vmem:[#allocation3] sm:$0xff] %vm1329, %v1234
        %1331 = vst.msk [vmem:[#allocation3 + $0x8] sm:$0xff] %vm1329, %v1236
        %1332 = vst.msk [vmem:[#allocation3 + $0x10] sm:$0xff] %vm1329, %v1238
        %1333 = vst.msk [vmem:[#allocation3 + $0x18] sm:$0xff] %vm1329, %v1240
        %1334 = vst.msk [vmem:[#allocation3 + $0x20] sm:$0xff] %vm1329, %v1242
        %1335 = vst.msk [vmem:[#allocation3 + $0x28] sm:$0xff] %vm1329, %v1244
        %1336 = vst.msk [vmem:[#allocation3 + $0x30] sm:$0xff] %vm1329, %v1246
        %1337 = vst.msk [vmem:[#allocation3 + $0x38] sm:$0xff] %vm1329, %v1248
        %1338 = vst.msk [vmem:[#allocation3 + $0x40] sm:$0xff] %vm1329, %v1250
        %1339 = vst.msk [vmem:[#allocation3 + $0x48] sm:$0xff] %vm1329, %v1252
        %1340 = vst.msk [vmem:[#allocation3 + $0x50] sm:$0xff] %vm1329, %v1254
        %1341 = vst.msk [vmem:[#allocation3 + $0x58] sm:$0xff] %vm1329, %v1256
        %1342 = vst.msk [vmem:[#allocation3 + $0x60] sm:$0xff] %vm1329, %v1258
        %1343 = vst.msk [vmem:[#allocation3 + $0x68] sm:$0xff] %vm1329, %v1260
        %1344 = vst.msk [vmem:[#allocation3 + $0x70] sm:$0xff] %vm1329, %v1262
        %1345 = vst.msk [vmem:[#allocation3 + $0x78] sm:$0xff] %vm1329, %v1264
        %1346 = vst.msk [vmem:[#allocation3 + $0x80] sm:$0xff] %vm1329, %v1266
        %1347 = vst.msk [vmem:[#allocation3 + $0x88] sm:$0xff] %vm1329, %v1268
        %1348 = vst.msk [vmem:[#allocation3 + $0x90] sm:$0xff] %vm1329, %v1270
        %1349 = vst.msk [vmem:[#allocation3 + $0x98] sm:$0xff] %vm1329, %v1272
        %1350 = vst.msk [vmem:[#allocation3 + $0xa0] sm:$0xff] %vm1329, %v1274
        %1351 = vst.msk [vmem:[#allocation3 + $0xa8] sm:$0xff] %vm1329, %v1276
        %1352 = vst.msk [vmem:[#allocation3 + $0xb0] sm:$0xff] %vm1329, %v1278
        %1353 = vst.msk [vmem:[#allocation3 + $0xb8] sm:$0xff] %vm1329, %v1280
        %1354 = vst.msk [vmem:[#allocation3 + $0xc0] sm:$0xff] %vm1329, %v1282
        %1355 = vst.msk [vmem:[#allocation3 + $0xc8] sm:$0xff] %vm1329, %v1284
        %1356 = vst.msk [vmem:[#allocation3 + $0xd0] sm:$0xff] %vm1329, %v1286
        %1357 = vst.msk [vmem:[#allocation3 + $0xd8] sm:$0xff] %vm1329, %v1288
        %1358 = vst.msk [vmem:[#allocation3 + $0xe0] sm:$0xff] %vm1329, %v1290
        %1359 = vst.msk [vmem:[#allocation3 + $0xe8] sm:$0xff] %vm1329, %v1292
        %1360 = vst.msk [vmem:[#allocation3 + $0xf0] sm:$0xff] %vm1329, %v1294
        %1361 = vst.msk [vmem:[#allocation3 + $0xf8] sm:$0xff] %vm1329, %v1296
        %s1362 = scalar_lea.vmem [#allocation2], 48
        %v1363 = vld [vmem:[%s1362] sm:$0xff]
        %v1364 = vld [vmem:[%s1362 + $0x8] sm:$0xff]
        %v1365 = vld [vmem:[%s1362 + $0x18] sm:$0xff]
        %v1366 = vld [vmem:[%s1362 + $0x20] sm:$0xff]
        %v1367 = vld [vmem:[%s1362 + $0x30] sm:$0xff]
        %v1368 = vld [vmem:[%s1362 + $0x38] sm:$0xff]
        %v1369 = vld [vmem:[%s1362 + $0x48] sm:$0xff]
        %v1370 = vld [vmem:[%s1362 + $0x50] sm:$0xff]
        %v1371 = vld [vmem:[%s1362 + $0x60] sm:$0xff]
        %v1372 = vld [vmem:[%s1362 + $0x68] sm:$0xff]
        %v1373 = vld [vmem:[%s1362 + $0x78] sm:$0xff]
        %v1374 = vld [vmem:[%s1362 + $0x80] sm:$0xff]
        %v1375 = vld [vmem:[%s1362 + $0x90] sm:$0xff]
        %v1376 = vld [vmem:[%s1362 + $0x98] sm:$0xff]
        %v1377 = vld [vmem:[%s1362 + $0xa8] sm:$0xff]
        %v1378 = vld [vmem:[%s1362 + $0xb0] sm:$0xff]
        %v1379 = vld [vmem:[%s1362 + $0xc0] sm:$0xff]
        %v1380 = vld [vmem:[%s1362 + $0xc8] sm:$0xff]
        %v1381 = vld [vmem:[%s1362 + $0xd8] sm:$0xff]
        %v1382 = vld [vmem:[%s1362 + $0xe0] sm:$0xff]
        %v1383 = vld [vmem:[%s1362 + $0xf0] sm:$0xff]
        %v1384 = vld [vmem:[%s1362 + $0xf8] sm:$0xff]
        %v1385 = vld [vmem:[%s1362 + $0x108] sm:$0xff]
        %v1386 = vld [vmem:[%s1362 + $0x110] sm:$0xff]
        %v1387 = vld [vmem:[%s1362 + $0x120] sm:$0xff]
        %v1388 = vld [vmem:[%s1362 + $0x128] sm:$0xff]
        %v1389 = vld [vmem:[%s1362 + $0x138] sm:$0xff]
        %v1390 = vld [vmem:[%s1362 + $0x140] sm:$0xff]
        %v1391 = vld [vmem:[%s1362 + $0x150] sm:$0xff]
        %v1392 = vld [vmem:[%s1362 + $0x158] sm:$0xff]
        %v1393 = vld [vmem:[%s1362 + $0x168] sm:$0xff]
        %v1394 = vld [vmem:[%s1362 + $0x170] sm:$0xff]
        %1427 = vrot.lane.b32.xlu0 %v1363, 24
        %v1428 = vpop.permute.xlu0 %1427
        %1429 = vrot.lane.b32.xlu0 %v1364, 24
        %v1430 = vpop.permute.xlu0 %1429
        %1431 = vrot.lane.b32.xlu0 %v1365, 24
        %v1432 = vpop.permute.xlu0 %1431
        %1433 = vrot.lane.b32.xlu0 %v1366, 24
        %v1434 = vpop.permute.xlu0 %1433
        %1435 = vrot.lane.b32.xlu0 %v1367, 24
        %v1436 = vpop.permute.xlu0 %1435
        %1437 = vrot.lane.b32.xlu0 %v1368, 24
        %v1438 = vpop.permute.xlu0 %1437
        %1439 = vrot.lane.b32.xlu0 %v1369, 24
        %v1440 = vpop.permute.xlu0 %1439
        %1441 = vrot.lane.b32.xlu0 %v1370, 24
        %v1442 = vpop.permute.xlu0 %1441
        %1443 = vrot.lane.b32.xlu0 %v1371, 24
        %v1444 = vpop.permute.xlu0 %1443
        %1445 = vrot.lane.b32.xlu0 %v1372, 24
        %v1446 = vpop.permute.xlu0 %1445
        %1447 = vrot.lane.b32.xlu0 %v1373, 24
        %v1448 = vpop.permute.xlu0 %1447
        %1449 = vrot.lane.b32.xlu0 %v1374, 24
        %v1450 = vpop.permute.xlu0 %1449
        %1451 = vrot.lane.b32.xlu0 %v1375, 24
        %v1452 = vpop.permute.xlu0 %1451
        %1453 = vrot.lane.b32.xlu0 %v1376, 24
        %v1454 = vpop.permute.xlu0 %1453
        %1455 = vrot.lane.b32.xlu0 %v1377, 24
        %v1456 = vpop.permute.xlu0 %1455
        %1457 = vrot.lane.b32.xlu0 %v1378, 24
        %v1458 = vpop.permute.xlu0 %1457
        %1459 = vrot.lane.b32.xlu0 %v1379, 24
        %v1460 = vpop.permute.xlu0 %1459
        %1461 = vrot.lane.b32.xlu0 %v1380, 24
        %v1462 = vpop.permute.xlu0 %1461
        %1463 = vrot.lane.b32.xlu0 %v1381, 24
        %v1464 = vpop.permute.xlu0 %1463
        %1465 = vrot.lane.b32.xlu0 %v1382, 24
        %v1466 = vpop.permute.xlu0 %1465
        %1467 = vrot.lane.b32.xlu0 %v1383, 24
        %v1468 = vpop.permute.xlu0 %1467
        %1469 = vrot.lane.b32.xlu0 %v1384, 24
        %v1470 = vpop.permute.xlu0 %1469
        %1471 = vrot.lane.b32.xlu0 %v1385, 24
        %v1472 = vpop.permute.xlu0 %1471
        %1473 = vrot.lane.b32.xlu0 %v1386, 24
        %v1474 = vpop.permute.xlu0 %1473
        %1475 = vrot.lane.b32.xlu0 %v1387, 24
        %v1476 = vpop.permute.xlu0 %1475
        %1477 = vrot.lane.b32.xlu0 %v1388, 24
        %v1478 = vpop.permute.xlu0 %1477
        %1479 = vrot.lane.b32.xlu0 %v1389, 24
        %v1480 = vpop.permute.xlu0 %1479
        %1481 = vrot.lane.b32.xlu0 %v1390, 24
        %v1482 = vpop.permute.xlu0 %1481
        %1483 = vrot.lane.b32.xlu0 %v1391, 24
        %v1484 = vpop.permute.xlu0 %1483
        %1485 = vrot.lane.b32.xlu0 %v1392, 24
        %v1486 = vpop.permute.xlu0 %1485
        %1487 = vrot.lane.b32.xlu0 %v1393, 24
        %v1488 = vpop.permute.xlu0 %1487
        %1489 = vrot.lane.b32.xlu0 %v1394, 24
        %v1490 = vpop.permute.xlu0 %1489
        %vm1523 = vcmask 228544
        %1524 = vst.msk [vmem:[#allocation3] sm:$0xff] %vm1523, %v1428
        %1525 = vst.msk [vmem:[#allocation3 + $0x8] sm:$0xff] %vm1523, %v1430
        %1526 = vst.msk [vmem:[#allocation3 + $0x10] sm:$0xff] %vm1523, %v1432
        %1527 = vst.msk [vmem:[#allocation3 + $0x18] sm:$0xff] %vm1523, %v1434
        %1528 = vst.msk [vmem:[#allocation3 + $0x20] sm:$0xff] %vm1523, %v1436
        %1529 = vst.msk [vmem:[#allocation3 + $0x28] sm:$0xff] %vm1523, %v1438
        %1530 = vst.msk [vmem:[#allocation3 + $0x30] sm:$0xff] %vm1523, %v1440
        %1531 = vst.msk [vmem:[#allocation3 + $0x38] sm:$0xff] %vm1523, %v1442
        %1532 = vst.msk [vmem:[#allocation3 + $0x40] sm:$0xff] %vm1523, %v1444
        %1533 = vst.msk [vmem:[#allocation3 + $0x48] sm:$0xff] %vm1523, %v1446
        %1534 = vst.msk [vmem:[#allocation3 + $0x50] sm:$0xff] %vm1523, %v1448
        %1535 = vst.msk [vmem:[#allocation3 + $0x58] sm:$0xff] %vm1523, %v1450
        %1536 = vst.msk [vmem:[#allocation3 + $0x60] sm:$0xff] %vm1523, %v1452
        %1537 = vst.msk [vmem:[#allocation3 + $0x68] sm:$0xff] %vm1523, %v1454
        %1538 = vst.msk [vmem:[#allocation3 + $0x70] sm:$0xff] %vm1523, %v1456
        %1539 = vst.msk [vmem:[#allocation3 + $0x78] sm:$0xff] %vm1523, %v1458
        %1540 = vst.msk [vmem:[#allocation3 + $0x80] sm:$0xff] %vm1523, %v1460
        %1541 = vst.msk [vmem:[#allocation3 + $0x88] sm:$0xff] %vm1523, %v1462
        %1542 = vst.msk [vmem:[#allocation3 + $0x90] sm:$0xff] %vm1523, %v1464
        %1543 = vst.msk [vmem:[#allocation3 + $0x98] sm:$0xff] %vm1523, %v1466
        %1544 = vst.msk [vmem:[#allocation3 + $0xa0] sm:$0xff] %vm1523, %v1468
        %1545 = vst.msk [vmem:[#allocation3 + $0xa8] sm:$0xff] %vm1523, %v1470
        %1546 = vst.msk [vmem:[#allocation3 + $0xb0] sm:$0xff] %vm1523, %v1472
        %1547 = vst.msk [vmem:[#allocation3 + $0xb8] sm:$0xff] %vm1523, %v1474
        %1548 = vst.msk [vmem:[#allocation3 + $0xc0] sm:$0xff] %vm1523, %v1476
        %1549 = vst.msk [vmem:[#allocation3 + $0xc8] sm:$0xff] %vm1523, %v1478
        %1550 = vst.msk [vmem:[#allocation3 + $0xd0] sm:$0xff] %vm1523, %v1480
        %1551 = vst.msk [vmem:[#allocation3 + $0xd8] sm:$0xff] %vm1523, %v1482
        %1552 = vst.msk [vmem:[#allocation3 + $0xe0] sm:$0xff] %vm1523, %v1484
        %1553 = vst.msk [vmem:[#allocation3 + $0xe8] sm:$0xff] %vm1523, %v1486
        %1554 = vst.msk [vmem:[#allocation3 + $0xf0] sm:$0xff] %vm1523, %v1488
        %1555 = vst.msk [vmem:[#allocation3 + $0xf8] sm:$0xff] %vm1523, %v1490
        %v1556 = vld [vmem:[%s1362 + $0x1] sm:$0xff]
        %v1557 = vld [vmem:[%s1362 + $0x9] sm:$0xff]
        %v1558 = vld [vmem:[%s1362 + $0x19] sm:$0xff]
        %v1559 = vld [vmem:[%s1362 + $0x21] sm:$0xff]
        %v1560 = vld [vmem:[%s1362 + $0x31] sm:$0xff]
        %v1561 = vld [vmem:[%s1362 + $0x39] sm:$0xff]
        %v1562 = vld [vmem:[%s1362 + $0x49] sm:$0xff]
        %v1563 = vld [vmem:[%s1362 + $0x51] sm:$0xff]
        %v1564 = vld [vmem:[%s1362 + $0x61] sm:$0xff]
        %v1565 = vld [vmem:[%s1362 + $0x69] sm:$0xff]
        %v1566 = vld [vmem:[%s1362 + $0x79] sm:$0xff]
        %v1567 = vld [vmem:[%s1362 + $0x81] sm:$0xff]
        %v1568 = vld [vmem:[%s1362 + $0x91] sm:$0xff]
        %v1569 = vld [vmem:[%s1362 + $0x99] sm:$0xff]
        %v1570 = vld [vmem:[%s1362 + $0xa9] sm:$0xff]
        %v1571 = vld [vmem:[%s1362 + $0xb1] sm:$0xff]
        %v1572 = vld [vmem:[%s1362 + $0xc1] sm:$0xff]
        %v1573 = vld [vmem:[%s1362 + $0xc9] sm:$0xff]
        %v1574 = vld [vmem:[%s1362 + $0xd9] sm:$0xff]
        %v1575 = vld [vmem:[%s1362 + $0xe1] sm:$0xff]
        %v1576 = vld [vmem:[%s1362 + $0xf1] sm:$0xff]
        %v1577 = vld [vmem:[%s1362 + $0xf9] sm:$0xff]
        %v1578 = vld [vmem:[%s1362 + $0x109] sm:$0xff]
        %v1579 = vld [vmem:[%s1362 + $0x111] sm:$0xff]
        %v1580 = vld [vmem:[%s1362 + $0x121] sm:$0xff]
        %v1581 = vld [vmem:[%s1362 + $0x129] sm:$0xff]
        %v1582 = vld [vmem:[%s1362 + $0x139] sm:$0xff]
        %v1583 = vld [vmem:[%s1362 + $0x141] sm:$0xff]
        %v1584 = vld [vmem:[%s1362 + $0x151] sm:$0xff]
        %v1585 = vld [vmem:[%s1362 + $0x159] sm:$0xff]
        %v1586 = vld [vmem:[%s1362 + $0x169] sm:$0xff]
        %v1587 = vld [vmem:[%s1362 + $0x171] sm:$0xff]
        %1620 = vrot.lane.b32.xlu0 %v1556, 28
        %v1621 = vpop.permute.xlu0 %1620
        %1622 = vrot.lane.b32.xlu0 %v1557, 28
        %v1623 = vpop.permute.xlu0 %1622
        %1624 = vrot.lane.b32.xlu0 %v1558, 28
        %v1625 = vpop.permute.xlu0 %1624
        %1626 = vrot.lane.b32.xlu0 %v1559, 28
        %v1627 = vpop.permute.xlu0 %1626
        %1628 = vrot.lane.b32.xlu0 %v1560, 28
        %v1629 = vpop.permute.xlu0 %1628
        %1630 = vrot.lane.b32.xlu0 %v1561, 28
        %v1631 = vpop.permute.xlu0 %1630
        %1632 = vrot.lane.b32.xlu0 %v1562, 28
        %v1633 = vpop.permute.xlu0 %1632
        %1634 = vrot.lane.b32.xlu0 %v1563, 28
        %v1635 = vpop.permute.xlu0 %1634
        %1636 = vrot.lane.b32.xlu0 %v1564, 28
        %v1637 = vpop.permute.xlu0 %1636
        %1638 = vrot.lane.b32.xlu0 %v1565, 28
        %v1639 = vpop.permute.xlu0 %1638
        %1640 = vrot.lane.b32.xlu0 %v1566, 28
        %v1641 = vpop.permute.xlu0 %1640
        %1642 = vrot.lane.b32.xlu0 %v1567, 28
        %v1643 = vpop.permute.xlu0 %1642
        %1644 = vrot.lane.b32.xlu0 %v1568, 28
        %v1645 = vpop.permute.xlu0 %1644
        %1646 = vrot.lane.b32.xlu0 %v1569, 28
        %v1647 = vpop.permute.xlu0 %1646
        %1648 = vrot.lane.b32.xlu0 %v1570, 28
        %v1649 = vpop.permute.xlu0 %1648
        %1650 = vrot.lane.b32.xlu0 %v1571, 28
        %v1651 = vpop.permute.xlu0 %1650
        %1652 = vrot.lane.b32.xlu0 %v1572, 28
        %v1653 = vpop.permute.xlu0 %1652
        %1654 = vrot.lane.b32.xlu0 %v1573, 28
        %v1655 = vpop.permute.xlu0 %1654
        %1656 = vrot.lane.b32.xlu0 %v1574, 28
        %v1657 = vpop.permute.xlu0 %1656
        %1658 = vrot.lane.b32.xlu0 %v1575, 28
        %v1659 = vpop.permute.xlu0 %1658
        %1660 = vrot.lane.b32.xlu0 %v1576, 28
        %v1661 = vpop.permute.xlu0 %1660
        %1662 = vrot.lane.b32.xlu0 %v1577, 28
        %v1663 = vpop.permute.xlu0 %1662
        %1664 = vrot.lane.b32.xlu0 %v1578, 28
        %v1665 = vpop.permute.xlu0 %1664
        %1666 = vrot.lane.b32.xlu0 %v1579, 28
        %v1667 = vpop.permute.xlu0 %1666
        %1668 = vrot.lane.b32.xlu0 %v1580, 28
        %v1669 = vpop.permute.xlu0 %1668
        %1670 = vrot.lane.b32.xlu0 %v1581, 28
        %v1671 = vpop.permute.xlu0 %1670
        %1672 = vrot.lane.b32.xlu0 %v1582, 28
        %v1673 = vpop.permute.xlu0 %1672
        %1674 = vrot.lane.b32.xlu0 %v1583, 28
        %v1675 = vpop.permute.xlu0 %1674
        %1676 = vrot.lane.b32.xlu0 %v1584, 28
        %v1677 = vpop.permute.xlu0 %1676
        %1678 = vrot.lane.b32.xlu0 %v1585, 28
        %v1679 = vpop.permute.xlu0 %1678
        %1680 = vrot.lane.b32.xlu0 %v1586, 28
        %v1681 = vpop.permute.xlu0 %1680
        %1682 = vrot.lane.b32.xlu0 %v1587, 28
        %v1683 = vpop.permute.xlu0 %1682
        %vm1716 = vcmask 261344
        %1717 = vst.msk [vmem:[#allocation3] sm:$0xff] %vm1716, %v1621
        %1718 = vst.msk [vmem:[#allocation3 + $0x8] sm:$0xff] %vm1716, %v1623
        %1719 = vst.msk [vmem:[#allocation3 + $0x10] sm:$0xff] %vm1716, %v1625
        %1720 = vst.msk [vmem:[#allocation3 + $0x18] sm:$0xff] %vm1716, %v1627
        %1721 = vst.msk [vmem:[#allocation3 + $0x20] sm:$0xff] %vm1716, %v1629
        %1722 = vst.msk [vmem:[#allocation3 + $0x28] sm:$0xff] %vm1716, %v1631
        %1723 = vst.msk [vmem:[#allocation3 + $0x30] sm:$0xff] %vm1716, %v1633
        %1724 = vst.msk [vmem:[#allocation3 + $0x38] sm:$0xff] %vm1716, %v1635
        %1725 = vst.msk [vmem:[#allocation3 + $0x40] sm:$0xff] %vm1716, %v1637
        %1726 = vst.msk [vmem:[#allocation3 + $0x48] sm:$0xff] %vm1716, %v1639
        %1727 = vst.msk [vmem:[#allocation3 + $0x50] sm:$0xff] %vm1716, %v1641
        %1728 = vst.msk [vmem:[#allocation3 + $0x58] sm:$0xff] %vm1716, %v1643
        %1729 = vst.msk [vmem:[#allocation3 + $0x60] sm:$0xff] %vm1716, %v1645
        %1730 = vst.msk [vmem:[#allocation3 + $0x68] sm:$0xff] %vm1716, %v1647
        %1731 = vst.msk [vmem:[#allocation3 + $0x70] sm:$0xff] %vm1716, %v1649
        %1732 = vst.msk [vmem:[#allocation3 + $0x78] sm:$0xff] %vm1716, %v1651
        %1733 = vst.msk [vmem:[#allocation3 + $0x80] sm:$0xff] %vm1716, %v1653
        %1734 = vst.msk [vmem:[#allocation3 + $0x88] sm:$0xff] %vm1716, %v1655
        %1735 = vst.msk [vmem:[#allocation3 + $0x90] sm:$0xff] %vm1716, %v1657
        %1736 = vst.msk [vmem:[#allocation3 + $0x98] sm:$0xff] %vm1716, %v1659
        %1737 = vst.msk [vmem:[#allocation3 + $0xa0] sm:$0xff] %vm1716, %v1661
        %1738 = vst.msk [vmem:[#allocation3 + $0xa8] sm:$0xff] %vm1716, %v1663
        %1739 = vst.msk [vmem:[#allocation3 + $0xb0] sm:$0xff] %vm1716, %v1665
        %1740 = vst.msk [vmem:[#allocation3 + $0xb8] sm:$0xff] %vm1716, %v1667
        %1741 = vst.msk [vmem:[#allocation3 + $0xc0] sm:$0xff] %vm1716, %v1669
        %1742 = vst.msk [vmem:[#allocation3 + $0xc8] sm:$0xff] %vm1716, %v1671
        %1743 = vst.msk [vmem:[#allocation3 + $0xd0] sm:$0xff] %vm1716, %v1673
        %1744 = vst.msk [vmem:[#allocation3 + $0xd8] sm:$0xff] %vm1716, %v1675
        %1745 = vst.msk [vmem:[#allocation3 + $0xe0] sm:$0xff] %vm1716, %v1677
        %1746 = vst.msk [vmem:[#allocation3 + $0xe8] sm:$0xff] %vm1716, %v1679
        %1747 = vst.msk [vmem:[#allocation3 + $0xf0] sm:$0xff] %vm1716, %v1681
        %1748 = vst.msk [vmem:[#allocation3 + $0xf8] sm:$0xff] %vm1716, %v1683
        %v1749 = vld [vmem:[%s1362 + $0x2] sm:$0xff]
        %v1750 = vld [vmem:[%s1362 + $0xa] sm:$0xff]
        %v1751 = vld [vmem:[%s1362 + $0x1a] sm:$0xff]
        %v1752 = vld [vmem:[%s1362 + $0x22] sm:$0xff]
        %v1753 = vld [vmem:[%s1362 + $0x32] sm:$0xff]
        %v1754 = vld [vmem:[%s1362 + $0x3a] sm:$0xff]
        %v1755 = vld [vmem:[%s1362 + $0x4a] sm:$0xff]
        %v1756 = vld [vmem:[%s1362 + $0x52] sm:$0xff]
        %v1757 = vld [vmem:[%s1362 + $0x62] sm:$0xff]
        %v1758 = vld [vmem:[%s1362 + $0x6a] sm:$0xff]
        %v1759 = vld [vmem:[%s1362 + $0x7a] sm:$0xff]
        %v1760 = vld [vmem:[%s1362 + $0x82] sm:$0xff]
        %v1761 = vld [vmem:[%s1362 + $0x92] sm:$0xff]
        %v1762 = vld [vmem:[%s1362 + $0x9a] sm:$0xff]
        %v1763 = vld [vmem:[%s1362 + $0xaa] sm:$0xff]
        %v1764 = vld [vmem:[%s1362 + $0xb2] sm:$0xff]
        %v1765 = vld [vmem:[%s1362 + $0xc2] sm:$0xff]
        %v1766 = vld [vmem:[%s1362 + $0xca] sm:$0xff]
        %v1767 = vld [vmem:[%s1362 + $0xda] sm:$0xff]
        %v1768 = vld [vmem:[%s1362 + $0xe2] sm:$0xff]
        %v1769 = vld [vmem:[%s1362 + $0xf2] sm:$0xff]
        %v1770 = vld [vmem:[%s1362 + $0xfa] sm:$0xff]
        %v1771 = vld [vmem:[%s1362 + $0x10a] sm:$0xff]
        %v1772 = vld [vmem:[%s1362 + $0x112] sm:$0xff]
        %v1773 = vld [vmem:[%s1362 + $0x122] sm:$0xff]
        %v1774 = vld [vmem:[%s1362 + $0x12a] sm:$0xff]
        %v1775 = vld [vmem:[%s1362 + $0x13a] sm:$0xff]
        %v1776 = vld [vmem:[%s1362 + $0x142] sm:$0xff]
        %v1777 = vld [vmem:[%s1362 + $0x152] sm:$0xff]
        %v1778 = vld [vmem:[%s1362 + $0x15a] sm:$0xff]
        %v1779 = vld [vmem:[%s1362 + $0x16a] sm:$0xff]
        %v1780 = vld [vmem:[%s1362 + $0x172] sm:$0xff]
        %1813 = vrot.lane.b32.xlu0 %v1749, 32
        %v1814 = vpop.permute.xlu0 %1813
        %1815 = vrot.lane.b32.xlu0 %v1750, 32
        %v1816 = vpop.permute.xlu0 %1815
        %1817 = vrot.lane.b32.xlu0 %v1751, 32
        %v1818 = vpop.permute.xlu0 %1817
        %1819 = vrot.lane.b32.xlu0 %v1752, 32
        %v1820 = vpop.permute.xlu0 %1819
        %1821 = vrot.lane.b32.xlu0 %v1753, 32
        %v1822 = vpop.permute.xlu0 %1821
        %1823 = vrot.lane.b32.xlu0 %v1754, 32
        %v1824 = vpop.permute.xlu0 %1823
        %1825 = vrot.lane.b32.xlu0 %v1755, 32
        %v1826 = vpop.permute.xlu0 %1825
        %1827 = vrot.lane.b32.xlu0 %v1756, 32
        %v1828 = vpop.permute.xlu0 %1827
        %1829 = vrot.lane.b32.xlu0 %v1757, 32
        %v1830 = vpop.permute.xlu0 %1829
        %1831 = vrot.lane.b32.xlu0 %v1758, 32
        %v1832 = vpop.permute.xlu0 %1831
        %1833 = vrot.lane.b32.xlu0 %v1759, 32
        %v1834 = vpop.permute.xlu0 %1833
        %1835 = vrot.lane.b32.xlu0 %v1760, 32
        %v1836 = vpop.permute.xlu0 %1835
        %1837 = vrot.lane.b32.xlu0 %v1761, 32
        %v1838 = vpop.permute.xlu0 %1837
        %1839 = vrot.lane.b32.xlu0 %v1762, 32
        %v1840 = vpop.permute.xlu0 %1839
        %1841 = vrot.lane.b32.xlu0 %v1763, 32
        %v1842 = vpop.permute.xlu0 %1841
        %1843 = vrot.lane.b32.xlu0 %v1764, 32
        %v1844 = vpop.permute.xlu0 %1843
        %1845 = vrot.lane.b32.xlu0 %v1765, 32
        %v1846 = vpop.permute.xlu0 %1845
        %1847 = vrot.lane.b32.xlu0 %v1766, 32
        %v1848 = vpop.permute.xlu0 %1847
        %1849 = vrot.lane.b32.xlu0 %v1767, 32
        %v1850 = vpop.permute.xlu0 %1849
        %1851 = vrot.lane.b32.xlu0 %v1768, 32
        %v1852 = vpop.permute.xlu0 %1851
        %1853 = vrot.lane.b32.xlu0 %v1769, 32
        %v1854 = vpop.permute.xlu0 %1853
        %1855 = vrot.lane.b32.xlu0 %v1770, 32
        %v1856 = vpop.permute.xlu0 %1855
        %1857 = vrot.lane.b32.xlu0 %v1771, 32
        %v1858 = vpop.permute.xlu0 %1857
        %1859 = vrot.lane.b32.xlu0 %v1772, 32
        %v1860 = vpop.permute.xlu0 %1859
        %1861 = vrot.lane.b32.xlu0 %v1773, 32
        %v1862 = vpop.permute.xlu0 %1861
        %1863 = vrot.lane.b32.xlu0 %v1774, 32
        %v1864 = vpop.permute.xlu0 %1863
        %1865 = vrot.lane.b32.xlu0 %v1775, 32
        %v1866 = vpop.permute.xlu0 %1865
        %1867 = vrot.lane.b32.xlu0 %v1776, 32
        %v1868 = vpop.permute.xlu0 %1867
        %1869 = vrot.lane.b32.xlu0 %v1777, 32
        %v1870 = vpop.permute.xlu0 %1869
        %1871 = vrot.lane.b32.xlu0 %v1778, 32
        %v1872 = vpop.permute.xlu0 %1871
        %1873 = vrot.lane.b32.xlu0 %v1779, 32
        %v1874 = vpop.permute.xlu0 %1873
        %1875 = vrot.lane.b32.xlu0 %v1780, 32
        %v1876 = vpop.permute.xlu0 %1875
        %vm1909 = vcmask 294144
        %1910 = vst.msk [vmem:[#allocation3] sm:$0xff] %vm1909, %v1814
        %1911 = vst.msk [vmem:[#allocation3 + $0x8] sm:$0xff] %vm1909, %v1816
        %1912 = vst.msk [vmem:[#allocation3 + $0x10] sm:$0xff] %vm1909, %v1818
        %1913 = vst.msk [vmem:[#allocation3 + $0x18] sm:$0xff] %vm1909, %v1820
        %1914 = vst.msk [vmem:[#allocation3 + $0x20] sm:$0xff] %vm1909, %v1822
        %1915 = vst.msk [vmem:[#allocation3 + $0x28] sm:$0xff] %vm1909, %v1824
        %1916 = vst.msk [vmem:[#allocation3 + $0x30] sm:$0xff] %vm1909, %v1826
        %1917 = vst.msk [vmem:[#allocation3 + $0x38] sm:$0xff] %vm1909, %v1828
        %1918 = vst.msk [vmem:[#allocation3 + $0x40] sm:$0xff] %vm1909, %v1830
        %1919 = vst.msk [vmem:[#allocation3 + $0x48] sm:$0xff] %vm1909, %v1832
        %1920 = vst.msk [vmem:[#allocation3 + $0x50] sm:$0xff] %vm1909, %v1834
        %1921 = vst.msk [vmem:[#allocation3 + $0x58] sm:$0xff] %vm1909, %v1836
        %1922 = vst.msk [vmem:[#allocation3 + $0x60] sm:$0xff] %vm1909, %v1838
        %1923 = vst.msk [vmem:[#allocation3 + $0x68] sm:$0xff] %vm1909, %v1840
        %1924 = vst.msk [vmem:[#allocation3 + $0x70] sm:$0xff] %vm1909, %v1842
        %1925 = vst.msk [vmem:[#allocation3 + $0x78] sm:$0xff] %vm1909, %v1844
        %1926 = vst.msk [vmem:[#allocation3 + $0x80] sm:$0xff] %vm1909, %v1846
        %1927 = vst.msk [vmem:[#allocation3 + $0x88] sm:$0xff] %vm1909, %v1848
        %1928 = vst.msk [vmem:[#allocation3 + $0x90] sm:$0xff] %vm1909, %v1850
        %1929 = vst.msk [vmem:[#allocation3 + $0x98] sm:$0xff] %vm1909, %v1852
        %1930 = vst.msk [vmem:[#allocation3 + $0xa0] sm:$0xff] %vm1909, %v1854
        %1931 = vst.msk [vmem:[#allocation3 + $0xa8] sm:$0xff] %vm1909, %v1856
        %1932 = vst.msk [vmem:[#allocation3 + $0xb0] sm:$0xff] %vm1909, %v1858
        %1933 = vst.msk [vmem:[#allocation3 + $0xb8] sm:$0xff] %vm1909, %v1860
        %1934 = vst.msk [vmem:[#allocation3 + $0xc0] sm:$0xff] %vm1909, %v1862
        %1935 = vst.msk [vmem:[#allocation3 + $0xc8] sm:$0xff] %vm1909, %v1864
        %1936 = vst.msk [vmem:[#allocation3 + $0xd0] sm:$0xff] %vm1909, %v1866
        %1937 = vst.msk [vmem:[#allocation3 + $0xd8] sm:$0xff] %vm1909, %v1868
        %1938 = vst.msk [vmem:[#allocation3 + $0xe0] sm:$0xff] %vm1909, %v1870
        %1939 = vst.msk [vmem:[#allocation3 + $0xe8] sm:$0xff] %vm1909, %v1872
        %1940 = vst.msk [vmem:[#allocation3 + $0xf0] sm:$0xff] %vm1909, %v1874
        %1941 = vst.msk [vmem:[#allocation3 + $0xf8] sm:$0xff] %vm1909, %v1876
        %v1942 = vld [vmem:[#allocation3] sm:$0xff]
        %v1943 = vld [vmem:[#allocation3 + $0x8] sm:$0xff]
        %v1944 = vld [vmem:[#allocation3 + $0x10] sm:$0xff]
        %v1945 = vld [vmem:[#allocation3 + $0x18] sm:$0xff]
        %v1946 = vld [vmem:[#allocation3 + $0x20] sm:$0xff]
        %v1947 = vld [vmem:[#allocation3 + $0x28] sm:$0xff]
        %v1948 = vld [vmem:[#allocation3 + $0x30] sm:$0xff]
        %v1949 = vld [vmem:[#allocation3 + $0x38] sm:$0xff]
        %v1950 = vld [vmem:[#allocation3 + $0x40] sm:$0xff]
        %v1951 = vld [vmem:[#allocation3 + $0x48] sm:$0xff]
        %v1952 = vld [vmem:[#allocation3 + $0x50] sm:$0xff]
        %v1953 = vld [vmem:[#allocation3 + $0x58] sm:$0xff]
        %v1954 = vld [vmem:[#allocation3 + $0x60] sm:$0xff]
        %v1955 = vld [vmem:[#allocation3 + $0x68] sm:$0xff]
        %v1956 = vld [vmem:[#allocation3 + $0x70] sm:$0xff]
        %v1957 = vld [vmem:[#allocation3 + $0x78] sm:$0xff]
        %v1958 = vld [vmem:[#allocation3 + $0x80] sm:$0xff]
        %v1959 = vld [vmem:[#allocation3 + $0x88] sm:$0xff]
        %v1960 = vld [vmem:[#allocation3 + $0x90] sm:$0xff]
        %v1961 = vld [vmem:[#allocation3 + $0x98] sm:$0xff]
        %v1962 = vld [vmem:[#allocation3 + $0xa0] sm:$0xff]
        %v1963 = vld [vmem:[#allocation3 + $0xa8] sm:$0xff]
        %v1964 = vld [vmem:[#allocation3 + $0xb0] sm:$0xff]
        %v1965 = vld [vmem:[#allocation3 + $0xb8] sm:$0xff]
        %v1966 = vld [vmem:[#allocation3 + $0xc0] sm:$0xff]
        %v1967 = vld [vmem:[#allocation3 + $0xc8] sm:$0xff]
        %v1968 = vld [vmem:[#allocation3 + $0xd0] sm:$0xff]
        %v1969 = vld [vmem:[#allocation3 + $0xd8] sm:$0xff]
        %v1970 = vld [vmem:[#allocation3 + $0xe0] sm:$0xff]
        %v1971 = vld [vmem:[#allocation3 + $0xe8] sm:$0xff]
        %v1972 = vld [vmem:[#allocation3 + $0xf0] sm:$0xff]
        %v1973 = vld [vmem:[#allocation3 + $0xf8] sm:$0xff]
        %v1974 = vld [vmem:[%s1] sm:$0xff]
        %v1975 = vld [vmem:[%s1 + $0x8] sm:$0xff]
        %v1976 = vld [vmem:[%s1 + $0x10] sm:$0xff]
        %v1977 = vld [vmem:[%s1 + $0x18] sm:$0xff]
        %v1978 = vld [vmem:[%s1 + $0x20] sm:$0xf]
        %v1979 = vld [vmem:[%s2] sm:$0x1]
        %v1981 = vlaneseq
        %v1982 = vshrl.u32 %v1981, 7
        %v1983 = vsub.s32 0, %v1982
        %v1984 = vrot.slane %v1979, %v1983
        %vm1986 = vcmask 293888
        %v1988 = vsel %vm1986, %v1942, 0
        %v1991 = vsel %vm1986, %v1943, 0
        %v1994 = vsel %vm1986, %v1944, 0
        %v1997 = vsel %vm1986, %v1945, 0
        %v2000 = vsel %vm1986, %v1946, 0
        %v2003 = vsel %vm1986, %v1947, 0
        %v2006 = vsel %vm1986, %v1948, 0
        %v2009 = vsel %vm1986, %v1949, 0
        %v2012 = vsel %vm1986, %v1950, 0
        %v2015 = vsel %vm1986, %v1951, 0
        %v2018 = vsel %vm1986, %v1952, 0
        %v2021 = vsel %vm1986, %v1953, 0
        %v2024 = vsel %vm1986, %v1954, 0
        %v2027 = vsel %vm1986, %v1955, 0
        %v2030 = vsel %vm1986, %v1956, 0
        %v2033 = vsel %vm1986, %v1957, 0
        %v2036 = vsel %vm1986, %v1958, 0
        %v2039 = vsel %vm1986, %v1959, 0
        %v2042 = vsel %vm1986, %v1960, 0
        %v2045 = vsel %vm1986, %v1961, 0
        %v2048 = vsel %vm1986, %v1962, 0
        %v2051 = vsel %vm1986, %v1963, 0
        %v2054 = vsel %vm1986, %v1964, 0
        %v2057 = vsel %vm1986, %v1965, 0
        %v2060 = vsel %vm1986, %v1966, 0
        %v2063 = vsel %vm1986, %v1967, 0
        %v2066 = vsel %vm1986, %v1968, 0
        %v2069 = vsel %vm1986, %v1969, 0
        %v2072 = vsel %vm1986, %v1970, 0
        %v2075 = vsel %vm1986, %v1971, 0
        %v2078 = vsel %vm1986, %v1972, 0
        %v2081 = vsel %vm1986, %v1973, 0
        %vm2083 = vcmask 1043456
        %v2085 = vsel %vm2083, %v1978, 0
        %2087 = vmatprep.subr.mxu0 0.0
        %2088 = vmatpush1.msra.mxu0 0.0
        %2089 = vmatprep.subr.mxu0 0.0
        %2090 = vmatpush1.msra.mxu0 0.0
        %2091 = vmatprep.subr.mxu0 0.0
        %2092 = vmatpush1.msra.mxu0 0.0
        %2093 = vmatprep.subr.mxu0 0.0
        %2094 = vmatpush1.msra.mxu0 0.0
        %2095 = vmatprep.subr.mxu0 0.0
        %2096 = vmatpush1.msra.mxu0 0.0
        %2097 = vmatprep.subr.mxu0 0.0
        %2098 = vmatpush1.msra.mxu0 0.0
        %2099 = vmatprep.subr.mxu0 0.0
        %2100 = vmatpush1.msra.mxu0 0.0
        %2101 = vmatprep.subr.mxu0 0.0
        %2102 = vmatpush1.msra.mxu0 0.0
        %2103 = vmatprep.subr.mxu0 0.0
        %2104 = vmatpush1.msra.mxu0 0.0
        %2105 = vmatprep.subr.mxu0 0.0
        %2106 = vmatpush1.msra.mxu0 0.0
        %2107 = vmatprep.subr.mxu0 0.0
        %2108 = vmatpush1.msra.mxu0 0.0
        %2109 = vmatprep.subr.mxu0 0.0
        %2110 = vmatpush1.msra.mxu0 %v2085
        %2111 = vmatprep.subr.mxu0 0.0
        %2112 = vmatpush1.msra.mxu0 %v1977
        %2113 = vmatprep.subr.mxu0 0.0
        %2114 = vmatpush1.msra.mxu0 %v1976
        %2115 = vmatprep.subr.mxu0 0.0
        %2116 = vmatpush1.msra.mxu0 %v1975
        %2117 = vmatprep.subr.mxu0 0.0
        %2118 = vmatpush1.msra.mxu0 %v1974
        %2119 = vmatprep.subr.mxu0 0.0
        %2120 = vmatpush2.msra.mxu0 0.0
        %2121 = vmatprep.subr.mxu0 0.0
        %2122 = vmatpush2.msra.mxu0 0.0
        %2123 = vmatprep.subr.mxu0 0.0
        %2124 = vmatpush2.msra.mxu0 0.0
        %2125 = vmatprep.subr.mxu0 0.0
        %2126 = vmatpush2.msra.mxu0 0.0
        %2127 = vmatprep.subr.mxu0 0.0
        %2128 = vmatpush2.msra.mxu0 0.0
        %2129 = vmatprep.subr.mxu0 0.0
        %2130 = vmatpush2.msra.mxu0 0.0
        %2131 = vmatprep.subr.mxu0 0.0
        %2132 = vmatpush2.msra.mxu0 0.0
        %2133 = vmatprep.subr.mxu0 0.0
        %2134 = vmatpush2.msra.mxu0 0.0
        %2135 = vmatprep.subr.mxu0 0.0
        %2136 = vmatpush2.msra.mxu0 0.0
        %2137 = vmatprep.subr.mxu0 0.0
        %2138 = vmatpush2.msra.mxu0 0.0
        %2139 = vmatprep.subr.mxu0 0.0
        %2140 = vmatpush2.msra.mxu0 0.0
        %2141 = vmatprep.subr.mxu0 0.0
        %2142 = vmatpush2.msra.mxu0 0.0
        %2143 = vmatprep.subr.mxu0 0.0
        %2144 = vmatpush2.msra.mxu0 0.0
        %2145 = vmatprep.subr.mxu0 0.0
        %2146 = vmatpush2.msra.mxu0 0.0
        %2147 = vmatprep.subr.mxu0 0.0
        %2148 = vmatpush2.msra.mxu0 0.0
        %2149 = vmatprep.subr.mxu0 0.0
        %2150 = vmatpush2.msra.mxu0 0.0
        %2151 = vmatprep.mubr.f32.mxu0 0.0
        %2152 = vmatmul.mubr.f32.gmra.mxu0 %v1988
        %v2153 = vpop.f32.mrf.mxu0
        %v2154 = vadd.f32 %v1984, %v2153
        %v2155 = vpop.f32.mrf.mxu0
        %2156 = vmatprep.mubr.f32.mxu0 0.0
        %2157 = vmatmul.mubr.f32.gmra.mxu0 %v1991
        %v2158 = vpop.f32.mrf.mxu0
        %v2159 = vadd.f32 %v1984, %v2158
        %v2160 = vpop.f32.mrf.mxu0
        %2161 = vmatprep.mubr.f32.mxu0 0.0
        %2162 = vmatmul.mubr.f32.gmra.mxu0 %v1994
        %v2163 = vpop.f32.mrf.mxu0
        %v2164 = vadd.f32 %v1984, %v2163
        %v2165 = vpop.f32.mrf.mxu0
        %2166 = vmatprep.mubr.f32.mxu0 0.0
        %2167 = vmatmul.mubr.f32.gmra.mxu0 %v1997
        %v2168 = vpop.f32.mrf.mxu0
        %v2169 = vadd.f32 %v1984, %v2168
        %v2170 = vpop.f32.mrf.mxu0
        %2171 = vmatprep.mubr.f32.mxu0 0.0
        %2172 = vmatmul.mubr.f32.gmra.mxu0 %v2000
        %v2173 = vpop.f32.mrf.mxu0
        %v2174 = vadd.f32 %v1984, %v2173
        %v2175 = vpop.f32.mrf.mxu0
        %2176 = vmatprep.mubr.f32.mxu0 0.0
        %2177 = vmatmul.mubr.f32.gmra.mxu0 %v2003
        %v2178 = vpop.f32.mrf.mxu0
        %v2179 = vadd.f32 %v1984, %v2178
        %v2180 = vpop.f32.mrf.mxu0
        %2181 = vmatprep.mubr.f32.mxu0 0.0
        %2182 = vmatmul.mubr.f32.gmra.mxu0 %v2006
        %v2183 = vpop.f32.mrf.mxu0
        %v2184 = vadd.f32 %v1984, %v2183
        %v2185 = vpop.f32.mrf.mxu0
        %2186 = vmatprep.mubr.f32.mxu0 0.0
        %2187 = vmatmul.mubr.f32.gmra.mxu0 %v2009
        %v2188 = vpop.f32.mrf.mxu0
        %v2189 = vadd.f32 %v1984, %v2188
        %v2190 = vpop.f32.mrf.mxu0
        %2191 = vmatprep.mubr.f32.mxu0 0.0
        %2192 = vmatmul.mubr.f32.gmra.mxu0 %v2012
        %v2193 = vpop.f32.mrf.mxu0
        %v2194 = vadd.f32 %v1984, %v2193
        %v2195 = vpop.f32.mrf.mxu0
        %2196 = vmatprep.mubr.f32.mxu0 0.0
        %2197 = vmatmul.mubr.f32.gmra.mxu0 %v2015
        %v2198 = vpop.f32.mrf.mxu0
        %v2199 = vadd.f32 %v1984, %v2198
        %v2200 = vpop.f32.mrf.mxu0
        %2201 = vmatprep.mubr.f32.mxu0 0.0
        %2202 = vmatmul.mubr.f32.gmra.mxu0 %v2018
        %v2203 = vpop.f32.mrf.mxu0
        %v2204 = vadd.f32 %v1984, %v2203
        %v2205 = vpop.f32.mrf.mxu0
        %2206 = vmatprep.mubr.f32.mxu0 0.0
        %2207 = vmatmul.mubr.f32.gmra.mxu0 %v2021
        %v2208 = vpop.f32.mrf.mxu0
        %v2209 = vadd.f32 %v1984, %v2208
        %v2210 = vpop.f32.mrf.mxu0
        %2211 = vmatprep.mubr.f32.mxu0 0.0
        %2212 = vmatmul.mubr.f32.gmra.mxu0 %v2024
        %v2213 = vpop.f32.mrf.mxu0
        %v2214 = vadd.f32 %v1984, %v2213
        %v2215 = vpop.f32.mrf.mxu0
        %2216 = vmatprep.mubr.f32.mxu0 0.0
        %2217 = vmatmul.mubr.f32.gmra.mxu0 %v2027
        %v2218 = vpop.f32.mrf.mxu0
        %v2219 = vadd.f32 %v1984, %v2218
        %v2220 = vpop.f32.mrf.mxu0
        %2221 = vmatprep.mubr.f32.mxu0 0.0
        %2222 = vmatmul.mubr.f32.gmra.mxu0 %v2030
        %v2223 = vpop.f32.mrf.mxu0
        %v2224 = vadd.f32 %v1984, %v2223
        %v2225 = vpop.f32.mrf.mxu0
        %2226 = vmatprep.mubr.f32.mxu0 0.0
        %2227 = vmatmul.mubr.f32.gmra.mxu0 %v2033
        %v2228 = vpop.f32.mrf.mxu0
        %v2229 = vadd.f32 %v1984, %v2228
        %v2230 = vpop.f32.mrf.mxu0
        %2231 = vmatprep.mubr.f32.mxu0 0.0
        %2232 = vmatmul.mubr.f32.gmra.mxu0 %v2036
        %v2233 = vpop.f32.mrf.mxu0
        %v2234 = vadd.f32 %v1984, %v2233
        %v2235 = vpop.f32.mrf.mxu0
        %2236 = vmatprep.mubr.f32.mxu0 0.0
        %2237 = vmatmul.mubr.f32.gmra.mxu0 %v2039
        %v2238 = vpop.f32.mrf.mxu0
        %v2239 = vadd.f32 %v1984, %v2238
        %v2240 = vpop.f32.mrf.mxu0
        %2241 = vmatprep.mubr.f32.mxu0 0.0
        %2242 = vmatmul.mubr.f32.gmra.mxu0 %v2042
        %v2243 = vpop.f32.mrf.mxu0
        %v2244 = vadd.f32 %v1984, %v2243
        %v2245 = vpop.f32.mrf.mxu0
        %2246 = vmatprep.mubr.f32.mxu0 0.0
        %2247 = vmatmul.mubr.f32.gmra.mxu0 %v2045
        %v2248 = vpop.f32.mrf.mxu0
        %v2249 = vadd.f32 %v1984, %v2248
        %v2250 = vpop.f32.mrf.mxu0
        %2251 = vmatprep.mubr.f32.mxu0 0.0
        %2252 = vmatmul.mubr.f32.gmra.mxu0 %v2048
        %v2253 = vpop.f32.mrf.mxu0
        %v2254 = vadd.f32 %v1984, %v2253
        %v2255 = vpop.f32.mrf.mxu0
        %2256 = vmatprep.mubr.f32.mxu0 0.0
        %2257 = vmatmul.mubr.f32.gmra.mxu0 %v2051
        %v2258 = vpop.f32.mrf.mxu0
        %v2259 = vadd.f32 %v1984, %v2258
        %v2260 = vpop.f32.mrf.mxu0
        %2261 = vmatprep.mubr.f32.mxu0 0.0
        %2262 = vmatmul.mubr.f32.gmra.mxu0 %v2054
        %v2263 = vpop.f32.mrf.mxu0
        %v2264 = vadd.f32 %v1984, %v2263
        %v2265 = vpop.f32.mrf.mxu0
        %2266 = vmatprep.mubr.f32.mxu0 0.0
        %2267 = vmatmul.mubr.f32.gmra.mxu0 %v2057
        %v2268 = vpop.f32.mrf.mxu0
        %v2269 = vadd.f32 %v1984, %v2268
        %v2270 = vpop.f32.mrf.mxu0
        %2271 = vmatprep.mubr.f32.mxu0 0.0
        %2272 = vmatmul.mubr.f32.gmra.mxu0 %v2060
        %v2273 = vpop.f32.mrf.mxu0
        %v2274 = vadd.f32 %v1984, %v2273
        %v2275 = vpop.f32.mrf.mxu0
        %2276 = vmatprep.mubr.f32.mxu0 0.0
        %2277 = vmatmul.mubr.f32.gmra.mxu0 %v2063
        %v2278 = vpop.f32.mrf.mxu0
        %v2279 = vadd.f32 %v1984, %v2278
        %v2280 = vpop.f32.mrf.mxu0
        %2281 = vmatprep.mubr.f32.mxu0 0.0
        %2282 = vmatmul.mubr.f32.gmra.mxu0 %v2066
        %v2283 = vpop.f32.mrf.mxu0
        %v2284 = vadd.f32 %v1984, %v2283
        %v2285 = vpop.f32.mrf.mxu0
        %2286 = vmatprep.mubr.f32.mxu0 0.0
        %2287 = vmatmul.mubr.f32.gmra.mxu0 %v2069
        %v2288 = vpop.f32.mrf.mxu0
        %v2289 = vadd.f32 %v1984, %v2288
        %v2290 = vpop.f32.mrf.mxu0
        %2291 = vmatprep.mubr.f32.mxu0 0.0
        %2292 = vmatmul.mubr.f32.gmra.mxu0 %v2072
        %v2293 = vpop.f32.mrf.mxu0
        %v2294 = vadd.f32 %v1984, %v2293
        %v2295 = vpop.f32.mrf.mxu0
        %2296 = vmatprep.mubr.f32.mxu0 0.0
        %2297 = vmatmul.mubr.f32.gmra.mxu0 %v2075
        %v2298 = vpop.f32.mrf.mxu0
        %v2299 = vadd.f32 %v1984, %v2298
        %v2300 = vpop.f32.mrf.mxu0
        %2301 = vmatprep.mubr.f32.mxu0 0.0
        %2302 = vmatmul.mubr.f32.gmra.mxu0 %v2078
        %v2303 = vpop.f32.mrf.mxu0
        %v2304 = vadd.f32 %v1984, %v2303
        %v2305 = vpop.f32.mrf.mxu0
        %2306 = vmatprep.mubr.f32.mxu0 0.0
        %2307 = vmatmul.mubr.f32.gmra.mxu0 %v2081
        %v2308 = vpop.f32.mrf.mxu0
        %v2309 = vadd.f32 %v1984, %v2308
        %v2310 = vpop.f32.mrf.mxu0
        %2311 = vdwg.mxu0
        %v2312 = vmax.f32 %v2154, 0.0
        %v2313 = vmax.f32 %v2159, 0.0
        %v2314 = vmax.f32 %v2164, 0.0
        %v2315 = vmax.f32 %v2169, 0.0
        %v2316 = vmax.f32 %v2174, 0.0
        %v2317 = vmax.f32 %v2179, 0.0
        %v2318 = vmax.f32 %v2184, 0.0
        %v2319 = vmax.f32 %v2189, 0.0
        %v2320 = vmax.f32 %v2194, 0.0
        %v2321 = vmax.f32 %v2199, 0.0
        %v2322 = vmax.f32 %v2204, 0.0
        %v2323 = vmax.f32 %v2209, 0.0
        %v2324 = vmax.f32 %v2214, 0.0
        %v2325 = vmax.f32 %v2219, 0.0
        %v2326 = vmax.f32 %v2224, 0.0
        %v2327 = vmax.f32 %v2229, 0.0
        %v2328 = vmax.f32 %v2234, 0.0
        %v2329 = vmax.f32 %v2239, 0.0
        %v2330 = vmax.f32 %v2244, 0.0
        %v2331 = vmax.f32 %v2249, 0.0
        %v2332 = vmax.f32 %v2254, 0.0
        %v2333 = vmax.f32 %v2259, 0.0
        %v2334 = vmax.f32 %v2264, 0.0
        %v2335 = vmax.f32 %v2269, 0.0
        %v2336 = vmax.f32 %v2274, 0.0
        %v2337 = vmax.f32 %v2279, 0.0
        %v2338 = vmax.f32 %v2284, 0.0
        %v2339 = vmax.f32 %v2289, 0.0
        %v2340 = vmax.f32 %v2294, 0.0
        %v2341 = vmax.f32 %v2299, 0.0
        %v2342 = vmax.f32 %v2304, 0.0
        %v2343 = vmax.f32 %v2309, 0.0
        %vm2344 = vcmask 130048
        %v2345 = vsel %vm2344, %v2312, -inf
        %v2346 = vsel %vm2344, %v2314, -inf
        %v2347 = vmax.f32 %v2345, %v2346
        %v2348 = vsel %vm2344, %v2313, -inf
        %v2349 = vsel %vm2344, %v2315, -inf
        %v2350 = vmax.f32 %v2348, %v2349
        %v2351 = vsel %vm2344, %v2316, -inf
        %v2352 = vsel %vm2344, %v2318, -inf
        %v2353 = vmax.f32 %v2351, %v2352
        %v2354 = vsel %vm2344, %v2317, -inf
        %v2355 = vsel %vm2344, %v2319, -inf
        %v2356 = vmax.f32 %v2354, %v2355
        %v2357 = vsel %vm2344, %v2320, -inf
        %v2358 = vsel %vm2344, %v2322, -inf
        %v2359 = vmax.f32 %v2357, %v2358
        %v2360 = vsel %vm2344, %v2321, -inf
        %v2361 = vsel %vm2344, %v2323, -inf
        %v2362 = vmax.f32 %v2360, %v2361
        %v2363 = vsel %vm2344, %v2324, -inf
        %v2364 = vsel %vm2344, %v2326, -inf
        %v2365 = vmax.f32 %v2363, %v2364
        %v2366 = vsel %vm2344, %v2325, -inf
        %v2367 = vsel %vm2344, %v2327, -inf
        %v2368 = vmax.f32 %v2366, %v2367
        %v2369 = vsel %vm2344, %v2328, -inf
        %v2370 = vsel %vm2344, %v2330, -inf
        %v2371 = vmax.f32 %v2369, %v2370
        %v2372 = vsel %vm2344, %v2329, -inf
        %v2373 = vsel %vm2344, %v2331, -inf
        %v2374 = vmax.f32 %v2372, %v2373
        %v2375 = vsel %vm2344, %v2332, -inf
        %v2376 = vsel %vm2344, %v2334, -inf
        %v2377 = vmax.f32 %v2375, %v2376
        %v2378 = vsel %vm2344, %v2333, -inf
        %v2379 = vsel %vm2344, %v2335, -inf
        %v2380 = vmax.f32 %v2378, %v2379
        %v2381 = vsel %vm2344, %v2336, -inf
        %v2382 = vsel %vm2344, %v2338, -inf
        %v2383 = vmax.f32 %v2381, %v2382
        %v2384 = vsel %vm2344, %v2337, -inf
        %v2385 = vsel %vm2344, %v2339, -inf
        %v2386 = vmax.f32 %v2384, %v2385
        %v2387 = vsel %vm2344, %v2340, -inf
        %v2388 = vsel %vm2344, %v2342, -inf
        %v2389 = vmax.f32 %v2387, %v2388
        %v2390 = vsel %vm2344, %v2341, -inf
        %v2391 = vsel %vm2344, %v2343, -inf
        %v2392 = vmax.f32 %v2390, %v2391
        %v2409 = vcombine.high %v2347, %v2347
        %v2411 = vunpack.c.l.s4 1983009808
        %v2412 = vunpack.c.0.s8 %v2411
        %v2413 = vlaneseq
        %v2414 = vshrl.u32 %v2413, 7
        %v2415 = vsub.s32 %v2412, %v2414
        %v2416 = vrot.slane %v2347, %v2415
        %v2418 = vunpack.c.l.s4 1983009808
        %v2419 = vunpack.c.0.s8 %v2418
        %v2420 = vlaneseq
        %v2421 = vshrl.u32 %v2420, 7
        %v2422 = vsub.s32 %v2419, %v2421
        %v2423 = vrot.slane %v2409, %v2422
        %v2424 = vcombine.high %v2416, %v2416
        %v2425 = vcombine.high %v2423, %v2423
        %v2426 = vcombine.high %v2350, %v2350
        %v2428 = vunpack.c.l.s4 1983009808
        %v2429 = vunpack.c.0.s8 %v2428
        %v2430 = vlaneseq
        %v2431 = vshrl.u32 %v2430, 7
        %v2432 = vsub.s32 %v2429, %v2431
        %v2433 = vrot.slane %v2350, %v2432
        %v2435 = vunpack.c.l.s4 1983009808
        %v2436 = vunpack.c.0.s8 %v2435
        %v2437 = vlaneseq
        %v2438 = vshrl.u32 %v2437, 7
        %v2439 = vsub.s32 %v2436, %v2438
        %v2440 = vrot.slane %v2426, %v2439
        %v2441 = vcombine.high %v2433, %v2433
        %v2442 = vcombine.high %v2440, %v2440
        %v2443 = vcombine.high %v2353, %v2353
        %v2445 = vunpack.c.l.s4 1983009808
        %v2446 = vunpack.c.0.s8 %v2445
        %v2447 = vlaneseq
        %v2448 = vshrl.u32 %v2447, 7
        %v2449 = vsub.s32 %v2446, %v2448
        %v2450 = vrot.slane %v2353, %v2449
        %v2452 = vunpack.c.l.s4 1983009808
        %v2453 = vunpack.c.0.s8 %v2452
        %v2454 = vlaneseq
        %v2455 = vshrl.u32 %v2454, 7
        %v2456 = vsub.s32 %v2453, %v2455
        %v2457 = vrot.slane %v2443, %v2456
        %v2458 = vcombine.high %v2450, %v2450
        %v2459 = vcombine.high %v2457, %v2457
        %v2460 = vcombine.high %v2356, %v2356
        %v2462 = vunpack.c.l.s4 1983009808
        %v2463 = vunpack.c.0.s8 %v2462
        %v2464 = vlaneseq
        %v2465 = vshrl.u32 %v2464, 7
        %v2466 = vsub.s32 %v2463, %v2465
        %v2467 = vrot.slane %v2356, %v2466
        %v2469 = vunpack.c.l.s4 1983009808
        %v2470 = vunpack.c.0.s8 %v2469
        %v2471 = vlaneseq
        %v2472 = vshrl.u32 %v2471, 7
        %v2473 = vsub.s32 %v2470, %v2472
        %v2474 = vrot.slane %v2460, %v2473
        %v2475 = vcombine.high %v2467, %v2467
        %v2476 = vcombine.high %v2474, %v2474
        %v2477 = vcombine.high %v2359, %v2359
        %v2479 = vunpack.c.l.s4 1983009808
        %v2480 = vunpack.c.0.s8 %v2479
        %v2481 = vlaneseq
        %v2482 = vshrl.u32 %v2481, 7
        %v2483 = vsub.s32 %v2480, %v2482
        %v2484 = vrot.slane %v2359, %v2483
        %v2486 = vunpack.c.l.s4 1983009808
        %v2487 = vunpack.c.0.s8 %v2486
        %v2488 = vlaneseq
        %v2489 = vshrl.u32 %v2488, 7
        %v2490 = vsub.s32 %v2487, %v2489
        %v2491 = vrot.slane %v2477, %v2490
        %v2492 = vcombine.high %v2484, %v2484
        %v2493 = vcombine.high %v2491, %v2491
        %v2494 = vcombine.high %v2362, %v2362
        %v2496 = vunpack.c.l.s4 1983009808
        %v2497 = vunpack.c.0.s8 %v2496
        %v2498 = vlaneseq
        %v2499 = vshrl.u32 %v2498, 7
        %v2500 = vsub.s32 %v2497, %v2499
        %v2501 = vrot.slane %v2362, %v2500
        %v2503 = vunpack.c.l.s4 1983009808
        %v2504 = vunpack.c.0.s8 %v2503
        %v2505 = vlaneseq
        %v2506 = vshrl.u32 %v2505, 7
        %v2507 = vsub.s32 %v2504, %v2506
        %v2508 = vrot.slane %v2494, %v2507
        %v2509 = vcombine.high %v2501, %v2501
        %v2510 = vcombine.high %v2508, %v2508
        %v2511 = vcombine.high %v2365, %v2365
        %v2513 = vunpack.c.l.s4 1983009808
        %v2514 = vunpack.c.0.s8 %v2513
        %v2515 = vlaneseq
        %v2516 = vshrl.u32 %v2515, 7
        %v2517 = vsub.s32 %v2514, %v2516
        %v2518 = vrot.slane %v2365, %v2517
        %v2520 = vunpack.c.l.s4 1983009808
        %v2521 = vunpack.c.0.s8 %v2520
        %v2522 = vlaneseq
        %v2523 = vshrl.u32 %v2522, 7
        %v2524 = vsub.s32 %v2521, %v2523
        %v2525 = vrot.slane %v2511, %v2524
        %v2526 = vcombine.high %v2518, %v2518
        %v2527 = vcombine.high %v2525, %v2525
        %v2528 = vcombine.high %v2368, %v2368
        %v2530 = vunpack.c.l.s4 1983009808
        %v2531 = vunpack.c.0.s8 %v2530
        %v2532 = vlaneseq
        %v2533 = vshrl.u32 %v2532, 7
        %v2534 = vsub.s32 %v2531, %v2533
        %v2535 = vrot.slane %v2368, %v2534
        %v2537 = vunpack.c.l.s4 1983009808
        %v2538 = vunpack.c.0.s8 %v2537
        %v2539 = vlaneseq
        %v2540 = vshrl.u32 %v2539, 7
        %v2541 = vsub.s32 %v2538, %v2540
        %v2542 = vrot.slane %v2528, %v2541
        %v2543 = vcombine.high %v2535, %v2535
        %v2544 = vcombine.high %v2542, %v2542
        %v2545 = vcombine.high %v2371, %v2371
        %v2547 = vunpack.c.l.s4 1983009808
        %v2548 = vunpack.c.0.s8 %v2547
        %v2549 = vlaneseq
        %v2550 = vshrl.u32 %v2549, 7
        %v2551 = vsub.s32 %v2548, %v2550
        %v2552 = vrot.slane %v2371, %v2551
        %v2554 = vunpack.c.l.s4 1983009808
        %v2555 = vunpack.c.0.s8 %v2554
        %v2556 = vlaneseq
        %v2557 = vshrl.u32 %v2556, 7
        %v2558 = vsub.s32 %v2555, %v2557
        %v2559 = vrot.slane %v2545, %v2558
        %v2560 = vcombine.high %v2552, %v2552
        %v2561 = vcombine.high %v2559, %v2559
        %v2562 = vcombine.high %v2374, %v2374
        %v2564 = vunpack.c.l.s4 1983009808
        %v2565 = vunpack.c.0.s8 %v2564
        %v2566 = vlaneseq
        %v2567 = vshrl.u32 %v2566, 7
        %v2568 = vsub.s32 %v2565, %v2567
        %v2569 = vrot.slane %v2374, %v2568
        %v2571 = vunpack.c.l.s4 1983009808
        %v2572 = vunpack.c.0.s8 %v2571
        %v2573 = vlaneseq
        %v2574 = vshrl.u32 %v2573, 7
        %v2575 = vsub.s32 %v2572, %v2574
        %v2576 = vrot.slane %v2562, %v2575
        %v2577 = vcombine.high %v2569, %v2569
        %v2578 = vcombine.high %v2576, %v2576
        %v2579 = vcombine.high %v2377, %v2377
        %v2581 = vunpack.c.l.s4 1983009808
        %v2582 = vunpack.c.0.s8 %v2581
        %v2583 = vlaneseq
        %v2584 = vshrl.u32 %v2583, 7
        %v2585 = vsub.s32 %v2582, %v2584
        %v2586 = vrot.slane %v2377, %v2585
        %v2588 = vunpack.c.l.s4 1983009808
        %v2589 = vunpack.c.0.s8 %v2588
        %v2590 = vlaneseq
        %v2591 = vshrl.u32 %v2590, 7
        %v2592 = vsub.s32 %v2589, %v2591
        %v2593 = vrot.slane %v2579, %v2592
        %v2594 = vcombine.high %v2586, %v2586
        %v2595 = vcombine.high %v2593, %v2593
        %v2596 = vcombine.high %v2380, %v2380
        %v2598 = vunpack.c.l.s4 1983009808
        %v2599 = vunpack.c.0.s8 %v2598
        %v2600 = vlaneseq
        %v2601 = vshrl.u32 %v2600, 7
        %v2602 = vsub.s32 %v2599, %v2601
        %v2603 = vrot.slane %v2380, %v2602
        %v2605 = vunpack.c.l.s4 1983009808
        %v2606 = vunpack.c.0.s8 %v2605
        %v2607 = vlaneseq
        %v2608 = vshrl.u32 %v2607, 7
        %v2609 = vsub.s32 %v2606, %v2608
        %v2610 = vrot.slane %v2596, %v2609
        %v2611 = vcombine.high %v2603, %v2603
        %v2612 = vcombine.high %v2610, %v2610
        %v2613 = vcombine.high %v2383, %v2383
        %v2615 = vunpack.c.l.s4 1983009808
        %v2616 = vunpack.c.0.s8 %v2615
        %v2617 = vlaneseq
        %v2618 = vshrl.u32 %v2617, 7
        %v2619 = vsub.s32 %v2616, %v2618
        %v2620 = vrot.slane %v2383, %v2619
        %v2622 = vunpack.c.l.s4 1983009808
        %v2623 = vunpack.c.0.s8 %v2622
        %v2624 = vlaneseq
        %v2625 = vshrl.u32 %v2624, 7
        %v2626 = vsub.s32 %v2623, %v2625
        %v2627 = vrot.slane %v2613, %v2626
        %v2628 = vcombine.high %v2620, %v2620
        %v2629 = vcombine.high %v2627, %v2627
        %v2630 = vcombine.high %v2386, %v2386
        %v2632 = vunpack.c.l.s4 1983009808
        %v2633 = vunpack.c.0.s8 %v2632
        %v2634 = vlaneseq
        %v2635 = vshrl.u32 %v2634, 7
        %v2636 = vsub.s32 %v2633, %v2635
        %v2637 = vrot.slane %v2386, %v2636
        %v2639 = vunpack.c.l.s4 1983009808
        %v2640 = vunpack.c.0.s8 %v2639
        %v2641 = vlaneseq
        %v2642 = vshrl.u32 %v2641, 7
        %v2643 = vsub.s32 %v2640, %v2642
        %v2644 = vrot.slane %v2630, %v2643
        %v2645 = vcombine.high %v2637, %v2637
        %v2646 = vcombine.high %v2644, %v2644
        %v2647 = vcombine.high %v2389, %v2389
        %v2649 = vunpack.c.l.s4 1983009808
        %v2650 = vunpack.c.0.s8 %v2649
        %v2651 = vlaneseq
        %v2652 = vshrl.u32 %v2651, 7
        %v2653 = vsub.s32 %v2650, %v2652
        %v2654 = vrot.slane %v2389, %v2653
        %v2656 = vunpack.c.l.s4 1983009808
        %v2657 = vunpack.c.0.s8 %v2656
        %v2658 = vlaneseq
        %v2659 = vshrl.u32 %v2658, 7
        %v2660 = vsub.s32 %v2657, %v2659
        %v2661 = vrot.slane %v2647, %v2660
        %v2662 = vcombine.high %v2654, %v2654
        %v2663 = vcombine.high %v2661, %v2661
        %v2664 = vcombine.high %v2392, %v2392
        %v2666 = vunpack.c.l.s4 1983009808
        %v2667 = vunpack.c.0.s8 %v2666
        %v2668 = vlaneseq
        %v2669 = vshrl.u32 %v2668, 7
        %v2670 = vsub.s32 %v2667, %v2669
        %v2671 = vrot.slane %v2392, %v2670
        %v2673 = vunpack.c.l.s4 1983009808
        %v2674 = vunpack.c.0.s8 %v2673
        %v2675 = vlaneseq
        %v2676 = vshrl.u32 %v2675, 7
        %v2677 = vsub.s32 %v2674, %v2676
        %v2678 = vrot.slane %v2664, %v2677
        %v2679 = vcombine.high %v2671, %v2671
        %v2680 = vcombine.high %v2678, %v2678
        %vm2745 = vcmask 123904
        %v2746 = vsel %vm2745, %v2416, -inf
        %v2747 = vrot.slane %v2746, 4
        %v2748 = vmax.f32 %v2746, %v2747
        %v2749 = vrot.slane %v2748, 2
        %v2750 = vmax.f32 %v2748, %v2749
        %v2751 = vrot.slane %v2750, 1
        %v2752 = vmax.f32 %v2750, %v2751
        %v2753 = vsel %vm2745, %v2424, -inf
        %v2754 = vrot.slane %v2753, 4
        %v2755 = vmax.f32 %v2753, %v2754
        %v2756 = vrot.slane %v2755, 2
        %v2757 = vmax.f32 %v2755, %v2756
        %v2758 = vrot.slane %v2757, 1
        %v2759 = vmax.f32 %v2757, %v2758
        %v2760 = vsel %vm2745, %v2423, -inf
        %v2761 = vrot.slane %v2760, 4
        %v2762 = vmax.f32 %v2760, %v2761
        %v2763 = vrot.slane %v2762, 2
        %v2764 = vmax.f32 %v2762, %v2763
        %v2765 = vrot.slane %v2764, 1
        %v2766 = vmax.f32 %v2764, %v2765
        %v2767 = vsel %vm2745, %v2425, -inf
        %v2768 = vrot.slane %v2767, 4
        %v2769 = vmax.f32 %v2767, %v2768
        %v2770 = vrot.slane %v2769, 2
        %v2771 = vmax.f32 %v2769, %v2770
        %v2772 = vrot.slane %v2771, 1
        %v2773 = vmax.f32 %v2771, %v2772
        %v2774 = vsel %vm2745, %v2433, -inf
        %v2775 = vrot.slane %v2774, 4
        %v2776 = vmax.f32 %v2774, %v2775
        %v2777 = vrot.slane %v2776, 2
        %v2778 = vmax.f32 %v2776, %v2777
        %v2779 = vrot.slane %v2778, 1
        %v2780 = vmax.f32 %v2778, %v2779
        %v2781 = vsel %vm2745, %v2441, -inf
        %v2782 = vrot.slane %v2781, 4
        %v2783 = vmax.f32 %v2781, %v2782
        %v2784 = vrot.slane %v2783, 2
        %v2785 = vmax.f32 %v2783, %v2784
        %v2786 = vrot.slane %v2785, 1
        %v2787 = vmax.f32 %v2785, %v2786
        %v2788 = vsel %vm2745, %v2440, -inf
        %v2789 = vrot.slane %v2788, 4
        %v2790 = vmax.f32 %v2788, %v2789
        %v2791 = vrot.slane %v2790, 2
        %v2792 = vmax.f32 %v2790, %v2791
        %v2793 = vrot.slane %v2792, 1
        %v2794 = vmax.f32 %v2792, %v2793
        %v2795 = vsel %vm2745, %v2442, -inf
        %v2796 = vrot.slane %v2795, 4
        %v2797 = vmax.f32 %v2795, %v2796
        %v2798 = vrot.slane %v2797, 2
        %v2799 = vmax.f32 %v2797, %v2798
        %v2800 = vrot.slane %v2799, 1
        %v2801 = vmax.f32 %v2799, %v2800
        %v2802 = vsel %vm2745, %v2450, -inf
        %v2803 = vrot.slane %v2802, 4
        %v2804 = vmax.f32 %v2802, %v2803
        %v2805 = vrot.slane %v2804, 2
        %v2806 = vmax.f32 %v2804, %v2805
        %v2807 = vrot.slane %v2806, 1
        %v2808 = vmax.f32 %v2806, %v2807
        %v2809 = vsel %vm2745, %v2458, -inf
        %v2810 = vrot.slane %v2809, 4
        %v2811 = vmax.f32 %v2809, %v2810
        %v2812 = vrot.slane %v2811, 2
        %v2813 = vmax.f32 %v2811, %v2812
        %v2814 = vrot.slane %v2813, 1
        %v2815 = vmax.f32 %v2813, %v2814
        %v2816 = vsel %vm2745, %v2457, -inf
        %v2817 = vrot.slane %v2816, 4
        %v2818 = vmax.f32 %v2816, %v2817
        %v2819 = vrot.slane %v2818, 2
        %v2820 = vmax.f32 %v2818, %v2819
        %v2821 = vrot.slane %v2820, 1
        %v2822 = vmax.f32 %v2820, %v2821
        %v2823 = vsel %vm2745, %v2459, -inf
        %v2824 = vrot.slane %v2823, 4
        %v2825 = vmax.f32 %v2823, %v2824
        %v2826 = vrot.slane %v2825, 2
        %v2827 = vmax.f32 %v2825, %v2826
        %v2828 = vrot.slane %v2827, 1
        %v2829 = vmax.f32 %v2827, %v2828
        %v2830 = vsel %vm2745, %v2467, -inf
        %v2831 = vrot.slane %v2830, 4
        %v2832 = vmax.f32 %v2830, %v2831
        %v2833 = vrot.slane %v2832, 2
        %v2834 = vmax.f32 %v2832, %v2833
        %v2835 = vrot.slane %v2834, 1
        %v2836 = vmax.f32 %v2834, %v2835
        %v2837 = vsel %vm2745, %v2475, -inf
        %v2838 = vrot.slane %v2837, 4
        %v2839 = vmax.f32 %v2837, %v2838
        %v2840 = vrot.slane %v2839, 2
        %v2841 = vmax.f32 %v2839, %v2840
        %v2842 = vrot.slane %v2841, 1
        %v2843 = vmax.f32 %v2841, %v2842
        %v2844 = vsel %vm2745, %v2474, -inf
        %v2845 = vrot.slane %v2844, 4
        %v2846 = vmax.f32 %v2844, %v2845
        %v2847 = vrot.slane %v2846, 2
        %v2848 = vmax.f32 %v2846, %v2847
        %v2849 = vrot.slane %v2848, 1
        %v2850 = vmax.f32 %v2848, %v2849
        %v2851 = vsel %vm2745, %v2476, -inf
        %v2852 = vrot.slane %v2851, 4
        %v2853 = vmax.f32 %v2851, %v2852
        %v2854 = vrot.slane %v2853, 2
        %v2855 = vmax.f32 %v2853, %v2854
        %v2856 = vrot.slane %v2855, 1
        %v2857 = vmax.f32 %v2855, %v2856
        %v2858 = vsel %vm2745, %v2484, -inf
        %v2859 = vrot.slane %v2858, 4
        %v2860 = vmax.f32 %v2858, %v2859
        %v2861 = vrot.slane %v2860, 2
        %v2862 = vmax.f32 %v2860, %v2861
        %v2863 = vrot.slane %v2862, 1
        %v2864 = vmax.f32 %v2862, %v2863
        %v2865 = vsel %vm2745, %v2492, -inf
        %v2866 = vrot.slane %v2865, 4
        %v2867 = vmax.f32 %v2865, %v2866
        %v2868 = vrot.slane %v2867, 2
        %v2869 = vmax.f32 %v2867, %v2868
        %v2870 = vrot.slane %v2869, 1
        %v2871 = vmax.f32 %v2869, %v2870
        %v2872 = vsel %vm2745, %v2491, -inf
        %v2873 = vrot.slane %v2872, 4
        %v2874 = vmax.f32 %v2872, %v2873
        %v2875 = vrot.slane %v2874, 2
        %v2876 = vmax.f32 %v2874, %v2875
        %v2877 = vrot.slane %v2876, 1
        %v2878 = vmax.f32 %v2876, %v2877
        %v2879 = vsel %vm2745, %v2493, -inf
        %v2880 = vrot.slane %v2879, 4
        %v2881 = vmax.f32 %v2879, %v2880
        %v2882 = vrot.slane %v2881, 2
        %v2883 = vmax.f32 %v2881, %v2882
        %v2884 = vrot.slane %v2883, 1
        %v2885 = vmax.f32 %v2883, %v2884
        %v2886 = vsel %vm2745, %v2501, -inf
        %v2887 = vrot.slane %v2886, 4
        %v2888 = vmax.f32 %v2886, %v2887
        %v2889 = vrot.slane %v2888, 2
        %v2890 = vmax.f32 %v2888, %v2889
        %v2891 = vrot.slane %v2890, 1
        %v2892 = vmax.f32 %v2890, %v2891
        %v2893 = vsel %vm2745, %v2509, -inf
        %v2894 = vrot.slane %v2893, 4
        %v2895 = vmax.f32 %v2893, %v2894
        %v2896 = vrot.slane %v2895, 2
        %v2897 = vmax.f32 %v2895, %v2896
        %v2898 = vrot.slane %v2897, 1
        %v2899 = vmax.f32 %v2897, %v2898
        %v2900 = vsel %vm2745, %v2508, -inf
        %v2901 = vrot.slane %v2900, 4
        %v2902 = vmax.f32 %v2900, %v2901
        %v2903 = vrot.slane %v2902, 2
        %v2904 = vmax.f32 %v2902, %v2903
        %v2905 = vrot.slane %v2904, 1
        %v2906 = vmax.f32 %v2904, %v2905
        %v2907 = vsel %vm2745, %v2510, -inf
        %v2908 = vrot.slane %v2907, 4
        %v2909 = vmax.f32 %v2907, %v2908
        %v2910 = vrot.slane %v2909, 2
        %v2911 = vmax.f32 %v2909, %v2910
        %v2912 = vrot.slane %v2911, 1
        %v2913 = vmax.f32 %v2911, %v2912
        %v2914 = vsel %vm2745, %v2518, -inf
        %v2915 = vrot.slane %v2914, 4
        %v2916 = vmax.f32 %v2914, %v2915
        %v2917 = vrot.slane %v2916, 2
        %v2918 = vmax.f32 %v2916, %v2917
        %v2919 = vrot.slane %v2918, 1
        %v2920 = vmax.f32 %v2918, %v2919
        %v2921 = vsel %vm2745, %v2526, -inf
        %v2922 = vrot.slane %v2921, 4
        %v2923 = vmax.f32 %v2921, %v2922
        %v2924 = vrot.slane %v2923, 2
        %v2925 = vmax.f32 %v2923, %v2924
        %v2926 = vrot.slane %v2925, 1
        %v2927 = vmax.f32 %v2925, %v2926
        %v2928 = vsel %vm2745, %v2525, -inf
        %v2929 = vrot.slane %v2928, 4
        %v2930 = vmax.f32 %v2928, %v2929
        %v2931 = vrot.slane %v2930, 2
        %v2932 = vmax.f32 %v2930, %v2931
        %v2933 = vrot.slane %v2932, 1
        %v2934 = vmax.f32 %v2932, %v2933
        %v2935 = vsel %vm2745, %v2527, -inf
        %v2936 = vrot.slane %v2935, 4
        %v2937 = vmax.f32 %v2935, %v2936
        %v2938 = vrot.slane %v2937, 2
        %v2939 = vmax.f32 %v2937, %v2938
        %v2940 = vrot.slane %v2939, 1
        %v2941 = vmax.f32 %v2939, %v2940
        %v2942 = vsel %vm2745, %v2535, -inf
        %v2943 = vrot.slane %v2942, 4
        %v2944 = vmax.f32 %v2942, %v2943
        %v2945 = vrot.slane %v2944, 2
        %v2946 = vmax.f32 %v2944, %v2945
        %v2947 = vrot.slane %v2946, 1
        %v2948 = vmax.f32 %v2946, %v2947
        %v2949 = vsel %vm2745, %v2543, -inf
        %v2950 = vrot.slane %v2949, 4
        %v2951 = vmax.f32 %v2949, %v2950
        %v2952 = vrot.slane %v2951, 2
        %v2953 = vmax.f32 %v2951, %v2952
        %v2954 = vrot.slane %v2953, 1
        %v2955 = vmax.f32 %v2953, %v2954
        %v2956 = vsel %vm2745, %v2542, -inf
        %v2957 = vrot.slane %v2956, 4
        %v2958 = vmax.f32 %v2956, %v2957
        %v2959 = vrot.slane %v2958, 2
        %v2960 = vmax.f32 %v2958, %v2959
        %v2961 = vrot.slane %v2960, 1
        %v2962 = vmax.f32 %v2960, %v2961
        %v2963 = vsel %vm2745, %v2544, -inf
        %v2964 = vrot.slane %v2963, 4
        %v2965 = vmax.f32 %v2963, %v2964
        %v2966 = vrot.slane %v2965, 2
        %v2967 = vmax.f32 %v2965, %v2966
        %v2968 = vrot.slane %v2967, 1
        %v2969 = vmax.f32 %v2967, %v2968
        %v2970 = vsel %vm2745, %v2552, -inf
        %v2971 = vrot.slane %v2970, 4
        %v2972 = vmax.f32 %v2970, %v2971
        %v2973 = vrot.slane %v2972, 2
        %v2974 = vmax.f32 %v2972, %v2973
        %v2975 = vrot.slane %v2974, 1
        %v2976 = vmax.f32 %v2974, %v2975
        %v2977 = vsel %vm2745, %v2560, -inf
        %v2978 = vrot.slane %v2977, 4
        %v2979 = vmax.f32 %v2977, %v2978
        %v2980 = vrot.slane %v2979, 2
        %v2981 = vmax.f32 %v2979, %v2980
        %v2982 = vrot.slane %v2981, 1
        %v2983 = vmax.f32 %v2981, %v2982
        %v2984 = vsel %vm2745, %v2559, -inf
        %v2985 = vrot.slane %v2984, 4
        %v2986 = vmax.f32 %v2984, %v2985
        %v2987 = vrot.slane %v2986, 2
        %v2988 = vmax.f32 %v2986, %v2987
        %v2989 = vrot.slane %v2988, 1
        %v2990 = vmax.f32 %v2988, %v2989
        %v2991 = vsel %vm2745, %v2561, -inf
        %v2992 = vrot.slane %v2991, 4
        %v2993 = vmax.f32 %v2991, %v2992
        %v2994 = vrot.slane %v2993, 2
        %v2995 = vmax.f32 %v2993, %v2994
        %v2996 = vrot.slane %v2995, 1
        %v2997 = vmax.f32 %v2995, %v2996
        %v2998 = vsel %vm2745, %v2569, -inf
        %v2999 = vrot.slane %v2998, 4
        %v3000 = vmax.f32 %v2998, %v2999
        %v3001 = vrot.slane %v3000, 2
        %v3002 = vmax.f32 %v3000, %v3001
        %v3003 = vrot.slane %v3002, 1
        %v3004 = vmax.f32 %v3002, %v3003
        %v3005 = vsel %vm2745, %v2577, -inf
        %v3006 = vrot.slane %v3005, 4
        %v3007 = vmax.f32 %v3005, %v3006
        %v3008 = vrot.slane %v3007, 2
        %v3009 = vmax.f32 %v3007, %v3008
        %v3010 = vrot.slane %v3009, 1
        %v3011 = vmax.f32 %v3009, %v3010
        %v3012 = vsel %vm2745, %v2576, -inf
        %v3013 = vrot.slane %v3012, 4
        %v3014 = vmax.f32 %v3012, %v3013
        %v3015 = vrot.slane %v3014, 2
        %v3016 = vmax.f32 %v3014, %v3015
        %v3017 = vrot.slane %v3016, 1
        %v3018 = vmax.f32 %v3016, %v3017
        %v3019 = vsel %vm2745, %v2578, -inf
        %v3020 = vrot.slane %v3019, 4
        %v3021 = vmax.f32 %v3019, %v3020
        %v3022 = vrot.slane %v3021, 2
        %v3023 = vmax.f32 %v3021, %v3022
        %v3024 = vrot.slane %v3023, 1
        %v3025 = vmax.f32 %v3023, %v3024
        %v3026 = vsel %vm2745, %v2586, -inf
        %v3027 = vrot.slane %v3026, 4
        %v3028 = vmax.f32 %v3026, %v3027
        %v3029 = vrot.slane %v3028, 2
        %v3030 = vmax.f32 %v3028, %v3029
        %v3031 = vrot.slane %v3030, 1
        %v3032 = vmax.f32 %v3030, %v3031
        %v3033 = vsel %vm2745, %v2594, -inf
        %v3034 = vrot.slane %v3033, 4
        %v3035 = vmax.f32 %v3033, %v3034
        %v3036 = vrot.slane %v3035, 2
        %v3037 = vmax.f32 %v3035, %v3036
        %v3038 = vrot.slane %v3037, 1
        %v3039 = vmax.f32 %v3037, %v3038
        %v3040 = vsel %vm2745, %v2593, -inf
        %v3041 = vrot.slane %v3040, 4
        %v3042 = vmax.f32 %v3040, %v3041
        %v3043 = vrot.slane %v3042, 2
        %v3044 = vmax.f32 %v3042, %v3043
        %v3045 = vrot.slane %v3044, 1
        %v3046 = vmax.f32 %v3044, %v3045
        %v3047 = vsel %vm2745, %v2595, -inf
        %v3048 = vrot.slane %v3047, 4
        %v3049 = vmax.f32 %v3047, %v3048
        %v3050 = vrot.slane %v3049, 2
        %v3051 = vmax.f32 %v3049, %v3050
        %v3052 = vrot.slane %v3051, 1
        %v3053 = vmax.f32 %v3051, %v3052
        %v3054 = vsel %vm2745, %v2603, -inf
        %v3055 = vrot.slane %v3054, 4
        %v3056 = vmax.f32 %v3054, %v3055
        %v3057 = vrot.slane %v3056, 2
        %v3058 = vmax.f32 %v3056, %v3057
        %v3059 = vrot.slane %v3058, 1
        %v3060 = vmax.f32 %v3058, %v3059
        %v3061 = vsel %vm2745, %v2611, -inf
        %v3062 = vrot.slane %v3061, 4
        %v3063 = vmax.f32 %v3061, %v3062
        %v3064 = vrot.slane %v3063, 2
        %v3065 = vmax.f32 %v3063, %v3064
        %v3066 = vrot.slane %v3065, 1
        %v3067 = vmax.f32 %v3065, %v3066
        %v3068 = vsel %vm2745, %v2610, -inf
        %v3069 = vrot.slane %v3068, 4
        %v3070 = vmax.f32 %v3068, %v3069
        %v3071 = vrot.slane %v3070, 2
        %v3072 = vmax.f32 %v3070, %v3071
        %v3073 = vrot.slane %v3072, 1
        %v3074 = vmax.f32 %v3072, %v3073
        %v3075 = vsel %vm2745, %v2612, -inf
        %v3076 = vrot.slane %v3075, 4
        %v3077 = vmax.f32 %v3075, %v3076
        %v3078 = vrot.slane %v3077, 2
        %v3079 = vmax.f32 %v3077, %v3078
        %v3080 = vrot.slane %v3079, 1
        %v3081 = vmax.f32 %v3079, %v3080
        %v3082 = vsel %vm2745, %v2620, -inf
        %v3083 = vrot.slane %v3082, 4
        %v3084 = vmax.f32 %v3082, %v3083
        %v3085 = vrot.slane %v3084, 2
        %v3086 = vmax.f32 %v3084, %v3085
        %v3087 = vrot.slane %v3086, 1
        %v3088 = vmax.f32 %v3086, %v3087
        %v3089 = vsel %vm2745, %v2628, -inf
        %v3090 = vrot.slane %v3089, 4
        %v3091 = vmax.f32 %v3089, %v3090
        %v3092 = vrot.slane %v3091, 2
        %v3093 = vmax.f32 %v3091, %v3092
        %v3094 = vrot.slane %v3093, 1
        %v3095 = vmax.f32 %v3093, %v3094
        %v3096 = vsel %vm2745, %v2627, -inf
        %v3097 = vrot.slane %v3096, 4
        %v3098 = vmax.f32 %v3096, %v3097
        %v3099 = vrot.slane %v3098, 2
        %v3100 = vmax.f32 %v3098, %v3099
        %v3101 = vrot.slane %v3100, 1
        %v3102 = vmax.f32 %v3100, %v3101
        %v3103 = vsel %vm2745, %v2629, -inf
        %v3104 = vrot.slane %v3103, 4
        %v3105 = vmax.f32 %v3103, %v3104
        %v3106 = vrot.slane %v3105, 2
        %v3107 = vmax.f32 %v3105, %v3106
        %v3108 = vrot.slane %v3107, 1
        %v3109 = vmax.f32 %v3107, %v3108
        %v3110 = vsel %vm2745, %v2637, -inf
        %v3111 = vrot.slane %v3110, 4
        %v3112 = vmax.f32 %v3110, %v3111
        %v3113 = vrot.slane %v3112, 2
        %v3114 = vmax.f32 %v3112, %v3113
        %v3115 = vrot.slane %v3114, 1
        %v3116 = vmax.f32 %v3114, %v3115
        %v3117 = vsel %vm2745, %v2645, -inf
        %v3118 = vrot.slane %v3117, 4
        %v3119 = vmax.f32 %v3117, %v3118
        %v3120 = vrot.slane %v3119, 2
        %v3121 = vmax.f32 %v3119, %v3120
        %v3122 = vrot.slane %v3121, 1
        %v3123 = vmax.f32 %v3121, %v3122
        %v3124 = vsel %vm2745, %v2644, -inf
        %v3125 = vrot.slane %v3124, 4
        %v3126 = vmax.f32 %v3124, %v3125
        %v3127 = vrot.slane %v3126, 2
        %v3128 = vmax.f32 %v3126, %v3127
        %v3129 = vrot.slane %v3128, 1
        %v3130 = vmax.f32 %v3128, %v3129
        %v3131 = vsel %vm2745, %v2646, -inf
        %v3132 = vrot.slane %v3131, 4
        %v3133 = vmax.f32 %v3131, %v3132
        %v3134 = vrot.slane %v3133, 2
        %v3135 = vmax.f32 %v3133, %v3134
        %v3136 = vrot.slane %v3135, 1
        %v3137 = vmax.f32 %v3135, %v3136
        %v3138 = vsel %vm2745, %v2654, -inf
        %v3139 = vrot.slane %v3138, 4
        %v3140 = vmax.f32 %v3138, %v3139
        %v3141 = vrot.slane %v3140, 2
        %v3142 = vmax.f32 %v3140, %v3141
        %v3143 = vrot.slane %v3142, 1
        %v3144 = vmax.f32 %v3142, %v3143
        %v3145 = vsel %vm2745, %v2662, -inf
        %v3146 = vrot.slane %v3145, 4
        %v3147 = vmax.f32 %v3145, %v3146
        %v3148 = vrot.slane %v3147, 2
        %v3149 = vmax.f32 %v3147, %v3148
        %v3150 = vrot.slane %v3149, 1
        %v3151 = vmax.f32 %v3149, %v3150
        %v3152 = vsel %vm2745, %v2661, -inf
        %v3153 = vrot.slane %v3152, 4
        %v3154 = vmax.f32 %v3152, %v3153
        %v3155 = vrot.slane %v3154, 2
        %v3156 = vmax.f32 %v3154, %v3155
        %v3157 = vrot.slane %v3156, 1
        %v3158 = vmax.f32 %v3156, %v3157
        %v3159 = vsel %vm2745, %v2663, -inf
        %v3160 = vrot.slane %v3159, 4
        %v3161 = vmax.f32 %v3159, %v3160
        %v3162 = vrot.slane %v3161, 2
        %v3163 = vmax.f32 %v3161, %v3162
        %v3164 = vrot.slane %v3163, 1
        %v3165 = vmax.f32 %v3163, %v3164
        %v3166 = vsel %vm2745, %v2671, -inf
        %v3167 = vrot.slane %v3166, 4
        %v3168 = vmax.f32 %v3166, %v3167
        %v3169 = vrot.slane %v3168, 2
        %v3170 = vmax.f32 %v3168, %v3169
        %v3171 = vrot.slane %v3170, 1
        %v3172 = vmax.f32 %v3170, %v3171
        %v3173 = vsel %vm2745, %v2679, -inf
        %v3174 = vrot.slane %v3173, 4
        %v3175 = vmax.f32 %v3173, %v3174
        %v3176 = vrot.slane %v3175, 2
        %v3177 = vmax.f32 %v3175, %v3176
        %v3178 = vrot.slane %v3177, 1
        %v3179 = vmax.f32 %v3177, %v3178
        %v3180 = vsel %vm2745, %v2678, -inf
        %v3181 = vrot.slane %v3180, 4
        %v3182 = vmax.f32 %v3180, %v3181
        %v3183 = vrot.slane %v3182, 2
        %v3184 = vmax.f32 %v3182, %v3183
        %v3185 = vrot.slane %v3184, 1
        %v3186 = vmax.f32 %v3184, %v3185
        %v3187 = vsel %vm2745, %v2680, -inf
        %v3188 = vrot.slane %v3187, 4
        %v3189 = vmax.f32 %v3187, %v3188
        %v3190 = vrot.slane %v3189, 2
        %v3191 = vmax.f32 %v3189, %v3190
        %v3192 = vrot.slane %v3191, 1
        %v3193 = vmax.f32 %v3191, %v3192
        %3194 = vst.msk [vmem:[#allocation4] sm:$0xff] %vm2344, 0.0
        %3195 = vst.msk [vmem:[#allocation4 + $0x8] sm:$0x3] %vm2745, 0.0
        %s3196 = scalar_lea.vmem [#allocation4], 144
        %3197 = vst.msk [vmem:[%s3196] sm:$0xff] %vm2344, 0.0
        %3198 = vst.msk [vmem:[%s3196 + $0x8] sm:$0x3] %vm2745, 0.0
        %vm3199 = vcmask 122880
        %3200 = vst.msk [vmem:[#allocation4] sm:$0x1] %vm3199, 0.0
        %3201 = vst.msk [vmem:[#allocation4 + $0x10] sm:$0x1] %vm3199, 0.0
        %3202 = vst.msk [vmem:[#allocation4 + $0x20] sm:$0x1] %vm3199, 0.0
        %3203 = vst.msk [vmem:[#allocation4 + $0x30] sm:$0x1] %vm3199, 0.0
        %3204 = vst.msk [vmem:[#allocation4 + $0x40] sm:$0x1] %vm3199, 0.0
        %3205 = vst.msk [vmem:[#allocation4 + $0x50] sm:$0x1] %vm3199, 0.0
        %3206 = vst.msk [vmem:[#allocation4 + $0x60] sm:$0x1] %vm3199, 0.0
        %3207 = vst.msk [vmem:[#allocation4 + $0x70] sm:$0x1] %vm3199, 0.0
        %3208 = vst.msk [vmem:[#allocation4 + $0x80] sm:$0x1] %vm3199, 0.0
        %3209 = vst.msk [vmem:[#allocation4 + $0x90] sm:$0x1] %vm3199, 0.0
        %3210 = vst.msk [vmem:[#allocation4 + $0x9] sm:$0x1] %vm3199, 0.0
        %3211 = vst.msk [vmem:[#allocation4 + $0x19] sm:$0x1] %vm3199, 0.0
        %3212 = vst.msk [vmem:[#allocation4 + $0x29] sm:$0x1] %vm3199, 0.0
        %3213 = vst.msk [vmem:[#allocation4 + $0x39] sm:$0x1] %vm3199, 0.0
        %3214 = vst.msk [vmem:[#allocation4 + $0x49] sm:$0x1] %vm3199, 0.0
        %3215 = vst.msk [vmem:[#allocation4 + $0x59] sm:$0x1] %vm3199, 0.0
        %3216 = vst.msk [vmem:[#allocation4 + $0x69] sm:$0x1] %vm3199, 0.0
        %3217 = vst.msk [vmem:[#allocation4 + $0x79] sm:$0x1] %vm3199, 0.0
        %3218 = vst.msk [vmem:[#allocation4 + $0x89] sm:$0x1] %vm3199, 0.0
        %3219 = vst.msk [vmem:[#allocation4 + $0x99] sm:$0x1] %vm3199, 0.0
        %vm3284 = vcmask 1041409
        %v3285 = vsel %vm3284, %v2759, %v2752
        %vm3286 = vcmask 1042434
        %v3287 = vsel %vm3286, %v2766, %v3285
        %vm3288 = vcmask 1043459
        %v3289 = vsel %vm3288, %v2773, %v3287
        %vm3290 = vcmask 1044484
        %v3291 = vsel %vm3290, %v2780, %v3289
        %vm3292 = vcmask 1045509
        %v3293 = vsel %vm3292, %v2787, %v3291
        %vm3294 = vcmask 1046534
        %v3295 = vsel %vm3294, %v2794, %v3293
        %vm3296 = vcmask 1047559
        %v3297 = vsel %vm3296, %v2801, %v3295
        %v3298 = vsel %vm3284, %v2815, %v2808
        %v3299 = vsel %vm3286, %v2822, %v3298
        %v3300 = vsel %vm3288, %v2829, %v3299
        %v3301 = vsel %vm3290, %v2836, %v3300
        %v3302 = vsel %vm3292, %v2843, %v3301
        %v3303 = vsel %vm3294, %v2850, %v3302
        %v3304 = vsel %vm3296, %v2857, %v3303
        %v3305 = vsel %vm3284, %v2871, %v2864
        %v3306 = vsel %vm3286, %v2878, %v3305
        %v3307 = vsel %vm3288, %v2885, %v3306
        %v3308 = vsel %vm3290, %v2892, %v3307
        %v3309 = vsel %vm3292, %v2899, %v3308
        %v3310 = vsel %vm3294, %v2906, %v3309
        %v3311 = vsel %vm3296, %v2913, %v3310
        %v3312 = vsel %vm3284, %v2927, %v2920
        %v3313 = vsel %vm3286, %v2934, %v3312
        %v3314 = vsel %vm3288, %v2941, %v3313
        %v3315 = vsel %vm3290, %v2948, %v3314
        %v3316 = vsel %vm3292, %v2955, %v3315
        %v3317 = vsel %vm3294, %v2962, %v3316
        %v3318 = vsel %vm3296, %v2969, %v3317
        %v3319 = vsel %vm3284, %v2983, %v2976
        %v3320 = vsel %vm3286, %v2990, %v3319
        %v3321 = vsel %vm3288, %v2997, %v3320
        %v3322 = vsel %vm3290, %v3004, %v3321
        %v3323 = vsel %vm3292, %v3011, %v3322
        %v3324 = vsel %vm3294, %v3018, %v3323
        %v3325 = vsel %vm3296, %v3025, %v3324
        %v3326 = vsel %vm3284, %v3039, %v3032
        %v3327 = vsel %vm3286, %v3046, %v3326
        %v3328 = vsel %vm3288, %v3053, %v3327
        %v3329 = vsel %vm3290, %v3060, %v3328
        %v3330 = vsel %vm3292, %v3067, %v3329
        %v3331 = vsel %vm3294, %v3074, %v3330
        %v3332 = vsel %vm3296, %v3081, %v3331
        %v3333 = vsel %vm3284, %v3095, %v3088
        %v3334 = vsel %vm3286, %v3102, %v3333
        %v3335 = vsel %vm3288, %v3109, %v3334
        %v3336 = vsel %vm3290, %v3116, %v3335
        %v3337 = vsel %vm3292, %v3123, %v3336
        %v3338 = vsel %vm3294, %v3130, %v3337
        %v3339 = vsel %vm3296, %v3137, %v3338
        %v3340 = vsel %vm3284, %v3151, %v3144
        %v3341 = vsel %vm3286, %v3158, %v3340
        %v3342 = vsel %vm3288, %v3165, %v3341
        %v3343 = vsel %vm3290, %v3172, %v3342
        %v3344 = vsel %vm3292, %v3179, %v3343
        %v3345 = vsel %vm3294, %v3186, %v3344
        %v3346 = vsel %vm3296, %v3193, %v3345
        %s3355 = scalar_lea.vmem [#allocation4], 16
        %3356 = vst.msk [vmem:[%s3355 + $0x1] sm:$0xff] %vm2344, %v3297
        %3357 = vst.msk [vmem:[%s3355 + $0x11] sm:$0xff] %vm2344, %v3304
        %3358 = vst.msk [vmem:[%s3355 + $0x21] sm:$0xff] %vm2344, %v3311
        %3359 = vst.msk [vmem:[%s3355 + $0x31] sm:$0xff] %vm2344, %v3318
        %3360 = vst.msk [vmem:[%s3355 + $0x41] sm:$0xff] %vm2344, %v3325
        %3361 = vst.msk [vmem:[%s3355 + $0x51] sm:$0xff] %vm2344, %v3332
        %3362 = vst.msk [vmem:[%s3355 + $0x61] sm:$0xff] %vm2344, %v3339
        %3363 = vst.msk [vmem:[%s3355 + $0x71] sm:$0xff] %vm2344, %v3346
        %v3364 = vld [vmem:[#allocation4] sm:$0xff]
        %v3365 = vld [vmem:[#allocation4 + $0x10] sm:$0xff]
        %v3366 = vld [vmem:[#allocation4 + $0x20] sm:$0xff]
        %v3367 = vld [vmem:[#allocation4 + $0x30] sm:$0xff]
        %v3368 = vld [vmem:[#allocation4 + $0x40] sm:$0xff]
        %v3369 = vld [vmem:[#allocation4 + $0x50] sm:$0xff]
        %v3370 = vld [vmem:[#allocation4 + $0x60] sm:$0xff]
        %v3371 = vld [vmem:[#allocation4 + $0x70] sm:$0xff]
        %3372 = vst.msk [vmem:[#allocation5] sm:$0xff] %vm2344, %v3364
        %3373 = vst.msk [vmem:[#allocation5 + $0x10] sm:$0xff] %vm2344, %v3365
        %3374 = vst.msk [vmem:[#allocation5 + $0x20] sm:$0xff] %vm2344, %v3366
        %3375 = vst.msk [vmem:[#allocation5 + $0x30] sm:$0xff] %vm2344, %v3367
        %3376 = vst.msk [vmem:[#allocation5 + $0x40] sm:$0xff] %vm2344, %v3368
        %3377 = vst.msk [vmem:[#allocation5 + $0x50] sm:$0xff] %vm2344, %v3369
        %3378 = vst.msk [vmem:[#allocation5 + $0x60] sm:$0xff] %vm2344, %v3370
        %3379 = vst.msk [vmem:[#allocation5 + $0x70] sm:$0xff] %vm2344, %v3371
        %v3380 = vld [vmem:[#allocation4 + $0x1] sm:$0xff]
        %v3381 = vld [vmem:[#allocation4 + $0x11] sm:$0xff]
        %v3382 = vld [vmem:[#allocation4 + $0x21] sm:$0xff]
        %v3383 = vld [vmem:[#allocation4 + $0x31] sm:$0xff]
        %v3384 = vld [vmem:[#allocation4 + $0x41] sm:$0xff]
        %v3385 = vld [vmem:[#allocation4 + $0x51] sm:$0xff]
        %v3386 = vld [vmem:[#allocation4 + $0x61] sm:$0xff]
        %v3387 = vld [vmem:[#allocation4 + $0x71] sm:$0xff]
        %3396 = vrot.lane.b32.xlu0 %v3380, 16
        %v3397 = vpop.permute.xlu0 %3396
        %3398 = vrot.lane.b32.xlu0 %v3381, 16
        %v3399 = vpop.permute.xlu0 %3398
        %3400 = vrot.lane.b32.xlu0 %v3382, 16
        %v3401 = vpop.permute.xlu0 %3400
        %3402 = vrot.lane.b32.xlu0 %v3383, 16
        %v3403 = vpop.permute.xlu0 %3402
        %3404 = vrot.lane.b32.xlu0 %v3384, 16
        %v3405 = vpop.permute.xlu0 %3404
        %3406 = vrot.lane.b32.xlu0 %v3385, 16
        %v3407 = vpop.permute.xlu0 %3406
        %3408 = vrot.lane.b32.xlu0 %v3386, 16
        %v3409 = vpop.permute.xlu0 %3408
        %3410 = vrot.lane.b32.xlu0 %v3387, 16
        %v3411 = vpop.permute.xlu0 %3410
        %vm3420 = vcmask 261248
        %3421 = vst.msk [vmem:[#allocation5] sm:$0xff] %vm3420, %v3397
        %3422 = vst.msk [vmem:[#allocation5 + $0x10] sm:$0xff] %vm3420, %v3399
        %3423 = vst.msk [vmem:[#allocation5 + $0x20] sm:$0xff] %vm3420, %v3401
        %3424 = vst.msk [vmem:[#allocation5 + $0x30] sm:$0xff] %vm3420, %v3403
        %3425 = vst.msk [vmem:[#allocation5 + $0x40] sm:$0xff] %vm3420, %v3405
        %3426 = vst.msk [vmem:[#allocation5 + $0x50] sm:$0xff] %vm3420, %v3407
        %3427 = vst.msk [vmem:[#allocation5 + $0x60] sm:$0xff] %vm3420, %v3409
        %3428 = vst.msk [vmem:[#allocation5 + $0x70] sm:$0xff] %vm3420, %v3411
        %v3429 = vld [vmem:[#allocation4 + $0x2] sm:$0xff]
        %v3430 = vld [vmem:[#allocation4 + $0x12] sm:$0xff]
        %v3431 = vld [vmem:[#allocation4 + $0x22] sm:$0xff]
        %v3432 = vld [vmem:[#allocation4 + $0x32] sm:$0xff]
        %v3433 = vld [vmem:[#allocation4 + $0x42] sm:$0xff]
        %v3434 = vld [vmem:[#allocation4 + $0x52] sm:$0xff]
        %v3435 = vld [vmem:[#allocation4 + $0x62] sm:$0xff]
        %v3436 = vld [vmem:[#allocation4 + $0x72] sm:$0xff]
        %3445 = vrot.lane.b32.xlu0 %v3429, 32
        %v3446 = vpop.permute.xlu0 %3445
        %3447 = vrot.lane.b32.xlu0 %v3430, 32
        %v3448 = vpop.permute.xlu0 %3447
        %3449 = vrot.lane.b32.xlu0 %v3431, 32
        %v3450 = vpop.permute.xlu0 %3449
        %3451 = vrot.lane.b32.xlu0 %v3432, 32
        %v3452 = vpop.permute.xlu0 %3451
        %3453 = vrot.lane.b32.xlu0 %v3433, 32
        %v3454 = vpop.permute.xlu0 %3453
        %3455 = vrot.lane.b32.xlu0 %v3434, 32
        %v3456 = vpop.permute.xlu0 %3455
        %3457 = vrot.lane.b32.xlu0 %v3435, 32
        %v3458 = vpop.permute.xlu0 %3457
        %3459 = vrot.lane.b32.xlu0 %v3436, 32
        %v3460 = vpop.permute.xlu0 %3459
        %vm3469 = vcmask 392448
        %3470 = vst.msk [vmem:[#allocation5] sm:$0xff] %vm3469, %v3446
        %3471 = vst.msk [vmem:[#allocation5 + $0x10] sm:$0xff] %vm3469, %v3448
        %3472 = vst.msk [vmem:[#allocation5 + $0x20] sm:$0xff] %vm3469, %v3450
        %3473 = vst.msk [vmem:[#allocation5 + $0x30] sm:$0xff] %vm3469, %v3452
        %3474 = vst.msk [vmem:[#allocation5 + $0x40] sm:$0xff] %vm3469, %v3454
        %3475 = vst.msk [vmem:[#allocation5 + $0x50] sm:$0xff] %vm3469, %v3456
        %3476 = vst.msk [vmem:[#allocation5 + $0x60] sm:$0xff] %vm3469, %v3458
        %3477 = vst.msk [vmem:[#allocation5 + $0x70] sm:$0xff] %vm3469, %v3460
        %v3478 = vld [vmem:[%s3355] sm:$0xff]
        %v3479 = vld [vmem:[%s3355 + $0x10] sm:$0xff]
        %v3480 = vld [vmem:[%s3355 + $0x20] sm:$0xff]
        %v3481 = vld [vmem:[%s3355 + $0x30] sm:$0xff]
        %v3482 = vld [vmem:[%s3355 + $0x40] sm:$0xff]
        %v3483 = vld [vmem:[%s3355 + $0x50] sm:$0xff]
        %v3484 = vld [vmem:[%s3355 + $0x60] sm:$0xff]
        %v3485 = vld [vmem:[%s3355 + $0x70] sm:$0xff]
        %3494 = vrot.lane.b32.xlu0 %v3478, 48
        %v3495 = vpop.permute.xlu0 %3494
        %3496 = vrot.lane.b32.xlu0 %v3479, 48
        %v3497 = vpop.permute.xlu0 %3496
        %3498 = vrot.lane.b32.xlu0 %v3480, 48
        %v3499 = vpop.permute.xlu0 %3498
        %3500 = vrot.lane.b32.xlu0 %v3481, 48
        %v3501 = vpop.permute.xlu0 %3500
        %3502 = vrot.lane.b32.xlu0 %v3482, 48
        %v3503 = vpop.permute.xlu0 %3502
        %3504 = vrot.lane.b32.xlu0 %v3483, 48
        %v3505 = vpop.permute.xlu0 %3504
        %3506 = vrot.lane.b32.xlu0 %v3484, 48
        %v3507 = vpop.permute.xlu0 %3506
        %3508 = vrot.lane.b32.xlu0 %v3485, 48
        %v3509 = vpop.permute.xlu0 %3508
        %vm3518 = vcmask 523648
        %3519 = vst.msk [vmem:[#allocation5] sm:$0xff] %vm3518, %v3495
        %3520 = vst.msk [vmem:[#allocation5 + $0x10] sm:$0xff] %vm3518, %v3497
        %3521 = vst.msk [vmem:[#allocation5 + $0x20] sm:$0xff] %vm3518, %v3499
        %3522 = vst.msk [vmem:[#allocation5 + $0x30] sm:$0xff] %vm3518, %v3501
        %3523 = vst.msk [vmem:[#allocation5 + $0x40] sm:$0xff] %vm3518, %v3503
        %3524 = vst.msk [vmem:[#allocation5 + $0x50] sm:$0xff] %vm3518, %v3505
        %3525 = vst.msk [vmem:[#allocation5 + $0x60] sm:$0xff] %vm3518, %v3507
        %3526 = vst.msk [vmem:[#allocation5 + $0x70] sm:$0xff] %vm3518, %v3509
        %v3527 = vld [vmem:[%s3355 + $0x1] sm:$0xff]
        %v3528 = vld [vmem:[%s3355 + $0x11] sm:$0xff]
        %v3529 = vld [vmem:[%s3355 + $0x21] sm:$0xff]
        %v3530 = vld [vmem:[%s3355 + $0x31] sm:$0xff]
        %v3531 = vld [vmem:[%s3355 + $0x41] sm:$0xff]
        %v3532 = vld [vmem:[%s3355 + $0x51] sm:$0xff]
        %v3533 = vld [vmem:[%s3355 + $0x61] sm:$0xff]
        %v3534 = vld [vmem:[%s3355 + $0x71] sm:$0xff]
        %3543 = vrot.lane.b32.xlu0 %v3527, 64
        %v3544 = vpop.permute.xlu0 %3543
        %3545 = vrot.lane.b32.xlu0 %v3528, 64
        %v3546 = vpop.permute.xlu0 %3545
        %3547 = vrot.lane.b32.xlu0 %v3529, 64
        %v3548 = vpop.permute.xlu0 %3547
        %3549 = vrot.lane.b32.xlu0 %v3530, 64
        %v3550 = vpop.permute.xlu0 %3549
        %3551 = vrot.lane.b32.xlu0 %v3531, 64
        %v3552 = vpop.permute.xlu0 %3551
        %3553 = vrot.lane.b32.xlu0 %v3532, 64
        %v3554 = vpop.permute.xlu0 %3553
        %3555 = vrot.lane.b32.xlu0 %v3533, 64
        %v3556 = vpop.permute.xlu0 %3555
        %3557 = vrot.lane.b32.xlu0 %v3534, 64
        %v3558 = vpop.permute.xlu0 %3557
        %vm3567 = vcmask 654848
        %3568 = vst.msk [vmem:[#allocation5] sm:$0xff] %vm3567, %v3544
        %3569 = vst.msk [vmem:[#allocation5 + $0x10] sm:$0xff] %vm3567, %v3546
        %3570 = vst.msk [vmem:[#allocation5 + $0x20] sm:$0xff] %vm3567, %v3548
        %3571 = vst.msk [vmem:[#allocation5 + $0x30] sm:$0xff] %vm3567, %v3550
        %3572 = vst.msk [vmem:[#allocation5 + $0x40] sm:$0xff] %vm3567, %v3552
        %3573 = vst.msk [vmem:[#allocation5 + $0x50] sm:$0xff] %vm3567, %v3554
        %3574 = vst.msk [vmem:[#allocation5 + $0x60] sm:$0xff] %vm3567, %v3556
        %3575 = vst.msk [vmem:[#allocation5 + $0x70] sm:$0xff] %vm3567, %v3558
        %v3576 = vld [vmem:[%s3355 + $0x2] sm:$0xff]
        %v3577 = vld [vmem:[%s3355 + $0x12] sm:$0xff]
        %v3578 = vld [vmem:[%s3355 + $0x22] sm:$0xff]
        %v3579 = vld [vmem:[%s3355 + $0x32] sm:$0xff]
        %v3580 = vld [vmem:[%s3355 + $0x42] sm:$0xff]
        %v3581 = vld [vmem:[%s3355 + $0x52] sm:$0xff]
        %v3582 = vld [vmem:[%s3355 + $0x62] sm:$0xff]
        %v3583 = vld [vmem:[%s3355 + $0x72] sm:$0xff]
        %3592 = vrot.lane.b32.xlu0 %v3576, 80
        %v3593 = vpop.permute.xlu0 %3592
        %3594 = vrot.lane.b32.xlu0 %v3577, 80
        %v3595 = vpop.permute.xlu0 %3594
        %3596 = vrot.lane.b32.xlu0 %v3578, 80
        %v3597 = vpop.permute.xlu0 %3596
        %3598 = vrot.lane.b32.xlu0 %v3579, 80
        %v3599 = vpop.permute.xlu0 %3598
        %3600 = vrot.lane.b32.xlu0 %v3580, 80
        %v3601 = vpop.permute.xlu0 %3600
        %3602 = vrot.lane.b32.xlu0 %v3581, 80
        %v3603 = vpop.permute.xlu0 %3602
        %3604 = vrot.lane.b32.xlu0 %v3582, 80
        %v3605 = vpop.permute.xlu0 %3604
        %3606 = vrot.lane.b32.xlu0 %v3583, 80
        %v3607 = vpop.permute.xlu0 %3606
        %vm3616 = vcmask 786048
        %3617 = vst.msk [vmem:[#allocation5] sm:$0xff] %vm3616, %v3593
        %3618 = vst.msk [vmem:[#allocation5 + $0x10] sm:$0xff] %vm3616, %v3595
        %3619 = vst.msk [vmem:[#allocation5 + $0x20] sm:$0xff] %vm3616, %v3597
        %3620 = vst.msk [vmem:[#allocation5 + $0x30] sm:$0xff] %vm3616, %v3599
        %3621 = vst.msk [vmem:[#allocation5 + $0x40] sm:$0xff] %vm3616, %v3601
        %3622 = vst.msk [vmem:[#allocation5 + $0x50] sm:$0xff] %vm3616, %v3603
        %3623 = vst.msk [vmem:[#allocation5 + $0x60] sm:$0xff] %vm3616, %v3605
        %3624 = vst.msk [vmem:[#allocation5 + $0x70] sm:$0xff] %vm3616, %v3607
        %s3625 = scalar_lea.vmem [#allocation4], 32
        %v3626 = vld [vmem:[%s3625] sm:$0xff]
        %v3627 = vld [vmem:[%s3625 + $0x10] sm:$0xff]
        %v3628 = vld [vmem:[%s3625 + $0x20] sm:$0xff]
        %v3629 = vld [vmem:[%s3625 + $0x30] sm:$0xff]
        %v3630 = vld [vmem:[%s3625 + $0x40] sm:$0xff]
        %v3631 = vld [vmem:[%s3625 + $0x50] sm:$0xff]
        %v3632 = vld [vmem:[%s3625 + $0x60] sm:$0xff]
        %v3633 = vld [vmem:[%s3625 + $0x70] sm:$0xff]
        %3642 = vrot.lane.b32.xlu0 %v3626, 96
        %v3643 = vpop.permute.xlu0 %3642
        %3644 = vrot.lane.b32.xlu0 %v3627, 96
        %v3645 = vpop.permute.xlu0 %3644
        %3646 = vrot.lane.b32.xlu0 %v3628, 96
        %v3647 = vpop.permute.xlu0 %3646
        %3648 = vrot.lane.b32.xlu0 %v3629, 96
        %v3649 = vpop.permute.xlu0 %3648
        %3650 = vrot.lane.b32.xlu0 %v3630, 96
        %v3651 = vpop.permute.xlu0 %3650
        %3652 = vrot.lane.b32.xlu0 %v3631, 96
        %v3653 = vpop.permute.xlu0 %3652
        %3654 = vrot.lane.b32.xlu0 %v3632, 96
        %v3655 = vpop.permute.xlu0 %3654
        %3656 = vrot.lane.b32.xlu0 %v3633, 96
        %v3657 = vpop.permute.xlu0 %3656
        %vm3666 = vcmask 917248
        %3667 = vst.msk [vmem:[#allocation5] sm:$0xff] %vm3666, %v3643
        %3668 = vst.msk [vmem:[#allocation5 + $0x10] sm:$0xff] %vm3666, %v3645
        %3669 = vst.msk [vmem:[#allocation5 + $0x20] sm:$0xff] %vm3666, %v3647
        %3670 = vst.msk [vmem:[#allocation5 + $0x30] sm:$0xff] %vm3666, %v3649
        %3671 = vst.msk [vmem:[#allocation5 + $0x40] sm:$0xff] %vm3666, %v3651
        %3672 = vst.msk [vmem:[#allocation5 + $0x50] sm:$0xff] %vm3666, %v3653
        %3673 = vst.msk [vmem:[#allocation5 + $0x60] sm:$0xff] %vm3666, %v3655
        %3674 = vst.msk [vmem:[#allocation5 + $0x70] sm:$0xff] %vm3666, %v3657
        %v3675 = vld [vmem:[%s3625 + $0x1] sm:$0xff]
        %v3676 = vld [vmem:[%s3625 + $0x11] sm:$0xff]
        %v3677 = vld [vmem:[%s3625 + $0x21] sm:$0xff]
        %v3678 = vld [vmem:[%s3625 + $0x31] sm:$0xff]
        %v3679 = vld [vmem:[%s3625 + $0x41] sm:$0xff]
        %v3680 = vld [vmem:[%s3625 + $0x51] sm:$0xff]
        %v3681 = vld [vmem:[%s3625 + $0x61] sm:$0xff]
        %v3682 = vld [vmem:[%s3625 + $0x71] sm:$0xff]
        %3691 = vrot.lane.b32.xlu0 %v3675, 112
        %v3692 = vpop.permute.xlu0 %3691
        %3693 = vrot.lane.b32.xlu0 %v3676, 112
        %v3694 = vpop.permute.xlu0 %3693
        %3695 = vrot.lane.b32.xlu0 %v3677, 112
        %v3696 = vpop.permute.xlu0 %3695
        %3697 = vrot.lane.b32.xlu0 %v3678, 112
        %v3698 = vpop.permute.xlu0 %3697
        %3699 = vrot.lane.b32.xlu0 %v3679, 112
        %v3700 = vpop.permute.xlu0 %3699
        %3701 = vrot.lane.b32.xlu0 %v3680, 112
        %v3702 = vpop.permute.xlu0 %3701
        %3703 = vrot.lane.b32.xlu0 %v3681, 112
        %v3704 = vpop.permute.xlu0 %3703
        %3705 = vrot.lane.b32.xlu0 %v3682, 112
        %v3706 = vpop.permute.xlu0 %3705
        %vm3715 = vcmask 1048448
        %3716 = vst.msk [vmem:[#allocation5] sm:$0xff] %vm3715, %v3692
        %3717 = vst.msk [vmem:[#allocation5 + $0x10] sm:$0xff] %vm3715, %v3694
        %3718 = vst.msk [vmem:[#allocation5 + $0x20] sm:$0xff] %vm3715, %v3696
        %3719 = vst.msk [vmem:[#allocation5 + $0x30] sm:$0xff] %vm3715, %v3698
        %3720 = vst.msk [vmem:[#allocation5 + $0x40] sm:$0xff] %vm3715, %v3700
        %3721 = vst.msk [vmem:[#allocation5 + $0x50] sm:$0xff] %vm3715, %v3702
        %3722 = vst.msk [vmem:[#allocation5 + $0x60] sm:$0xff] %vm3715, %v3704
        %3723 = vst.msk [vmem:[#allocation5 + $0x70] sm:$0xff] %vm3715, %v3706
        %v3724 = vld [vmem:[%s3625 + $0x2] sm:$0xff]
        %v3725 = vld [vmem:[%s3625 + $0x12] sm:$0xff]
        %v3726 = vld [vmem:[%s3625 + $0x22] sm:$0xff]
        %v3727 = vld [vmem:[%s3625 + $0x32] sm:$0xff]
        %v3728 = vld [vmem:[%s3625 + $0x42] sm:$0xff]
        %v3729 = vld [vmem:[%s3625 + $0x52] sm:$0xff]
        %v3730 = vld [vmem:[%s3625 + $0x62] sm:$0xff]
        %v3731 = vld [vmem:[%s3625 + $0x72] sm:$0xff]
        %3732 = vst.msk [vmem:[#allocation5 + $0x8] sm:$0xff] %vm2344, %v3724
        %3733 = vst.msk [vmem:[#allocation5 + $0x18] sm:$0xff] %vm2344, %v3725
        %3734 = vst.msk [vmem:[#allocation5 + $0x28] sm:$0xff] %vm2344, %v3726
        %3735 = vst.msk [vmem:[#allocation5 + $0x38] sm:$0xff] %vm2344, %v3727
        %3736 = vst.msk [vmem:[#allocation5 + $0x48] sm:$0xff] %vm2344, %v3728
        %3737 = vst.msk [vmem:[#allocation5 + $0x58] sm:$0xff] %vm2344, %v3729
        %3738 = vst.msk [vmem:[#allocation5 + $0x68] sm:$0xff] %vm2344, %v3730
        %3739 = vst.msk [vmem:[#allocation5 + $0x78] sm:$0xff] %vm2344, %v3731
        %v3740 = vld [vmem:[#allocation5] sm:$0xff]
        %v3741 = vld [vmem:[#allocation5 + $0x8] sm:$0xff]
        %v3742 = vld [vmem:[#allocation5 + $0x10] sm:$0xff]
        %v3743 = vld [vmem:[#allocation5 + $0x18] sm:$0xff]
        %v3744 = vld [vmem:[#allocation5 + $0x20] sm:$0xff]
        %v3745 = vld [vmem:[#allocation5 + $0x28] sm:$0xff]
        %v3746 = vld [vmem:[#allocation5 + $0x30] sm:$0xff]
        %v3747 = vld [vmem:[#allocation5 + $0x38] sm:$0xff]
        %v3748 = vld [vmem:[#allocation5 + $0x40] sm:$0xff]
        %v3749 = vld [vmem:[#allocation5 + $0x48] sm:$0xff]
        %v3750 = vld [vmem:[#allocation5 + $0x50] sm:$0xff]
        %v3751 = vld [vmem:[#allocation5 + $0x58] sm:$0xff]
        %v3752 = vld [vmem:[#allocation5 + $0x60] sm:$0xff]
        %v3753 = vld [vmem:[#allocation5 + $0x68] sm:$0xff]
        %v3754 = vld [vmem:[#allocation5 + $0x70] sm:$0xff]
        %v3755 = vld [vmem:[#allocation5 + $0x78] sm:$0xff]
        %v3756 = vld [vmem:[%s3] sm:$0xff]
        %v3757 = vld [vmem:[%s3 + $0x8] sm:$0xff]
        %v3758 = vld [vmem:[%s3 + $0x10] sm:$0xff]
        %v3759 = vld [vmem:[%s3 + $0x18] sm:$0xff]
        %v3760 = vld [vmem:[%s3 + $0x20] sm:$0xff]
        %v3761 = vld [vmem:[%s3 + $0x28] sm:$0xff]
        %v3762 = vld [vmem:[%s3 + $0x30] sm:$0xff]
        %v3763 = vld [vmem:[%s3 + $0x38] sm:$0xff]
        %v3764 = vld [vmem:[%s3 + $0x40] sm:$0xff]
        %v3765 = vld [vmem:[%s3 + $0x48] sm:$0xff]
        %v3766 = vld [vmem:[%s3 + $0x50] sm:$0xff]
        %v3767 = vld [vmem:[%s3 + $0x58] sm:$0xff]
        %v3768 = vld [vmem:[%s3 + $0x60] sm:$0xff]
        %v3769 = vld [vmem:[%s3 + $0x68] sm:$0xff]
        %v3770 = vld [vmem:[%s3 + $0x70] sm:$0xff]
        %v3771 = vld [vmem:[%s3 + $0x78] sm:$0xff]
        %v3772 = vld [vmem:[%s3 + $0x80] sm:$0xff]
        %v3773 = vld [vmem:[%s3 + $0x88] sm:$0xff]
        %v3774 = vld [vmem:[%s4] sm:$0x1]
        %v3776 = vlaneseq
        %v3777 = vshrl.u32 %v3776, 7
        %v3778 = vsub.s32 0, %v3777
        %v3779 = vrot.slane %v3774, %v3778
        %v3782 = vsel %vm2344, %v3741, 0
        %v3785 = vsel %vm2344, %v3743, 0
        %v3788 = vsel %vm2344, %v3745, 0
        %v3791 = vsel %vm2344, %v3747, 0
        %v3794 = vsel %vm2344, %v3749, 0
        %v3797 = vsel %vm2344, %v3751, 0
        %v3800 = vsel %vm2344, %v3753, 0
        %v3803 = vsel %vm2344, %v3755, 0
        %3805 = vmatprep.subr.mxu0 0.0
        %3806 = vmatpush1.msra.mxu0 %v3771
        %3807 = vmatprep.subr.mxu0 0.0
        %3808 = vmatpush1.msra.mxu0 %v3770
        %3809 = vmatprep.subr.mxu0 0.0
        %3810 = vmatpush1.msra.mxu0 %v3769
        %3811 = vmatprep.subr.mxu0 0.0
        %3812 = vmatpush1.msra.mxu0 %v3768
        %3813 = vmatprep.subr.mxu0 0.0
        %3814 = vmatpush1.msra.mxu0 %v3767
        %3815 = vmatprep.subr.mxu0 0.0
        %3816 = vmatpush1.msra.mxu0 %v3766
        %3817 = vmatprep.subr.mxu0 0.0
        %3818 = vmatpush1.msra.mxu0 %v3765
        %3819 = vmatprep.subr.mxu0 0.0
        %3820 = vmatpush1.msra.mxu0 %v3764
        %3821 = vmatprep.subr.mxu0 0.0
        %3822 = vmatpush1.msra.mxu0 %v3763
        %3823 = vmatprep.subr.mxu0 0.0
        %3824 = vmatpush1.msra.mxu0 %v3762
        %3825 = vmatprep.subr.mxu0 0.0
        %3826 = vmatpush1.msra.mxu0 %v3761
        %3827 = vmatprep.subr.mxu0 0.0
        %3828 = vmatpush1.msra.mxu0 %v3760
        %3829 = vmatprep.subr.mxu0 0.0
        %3830 = vmatpush1.msra.mxu0 %v3759
        %3831 = vmatprep.subr.mxu0 0.0
        %3832 = vmatpush1.msra.mxu0 %v3758
        %3833 = vmatprep.subr.mxu0 0.0
        %3834 = vmatpush1.msra.mxu0 %v3757
        %3835 = vmatprep.subr.mxu0 0.0
        %3836 = vmatpush1.msra.mxu0 %v3756
        %3837 = vmatprep.subr.mxu0 0.0
        %3838 = vmatpush2.msra.mxu0 0.0
        %3839 = vmatprep.subr.mxu0 0.0
        %3840 = vmatpush2.msra.mxu0 0.0
        %3841 = vmatprep.subr.mxu0 0.0
        %3842 = vmatpush2.msra.mxu0 0.0
        %3843 = vmatprep.subr.mxu0 0.0
        %3844 = vmatpush2.msra.mxu0 0.0
        %3845 = vmatprep.subr.mxu0 0.0
        %3846 = vmatpush2.msra.mxu0 0.0
        %3847 = vmatprep.subr.mxu0 0.0
        %3848 = vmatpush2.msra.mxu0 0.0
        %3849 = vmatprep.subr.mxu0 0.0
        %3850 = vmatpush2.msra.mxu0 0.0
        %3851 = vmatprep.subr.mxu0 0.0
        %3852 = vmatpush2.msra.mxu0 0.0
        %3853 = vmatprep.subr.mxu0 0.0
        %3854 = vmatpush2.msra.mxu0 0.0
        %3855 = vmatprep.subr.mxu0 0.0
        %3856 = vmatpush2.msra.mxu0 0.0
        %3857 = vmatprep.subr.mxu0 0.0
        %3858 = vmatpush2.msra.mxu0 0.0
        %3859 = vmatprep.subr.mxu0 0.0
        %3860 = vmatpush2.msra.mxu0 0.0
        %3861 = vmatprep.subr.mxu0 0.0
        %3862 = vmatpush2.msra.mxu0 0.0
        %3863 = vmatprep.subr.mxu0 0.0
        %3864 = vmatpush2.msra.mxu0 0.0
        %3865 = vmatprep.subr.mxu0 0.0
        %3866 = vmatpush2.msra.mxu0 %v3773
        %3867 = vmatprep.subr.mxu0 0.0
        %3868 = vmatpush2.msra.mxu0 %v3772
        %3869 = vmatprep.mubr.f32.mxu0 %v3782
        %3870 = vmatmul.mubr.f32.gmra.mxu0 %v3740
        %v3871 = vpop.f32.mrf.mxu0
        %v3872 = vadd.f32 %v3779, %v3871
        %v3873 = vpop.f32.mrf.mxu0
        %3874 = vmatprep.mubr.f32.mxu0 %v3785
        %3875 = vmatmul.mubr.f32.gmra.mxu0 %v3742
        %v3876 = vpop.f32.mrf.mxu0
        %v3877 = vadd.f32 %v3779, %v3876
        %v3878 = vpop.f32.mrf.mxu0
        %3879 = vmatprep.mubr.f32.mxu0 %v3788
        %3880 = vmatmul.mubr.f32.gmra.mxu0 %v3744
        %v3881 = vpop.f32.mrf.mxu0
        %v3882 = vadd.f32 %v3779, %v3881
        %v3883 = vpop.f32.mrf.mxu0
        %3884 = vmatprep.mubr.f32.mxu0 %v3791
        %3885 = vmatmul.mubr.f32.gmra.mxu0 %v3746
        %v3886 = vpop.f32.mrf.mxu0
        %v3887 = vadd.f32 %v3779, %v3886
        %v3888 = vpop.f32.mrf.mxu0
        %3889 = vmatprep.mubr.f32.mxu0 %v3794
        %3890 = vmatmul.mubr.f32.gmra.mxu0 %v3748
        %v3891 = vpop.f32.mrf.mxu0
        %v3892 = vadd.f32 %v3779, %v3891
        %v3893 = vpop.f32.mrf.mxu0
        %3894 = vmatprep.mubr.f32.mxu0 %v3797
        %3895 = vmatmul.mubr.f32.gmra.mxu0 %v3750
        %v3896 = vpop.f32.mrf.mxu0
        %v3897 = vadd.f32 %v3779, %v3896
        %v3898 = vpop.f32.mrf.mxu0
        %3899 = vmatprep.mubr.f32.mxu0 %v3800
        %3900 = vmatmul.mubr.f32.gmra.mxu0 %v3752
        %v3901 = vpop.f32.mrf.mxu0
        %v3902 = vadd.f32 %v3779, %v3901
        %v3903 = vpop.f32.mrf.mxu0
        %3904 = vmatprep.mubr.f32.mxu0 %v3803
        %3905 = vmatmul.mubr.f32.gmra.mxu0 %v3754
        %v3906 = vpop.f32.mrf.mxu0
        %v3907 = vadd.f32 %v3779, %v3906
        %v3908 = vpop.f32.mrf.mxu0
        %3909 = vdwg.mxu0
        %v3910 = vmax.f32 %v3872, 0.0
        %v3911 = vmax.f32 %v3877, 0.0
        %v3912 = vmax.f32 %v3882, 0.0
        %v3913 = vmax.f32 %v3887, 0.0
        %v3914 = vmax.f32 %v3892, 0.0
        %v3915 = vmax.f32 %v3897, 0.0
        %v3916 = vmax.f32 %v3902, 0.0
        %v3917 = vmax.f32 %v3907, 0.0
        %vm3918 = vcmask 261120
        %v3919 = vsel %vm3918, %v3910, 0.0
        %v3920 = vsel %vm3918, %v3911, 0.0
        %v3921 = vadd.f32 %v3919, %v3920
        %v3922 = vsel %vm3918, %v3912, 0.0
        %v3923 = vadd.f32 %v3921, %v3922
        %v3924 = vsel %vm3918, %v3913, 0.0
        %v3925 = vadd.f32 %v3923, %v3924
        %v3926 = vsel %vm3918, %v3914, 0.0
        %v3927 = vadd.f32 %v3925, %v3926
        %v3928 = vsel %vm3918, %v3915, 0.0
        %v3929 = vadd.f32 %v3927, %v3928
        %v3930 = vsel %vm3918, %v3916, 0.0
        %v3931 = vadd.f32 %v3929, %v3930
        %v3932 = vsel %vm3918, %v3917, 0.0
        %v3933 = vadd.f32 %v3931, %v3932
        %v3934 = vrot.slane %v3933, 4
        %v3935 = vadd.f32 %v3933, %v3934
        %v3936 = vrot.slane %v3935, 2
        %v3937 = vadd.f32 %v3935, %v3936
        %v3938 = vrot.slane %v3937, 1
        %v3939 = vadd.f32 %v3937, %v3938
        %v3940 = vrcp.pop 64.0
        %v3941 = vmul.f32 %v3939, %v3940
        %vm3942 = vcmask 253952
        %3943 = vst.msk [vmem:[%s216] sm:$0x1] %vm3942, %v3941
        %s3944 = sand.u32 %s137, 1
        %s3945 = scalar_lea.sflag [#allocation7], %s3944
        %s3946 = sand.u32 %s137, 1
        %s3947 = scalar_lea.vmem [#allocation6], %s3946
        // Predicated region
        $region41: #{tpu_custom_call.1} parent=39 // pred_check
          %p3948 = pneg %p147
        $region42: #{tpu_custom_call.1} parent=39 // pred_check_branch
          %3950 = sbr.rel (%p3948) target = $region44
        $region43: #{tpu_custom_call.1} parent=39 // pred_region
          %s3952 = ssub.s32 16, 16
          %3953 = vsyncadd %s3945, %s3952
          %s3954 = smul.addr %s19, 16
          %s3955 = scalar_lea.hbm %s5, %s3954
          %s3957 = sshll.u32 %s3947, 4
          %s3958 = int_to_ptr.vmem [resolvable:$true] %s3957
          %3960 = dma.vmem_to_hbm [thread:$0]  %s3958, 16, %s3955, %s3945
        $region44: #{tpu_custom_call.1} parent=39 // pred_fallthru
          _
      $region40: #{tpu_custom_call.1} parent=5 // pred_fallthru
        _
      %p3961 = scmp.le.s32.totalorder 2, %s14
      // Predicated region
      $region45: #{tpu_custom_call.1} parent=5 // pred_check
        %p3962 = pneg %p3961
      $region46: #{tpu_custom_call.1} parent=5 // pred_check_branch
        %3964 = sbr.rel (%p3962) target = $region48
      $region47: #{tpu_custom_call.1} parent=5 // pred_region
        %s3965 = ssub.s32 %s14, 2
        // Predicated region
        $region49: #{tpu_custom_call.1} parent=47 // pred_check
          %p3966 = pneg %p153
        $region50: #{tpu_custom_call.1} parent=47 // pred_check_branch
          %3968 = sbr.rel (%p3966) target = $region52
        $region51: #{tpu_custom_call.1} parent=47 // pred_region
          %s3969 = sand.u32 %s138, 1
          %s3970 = scalar_lea.sflag [#allocation7], %s3969
          %s3971 = sand.u32 %s138, 1
          %s3972 = scalar_lea.vmem [#allocation6], %s3971
          %3973 = dma.done %s3970, 16
        $region52: #{tpu_custom_call.1} parent=47 // pred_fallthru
          _
      $region48: #{tpu_custom_call.1} parent=5 // pred_fallthru
        _
    $region6: #{tpu_custom_call.1} parent=1 // loop_footer
      %s18 = sadd.s32 1, %s14
    $region7: #{tpu_custom_call.1} parent=1 // loop_footer_branch
      %13 = sbr.rel target = $region3
    $region8: #{tpu_custom_call.1} parent=1 // loop_exit
      _
    %3974 = vsyncpa [#allocation7], 1
    %s3975 = scalar_lea.sflag [#allocation7], 1
    %3976 = vsyncpa %s3975, 1

</llo_original>
